<compile_context>
chip_gen: v7x
topology: tpu7x:2x2x1
jax: 0.10.0
libtpu: 0.0.40
codegen_flags: <defaults>
</compile_context>

<pallas_src>
import functools

import jax
import jax.numpy as jnp
from jax import lax
from jax.experimental import pallas as pl
from jax.experimental.pallas import tpu as pltpu


# ----------------------------- kernel ---------------------------------------


def _plain_block_kernel(has_proj, *refs):
    """Fused PlainBlock: relu(conv2(relu(conv1(x))) + shortcut(x)).

    Activations are NHWC inside the kernel (channels on the lane axis).
    Each 3x3 conv is one im2col matmul against a VMEM patch buffer; the
    conv1 intermediate and both zero-pads stay entirely in VMEM.
    """
    if has_proj:
        (x_ref, w1_ref, w2_ref, ws_ref, o_ref,
         xpad_sc, p1_sc, ypad_sc, p2_sc) = refs
    else:
        (x_ref, w1_ref, w2_ref, o_ref,
         xpad_sc, p1_sc, ypad_sc, p2_sc) = refs
        ws_ref = None

    _, H, W, cin = x_ref.shape
    cout = o_ref.shape[3]
    HW = H * W
    cdtype = xpad_sc.dtype

    # ---- stage x into a zero-padded VMEM buffer: padding done on-chip ------
    xpad_sc[...] = jnp.zeros_like(xpad_sc)
    xpad_sc[1:H + 1, 1:W + 1, :] = x_ref[0]

    # ---- conv1 as ONE im2col matmul: (HW, 9*Cin) @ (9*Cin, Cout) -----------
    for kh in range(3):
        for kw in range(3):
            t = kh * 3 + kw
            p1_sc[:, t * cin:(t + 1) * cin] = (
                xpad_sc[kh:kh + H, kw:kw + W, :].reshape(HW, cin))
    y = jnp.dot(p1_sc[...], w1_ref[...], preferred_element_type=jnp.float32)
    y = jnp.maximum(y, 0.0)                              # relu(conv1(x))

    # ---- intermediate never leaves VMEM; re-padded for conv2 ---------------
    ypad_sc[...] = jnp.zeros_like(ypad_sc)
    ypad_sc[1:H + 1, 1:W + 1, :] = y.reshape(H, W, cout).astype(cdtype)

    # ---- conv2 as ONE im2col matmul: (HW, 9*Cout) @ (9*Cout, Cout) ---------
    for kh in range(3):
        for kw in range(3):
            t = kh * 3 + kw
            p2_sc[:, t * cout:(t + 1) * cout] = (
                ypad_sc[kh:kh + H, kw:kw + W, :].reshape(HW, cout))
    acc = jnp.dot(p2_sc[...], w2_ref[...], preferred_element_type=jnp.float32)

    # ---- shortcut -----------------------------------------------------------
    x_flat = x_ref[0].reshape(HW, cin)
    if ws_ref is None:
        sc = x_flat.astype(jnp.float32)                  # identity (cin == cout)
    else:
        sc = jnp.dot(x_flat, ws_ref[...], preferred_element_type=jnp.float32)

    out = jnp.maximum(acc + sc, 0.0)
    o_ref[...] = out.reshape(1, H, W, cout).astype(o_ref.dtype)


# ----------------------------- wrapper --------------------------------------


def plain_block_forward(x_nchw, w1_oihw, w2_oihw, ws_oihw, stride=1,
                        compute_dtype=None):
    """PlainBlock forward. Inputs/weights use PyTorch conventions (NCHW/OIHW).

    compute_dtype: optional narrower dtype (e.g. jnp.bfloat16) for activations
    and weights fed to the kernel; accumulation stays float32.
    """
    # TODO(synk): stride > 1 (downsampling PlainBlock) not implemented.
    assert stride == 1, "stride > 1 not implemented in the Pallas kernel"
    N, Cin, H, W = x_nchw.shape
    Cout = w1_oihw.shape[0]
    if ws_oihw is None:
        assert Cin == Cout, "identity shortcut requires in_d == out_d"
    cdtype = jnp.dtype(compute_dtype) if compute_dtype is not None else x_nchw.dtype
    HW = H * W

    # NCHW -> NHWC (channels on the 128-lane axis); weights -> im2col matrices
    # laid out to match the patch-buffer column order (tap-major, channel-minor).
    x = jnp.transpose(x_nchw, (0, 2, 3, 1)).astype(cdtype)
    w1 = jnp.transpose(w1_oihw, (2, 3, 1, 0)).reshape(9 * Cin, Cout).astype(cdtype)
    w2 = jnp.transpose(w2_oihw, (2, 3, 1, 0)).reshape(9 * Cout, Cout).astype(cdtype)

    # explicit VMEM budget (scratch + double-buffered blocks + weights), with
    # headroom, clamped to [32 MiB, 64 MiB] so it is valid on v5e/v6e/v7x.
    cbytes = jnp.dtype(cdtype).itemsize
    obytes = jnp.dtype(x_nchw.dtype).itemsize
    scratch_bytes = cbytes * ((H + 2) * (W + 2) * (Cin + Cout)
                              + HW * 9 * (Cin + Cout))
    block_bytes = 2 * (cbytes * HW * Cin + obytes * HW * Cout)
    weight_bytes = 2 * cbytes * (9 * Cin * Cout + 9 * Cout * Cout + Cin * Cout)
    vmem_limit = int(min(max(2 * (scratch_bytes + block_bytes + weight_bytes),
                             32 * 1024 * 1024), 64 * 1024 * 1024))

    scratch_shapes = [
        pltpu.VMEM((H + 2, W + 2, Cin), cdtype),    # zero-padded input
        pltpu.VMEM((HW, 9 * Cin), cdtype),          # im2col buffer for conv1
        pltpu.VMEM((H + 2, W + 2, Cout), cdtype),   # zero-padded relu(conv1(x))
        pltpu.VMEM((HW, 9 * Cout), cdtype),         # im2col buffer for conv2
    ]

    has_proj = ws_oihw is not None
    in_specs = [
        pl.BlockSpec((1, H, W, Cin), lambda n: (n, 0, 0, 0)),
        pl.BlockSpec((9 * Cin, Cout), lambda n: (0, 0)),
        pl.BlockSpec((9 * Cout, Cout), lambda n: (0, 0)),
    ]
    args = [x, w1, w2]
    if has_proj:
        ws = jnp.transpose(ws_oihw, (2, 3, 1, 0)).reshape(Cin, Cout).astype(cdtype)
        in_specs.append(pl.BlockSpec((Cin, Cout), lambda n: (0, 0)))
        args.append(ws)

    out_nhwc = pl.pallas_call(
        functools.partial(_plain_block_kernel, has_proj),
        out_shape=jax.ShapeDtypeStruct((N, H, W, Cout), x_nchw.dtype),
        grid_spec=pltpu.PrefetchScalarGridSpec(
            num_scalar_prefetch=0,
            grid=(N,),
            in_specs=in_specs,
            out_specs=pl.BlockSpec((1, H, W, Cout), lambda n: (n, 0, 0, 0)),
            scratch_shapes=scratch_shapes,
        ),
        compiler_params=pltpu.CompilerParams(
            dimension_semantics=("parallel",),
            vmem_limit_bytes=vmem_limit),
    )(*args)
    return jnp.transpose(out_nhwc, (0, 3, 1, 2))          # back to NCHW


# ----------------------------- reference & main ------------------------------


def _ref_forward(x, w1, w2, ws, stride=1):
    dn = ("NCHW", "OIHW", "NCHW")
    out = lax.conv_general_dilated(x, w1, (stride, stride), ((1, 1), (1, 1)),
                                   dimension_numbers=dn)
    out = jnp.maximum(out, 0.0)
    out = lax.conv_general_dilated(out, w2, (1, 1), ((1, 1), (1, 1)),
                                   dimension_numbers=dn)
    sc = x if ws is None else lax.conv_general_dilated(
        x, ws, (stride, stride), ((0, 0), (0, 0)), dimension_numbers=dn)
    return jnp.maximum(out + sc, 0.0)


def _make_params(key, in_d, out_d):
    k1, k2, k3 = jax.random.split(key, 3)
    w1 = jax.random.normal(k1, (out_d, in_d, 3, 3), jnp.float32) * (2.0 / (in_d * 9)) ** 0.5
    w2 = jax.random.normal(k2, (out_d, out_d, 3, 3), jnp.float32) * (2.0 / (out_d * 9)) ** 0.5
    ws = (None if in_d == out_d
          else jax.random.normal(k3, (out_d, in_d, 1, 1), jnp.float32) * (2.0 / in_d) ** 0.5)
    return w1, w2, ws


if __name__ == "__main__":
    N, H, W = 2, 16, 16
    key = jax.random.PRNGKey(0)
    kx1, kx2, kp1, kp2 = jax.random.split(key, 4)

    # --- case 1: projection shortcut (in_d != out_d), f32, strict check -----
    in_d, out_d = 4, 8
    x = jax.random.normal(kx1, (N, in_d, H, W), jnp.float32)
    w1, w2, ws = _make_params(kp1, in_d, out_d)
    out = jax.block_until_ready(plain_block_forward(x, w1, w2, ws))
    ref = jax.block_until_ready(_ref_forward(x, w1, w2, ws))
    assert out.shape == (N, out_d, H, W)
    assert jnp.allclose(out, ref, atol=1e-4, rtol=1e-4), "projection-shortcut mismatch"

    # --- case 2: identity shortcut (in_d == out_d), f32, strict check -------
    in_d = out_d = 8
    x2 = jax.random.normal(kx2, (N, in_d, H, W), jnp.float32)
    w1b, w2b, wsb = _make_params(kp2, in_d, out_d)
    out2 = jax.block_until_ready(plain_block_forward(x2, w1b, w2b, wsb))
    ref2 = jax.block_until_ready(_ref_forward(x2, w1b, w2b, wsb))
    assert out2.shape == (N, out_d, H, W)
    assert jnp.allclose(out2, ref2, atol=1e-4, rtol=1e-4), "identity-shortcut mismatch"

    # --- case 3: bf16 compute path (v6e/v7x MXU-friendly), loose check ------
    out3 = jax.block_until_ready(
        plain_block_forward(x, w1, w2, ws, compute_dtype=jnp.bfloat16))
    assert out3.shape == (N, 8, H, W)
    assert jnp.allclose(out3, ref, atol=1e-1, rtol=1e-1), "bf16 path mismatch"

    print("KERNEL_OK")
</pallas_src>

<mosaic_0001>
module attributes {stable_mosaic.version = 11 : i64} {
  func.func @_plain_block_kernel(%arg0: i32, %arg1: memref<1x16x16x4xf32, #tpu.memory_space<vmem>>, %arg2: memref<36x8xf32, #tpu.memory_space<vmem>>, %arg3: memref<72x8xf32, #tpu.memory_space<vmem>>, %arg4: memref<4x8xf32, #tpu.memory_space<vmem>>, %arg5: memref<1x16x16x8xf32, #tpu.memory_space<vmem>>, %arg6: memref<18x18x4xf32, #tpu.memory_space<vmem>>, %arg7: memref<256x36xf32, #tpu.memory_space<vmem>>, %arg8: memref<18x18x8xf32, #tpu.memory_space<vmem>>, %arg9: memref<256x72xf32, #tpu.memory_space<vmem>>) attributes {dimension_semantics = [#tpu.dimension_semantics<parallel>], iteration_bounds = array<i64: 2>, scalar_prefetch = 0 : i64, scratch_operands = 4 : i64, tpu.core_type = #tpu.core_type<tc>, window_params = [{transform_indices = @transform_0, window_bounds = array<i64: 1, 16, 16, 4>}, {pipeline_mode = #tpu.pipeline_mode<synchronous>, transform_indices = @transform_1, window_bounds = array<i64: 36, 8>}, {pipeline_mode = #tpu.pipeline_mode<synchronous>, transform_indices = @transform_2, window_bounds = array<i64: 72, 8>}, {pipeline_mode = #tpu.pipeline_mode<synchronous>, transform_indices = @transform_3, window_bounds = array<i64: 4, 8>}, {transform_indices = @transform_4, window_bounds = array<i64: 1, 16, 16, 8>}]} {
    %cst = arith.constant 0.000000e+00 : f32
    %0 = vector.broadcast %cst : f32 to vector<18x18x4xf32>
    %c0 = arith.constant 0 : index
    %c0_0 = arith.constant 0 : index
    %c0_1 = arith.constant 0 : index
    %1 = vector.load %arg6[%c0, %c0_0, %c0_1] : memref<18x18x4xf32, #tpu.memory_space<vmem>>, vector<18x18x4xf32>
    tpu.vector_store %arg6[%c0, %c0_0, %c0_1], %0 {strides = array<i32>} : memref<18x18x4xf32, #tpu.memory_space<vmem>>, vector<18x18x4xf32>,
    %c0_2 = arith.constant 0 : index
    %c0_3 = arith.constant 0 : index
    %c0_4 = arith.constant 0 : index
    %c0_5 = arith.constant 0 : index
    %2 = vector.load %arg1[%c0_2, %c0_3, %c0_4, %c0_5] : memref<1x16x16x4xf32, #tpu.memory_space<vmem>>, vector<1x16x16x4xf32>
    %3 = vector.shape_cast %2 : vector<1x16x16x4xf32> to vector<16x16x4xf32>
    %c1 = arith.constant 1 : index
    %c1_6 = arith.constant 1 : index
    %c0_7 = arith.constant 0 : index
    %4 = vector.load %arg6[%c1, %c1_6, %c0_7] : memref<18x18x4xf32, #tpu.memory_space<vmem>>, vector<16x16x4xf32>
    tpu.vector_store %arg6[%c1, %c1_6, %c0_7], %3 {strides = array<i32>} : memref<18x18x4xf32, #tpu.memory_space<vmem>>, vector<16x16x4xf32>,
    %c0_8 = arith.constant 0 : index
    %c0_9 = arith.constant 0 : index
    %c0_10 = arith.constant 0 : index
    %5 = vector.load %arg6[%c0_8, %c0_9, %c0_10] : memref<18x18x4xf32, #tpu.memory_space<vmem>>, vector<16x16x4xf32>
    %6 = vector.shape_cast %5 : vector<16x16x4xf32> to vector<256x4xf32>
    %c0_11 = arith.constant 0 : index
    %c0_12 = arith.constant 0 : index
    %7 = vector.load %arg7[%c0_11, %c0_12] : memref<256x36xf32, #tpu.memory_space<vmem>>, vector<256x4xf32>
    tpu.vector_store %arg7[%c0_11, %c0_12], %6 {strides = array<i32>} : memref<256x36xf32, #tpu.memory_space<vmem>>, vector<256x4xf32>,
    %c0_13 = arith.constant 0 : index
    %c1_14 = arith.constant 1 : index
    %c0_15 = arith.constant 0 : index
    %8 = vector.load %arg6[%c0_13, %c1_14, %c0_15] : memref<18x18x4xf32, #tpu.memory_space<vmem>>, vector<16x16x4xf32>
    %9 = vector.shape_cast %8 : vector<16x16x4xf32> to vector<256x4xf32>
    %c0_16 = arith.constant 0 : index
    %c4 = arith.constant 4 : index
    %10 = vector.load %arg7[%c0_16, %c4] : memref<256x36xf32, #tpu.memory_space<vmem>>, vector<256x4xf32>
    tpu.vector_store %arg7[%c0_16, %c4], %9 {strides = array<i32>} : memref<256x36xf32, #tpu.memory_space<vmem>>, vector<256x4xf32>,
    %c0_17 = arith.constant 0 : index
    %c2 = arith.constant 2 : index
    %c0_18 = arith.constant 0 : index
    %11 = vector.load %arg6[%c0_17, %c2, %c0_18] : memref<18x18x4xf32, #tpu.memory_space<vmem>>, vector<16x16x4xf32>
    %12 = vector.shape_cast %11 : vector<16x16x4xf32> to vector<256x4xf32>
    %c0_19 = arith.constant 0 : index
    %c8 = arith.constant 8 : index
    %13 = vector.load %arg7[%c0_19, %c8] : memref<256x36xf32, #tpu.memory_space<vmem>>, vector<256x4xf32>
    tpu.vector_store %arg7[%c0_19, %c8], %12 {strides = array<i32>} : memref<256x36xf32, #tpu.memory_space<vmem>>, vector<256x4xf32>,
    %c1_20 = arith.constant 1 : index
    %c0_21 = arith.constant 0 : index
    %c0_22 = arith.constant 0 : index
    %14 = vector.load %arg6[%c1_20, %c0_21, %c0_22] : memref<18x18x4xf32, #tpu.memory_space<vmem>>, vector<16x16x4xf32>
    %15 = vector.shape_cast %14 : vector<16x16x4xf32> to vector<256x4xf32>
    %c0_23 = arith.constant 0 : index
    %c12 = arith.constant 12 : index
    %16 = vector.load %arg7[%c0_23, %c12] : memref<256x36xf32, #tpu.memory_space<vmem>>, vector<256x4xf32>
    tpu.vector_store %arg7[%c0_23, %c12], %15 {strides = array<i32>} : memref<256x36xf32, #tpu.memory_space<vmem>>, vector<256x4xf32>,
    %c1_24 = arith.constant 1 : index
    %c1_25 = arith.constant 1 : index
    %c0_26 = arith.constant 0 : index
    %17 = vector.load %arg6[%c1_24, %c1_25, %c0_26] : memref<18x18x4xf32, #tpu.memory_space<vmem>>, vector<16x16x4xf32>
    %18 = vector.shape_cast %17 : vector<16x16x4xf32> to vector<256x4xf32>
    %c0_27 = arith.constant 0 : index
    %c16 = arith.constant 16 : index
    %19 = vector.load %arg7[%c0_27, %c16] : memref<256x36xf32, #tpu.memory_space<vmem>>, vector<256x4xf32>
    tpu.vector_store %arg7[%c0_27, %c16], %18 {strides = array<i32>} : memref<256x36xf32, #tpu.memory_space<vmem>>, vector<256x4xf32>,
    %c1_28 = arith.constant 1 : index
    %c2_29 = arith.constant 2 : index
    %c0_30 = arith.constant 0 : index
    %20 = vector.load %arg6[%c1_28, %c2_29, %c0_30] : memref<18x18x4xf32, #tpu.memory_space<vmem>>, vector<16x16x4xf32>
    %21 = vector.shape_cast %20 : vector<16x16x4xf32> to vector<256x4xf32>
    %c0_31 = arith.constant 0 : index
    %c20 = arith.constant 20 : index
    %22 = vector.load %arg7[%c0_31, %c20] : memref<256x36xf32, #tpu.memory_space<vmem>>, vector<256x4xf32>
    tpu.vector_store %arg7[%c0_31, %c20], %21 {strides = array<i32>} : memref<256x36xf32, #tpu.memory_space<vmem>>, vector<256x4xf32>,
    %c2_32 = arith.constant 2 : index
    %c0_33 = arith.constant 0 : index
    %c0_34 = arith.constant 0 : index
    %23 = vector.load %arg6[%c2_32, %c0_33, %c0_34] : memref<18x18x4xf32, #tpu.memory_space<vmem>>, vector<16x16x4xf32>
    %24 = vector.shape_cast %23 : vector<16x16x4xf32> to vector<256x4xf32>
    %c0_35 = arith.constant 0 : index
    %c24 = arith.constant 24 : index
    %25 = vector.load %arg7[%c0_35, %c24] : memref<256x36xf32, #tpu.memory_space<vmem>>, vector<256x4xf32>
    tpu.vector_store %arg7[%c0_35, %c24], %24 {strides = array<i32>} : memref<256x36xf32, #tpu.memory_space<vmem>>, vector<256x4xf32>,
    %c2_36 = arith.constant 2 : index
    %c1_37 = arith.constant 1 : index
    %c0_38 = arith.constant 0 : index
    %26 = vector.load %arg6[%c2_36, %c1_37, %c0_38] : memref<18x18x4xf32, #tpu.memory_space<vmem>>, vector<16x16x4xf32>
    %27 = vector.shape_cast %26 : vector<16x16x4xf32> to vector<256x4xf32>
    %c0_39 = arith.constant 0 : index
    %c28 = arith.constant 28 : index
    %28 = vector.load %arg7[%c0_39, %c28] : memref<256x36xf32, #tpu.memory_space<vmem>>, vector<256x4xf32>
    tpu.vector_store %arg7[%c0_39, %c28], %27 {strides = array<i32>} : memref<256x36xf32, #tpu.memory_space<vmem>>, vector<256x4xf32>,
    %c2_40 = arith.constant 2 : index
    %c2_41 = arith.constant 2 : index
    %c0_42 = arith.constant 0 : index
    %29 = vector.load %arg6[%c2_40, %c2_41, %c0_42] : memref<18x18x4xf32, #tpu.memory_space<vmem>>, vector<16x16x4xf32>
    %30 = vector.shape_cast %29 : vector<16x16x4xf32> to vector<256x4xf32>
    %c0_43 = arith.constant 0 : index
    %c32 = arith.constant 32 : index
    %31 = vector.load %arg7[%c0_43, %c32] : memref<256x36xf32, #tpu.memory_space<vmem>>, vector<256x4xf32>
    tpu.vector_store %arg7[%c0_43, %c32], %30 {strides = array<i32>} : memref<256x36xf32, #tpu.memory_space<vmem>>, vector<256x4xf32>,
    %c0_44 = arith.constant 0 : index
    %c0_45 = arith.constant 0 : index
    %32 = vector.load %arg7[%c0_44, %c0_45] : memref<256x36xf32, #tpu.memory_space<vmem>>, vector<256x36xf32>
    %c0_46 = arith.constant 0 : index
    %c0_47 = arith.constant 0 : index
    %33 = vector.load %arg2[%c0_46, %c0_47] : memref<36x8xf32, #tpu.memory_space<vmem>>, vector<36x8xf32>
    %cst_48 = arith.constant dense<0.000000e+00> : vector<256x8xf32>
    %34 = tpu.matmul %32, %33, %cst_48 {dimension_numbers = #tpu.dot_dimension_numbers<[1], [0], [0], [1], [0, 0, 1, 1], [], []>} : vector<256x36xf32>, vector<36x8xf32>, vector<256x8xf32> -> vector<256x8xf32>
    %cst_49 = arith.constant 0.000000e+00 : f32
    %35 = vector.broadcast %cst_49 : f32 to vector<256x8xf32>
    %36 = arith.maximumf %34, %35 : vector<256x8xf32>
    %cst_50 = arith.constant 0.000000e+00 : f32
    %37 = vector.broadcast %cst_50 : f32 to vector<18x18x8xf32>
    %c0_51 = arith.constant 0 : index
    %c0_52 = arith.constant 0 : index
    %c0_53 = arith.constant 0 : index
    %38 = vector.load %arg8[%c0_51, %c0_52, %c0_53] : memref<18x18x8xf32, #tpu.memory_space<vmem>>, vector<18x18x8xf32>
    tpu.vector_store %arg8[%c0_51, %c0_52, %c0_53], %37 {strides = array<i32>} : memref<18x18x8xf32, #tpu.memory_space<vmem>>, vector<18x18x8xf32>,
    %39 = vector.shape_cast %36 : vector<256x8xf32> to vector<16x16x8xf32>
    %c1_54 = arith.constant 1 : index
    %c1_55 = arith.constant 1 : index
    %c0_56 = arith.constant 0 : index
    %40 = vector.load %arg8[%c1_54, %c1_55, %c0_56] : memref<18x18x8xf32, #tpu.memory_space<vmem>>, vector<16x16x8xf32>
    tpu.vector_store %arg8[%c1_54, %c1_55, %c0_56], %39 {strides = array<i32>} : memref<18x18x8xf32, #tpu.memory_space<vmem>>, vector<16x16x8xf32>,
    %c0_57 = arith.constant 0 : index
    %c0_58 = arith.constant 0 : index
    %c0_59 = arith.constant 0 : index
    %41 = vector.load %arg8[%c0_57, %c0_58, %c0_59] : memref<18x18x8xf32, #tpu.memory_space<vmem>>, vector<16x16x8xf32>
    %42 = vector.shape_cast %41 : vector<16x16x8xf32> to vector<256x8xf32>
    %c0_60 = arith.constant 0 : index
    %c0_61 = arith.constant 0 : index
    %43 = vector.load %arg9[%c0_60, %c0_61] : memref<256x72xf32, #tpu.memory_space<vmem>>, vector<256x8xf32>
    tpu.vector_store %arg9[%c0_60, %c0_61], %42 {strides = array<i32>} : memref<256x72xf32, #tpu.memory_space<vmem>>, vector<256x8xf32>,
    %c0_62 = arith.constant 0 : index
    %c1_63 = arith.constant 1 : index
    %c0_64 = arith.constant 0 : index
    %44 = vector.load %arg8[%c0_62, %c1_63, %c0_64] : memref<18x18x8xf32, #tpu.memory_space<vmem>>, vector<16x16x8xf32>
    %45 = vector.shape_cast %44 : vector<16x16x8xf32> to vector<256x8xf32>
    %c0_65 = arith.constant 0 : index
    %c8_66 = arith.constant 8 : index
    %46 = vector.load %arg9[%c0_65, %c8_66] : memref<256x72xf32, #tpu.memory_space<vmem>>, vector<256x8xf32>
    tpu.vector_store %arg9[%c0_65, %c8_66], %45 {strides = array<i32>} : memref<256x72xf32, #tpu.memory_space<vmem>>, vector<256x8xf32>,
    %c0_67 = arith.constant 0 : index
    %c2_68 = arith.constant 2 : index
    %c0_69 = arith.constant 0 : index
    %47 = vector.load %arg8[%c0_67, %c2_68, %c0_69] : memref<18x18x8xf32, #tpu.memory_space<vmem>>, vector<16x16x8xf32>
    %48 = vector.shape_cast %47 : vector<16x16x8xf32> to vector<256x8xf32>
    %c0_70 = arith.constant 0 : index
    %c16_71 = arith.constant 16 : index
    %49 = vector.load %arg9[%c0_70, %c16_71] : memref<256x72xf32, #tpu.memory_space<vmem>>, vector<256x8xf32>
    tpu.vector_store %arg9[%c0_70, %c16_71], %48 {strides = array<i32>} : memref<256x72xf32, #tpu.memory_space<vmem>>, vector<256x8xf32>,
    %c1_72 = arith.constant 1 : index
    %c0_73 = arith.constant 0 : index
    %c0_74 = arith.constant 0 : index
    %50 = vector.load %arg8[%c1_72, %c0_73, %c0_74] : memref<18x18x8xf32, #tpu.memory_space<vmem>>, vector<16x16x8xf32>
    %51 = vector.shape_cast %50 : vector<16x16x8xf32> to vector<256x8xf32>
    %c0_75 = arith.constant 0 : index
    %c24_76 = arith.constant 24 : index
    %52 = vector.load %arg9[%c0_75, %c24_76] : memref<256x72xf32, #tpu.memory_space<vmem>>, vector<256x8xf32>
    tpu.vector_store %arg9[%c0_75, %c24_76], %51 {strides = array<i32>} : memref<256x72xf32, #tpu.memory_space<vmem>>, vector<256x8xf32>,
    %c1_77 = arith.constant 1 : index
    %c1_78 = arith.constant 1 : index
    %c0_79 = arith.constant 0 : index
    %53 = vector.load %arg8[%c1_77, %c1_78, %c0_79] : memref<18x18x8xf32, #tpu.memory_space<vmem>>, vector<16x16x8xf32>
    %54 = vector.shape_cast %53 : vector<16x16x8xf32> to vector<256x8xf32>
    %c0_80 = arith.constant 0 : index
    %c32_81 = arith.constant 32 : index
    %55 = vector.load %arg9[%c0_80, %c32_81] : memref<256x72xf32, #tpu.memory_space<vmem>>, vector<256x8xf32>
    tpu.vector_store %arg9[%c0_80, %c32_81], %54 {strides = array<i32>} : memref<256x72xf32, #tpu.memory_space<vmem>>, vector<256x8xf32>,
    %c1_82 = arith.constant 1 : index
    %c2_83 = arith.constant 2 : index
    %c0_84 = arith.constant 0 : index
    %56 = vector.load %arg8[%c1_82, %c2_83, %c0_84] : memref<18x18x8xf32, #tpu.memory_space<vmem>>, vector<16x16x8xf32>
    %57 = vector.shape_cast %56 : vector<16x16x8xf32> to vector<256x8xf32>
    %c0_85 = arith.constant 0 : index
    %c40 = arith.constant 40 : index
    %58 = vector.load %arg9[%c0_85, %c40] : memref<256x72xf32, #tpu.memory_space<vmem>>, vector<256x8xf32>
    tpu.vector_store %arg9[%c0_85, %c40], %57 {strides = array<i32>} : memref<256x72xf32, #tpu.memory_space<vmem>>, vector<256x8xf32>,
    %c2_86 = arith.constant 2 : index
    %c0_87 = arith.constant 0 : index
    %c0_88 = arith.constant 0 : index
    %59 = vector.load %arg8[%c2_86, %c0_87, %c0_88] : memref<18x18x8xf32, #tpu.memory_space<vmem>>, vector<16x16x8xf32>
    %60 = vector.shape_cast %59 : vector<16x16x8xf32> to vector<256x8xf32>
    %c0_89 = arith.constant 0 : index
    %c48 = arith.constant 48 : index
    %61 = vector.load %arg9[%c0_89, %c48] : memref<256x72xf32, #tpu.memory_space<vmem>>, vector<256x8xf32>
    tpu.vector_store %arg9[%c0_89, %c48], %60 {strides = array<i32>} : memref<256x72xf32, #tpu.memory_space<vmem>>, vector<256x8xf32>,
    %c2_90 = arith.constant 2 : index
    %c1_91 = arith.constant 1 : index
    %c0_92 = arith.constant 0 : index
    %62 = vector.load %arg8[%c2_90, %c1_91, %c0_92] : memref<18x18x8xf32, #tpu.memory_space<vmem>>, vector<16x16x8xf32>
    %63 = vector.shape_cast %62 : vector<16x16x8xf32> to vector<256x8xf32>
    %c0_93 = arith.constant 0 : index
    %c56 = arith.constant 56 : index
    %64 = vector.load %arg9[%c0_93, %c56] : memref<256x72xf32, #tpu.memory_space<vmem>>, vector<256x8xf32>
    tpu.vector_store %arg9[%c0_93, %c56], %63 {strides = array<i32>} : memref<256x72xf32, #tpu.memory_space<vmem>>, vector<256x8xf32>,
    %c2_94 = arith.constant 2 : index
    %c2_95 = arith.constant 2 : index
    %c0_96 = arith.constant 0 : index
    %65 = vector.load %arg8[%c2_94, %c2_95, %c0_96] : memref<18x18x8xf32, #tpu.memory_space<vmem>>, vector<16x16x8xf32>
    %66 = vector.shape_cast %65 : vector<16x16x8xf32> to vector<256x8xf32>
    %c0_97 = arith.constant 0 : index
    %c64 = arith.constant 64 : index
    %67 = vector.load %arg9[%c0_97, %c64] : memref<256x72xf32, #tpu.memory_space<vmem>>, vector<256x8xf32>
    tpu.vector_store %arg9[%c0_97, %c64], %66 {strides = array<i32>} : memref<256x72xf32, #tpu.memory_space<vmem>>, vector<256x8xf32>,
    %c0_98 = arith.constant 0 : index
    %c0_99 = arith.constant 0 : index
    %68 = vector.load %arg9[%c0_98, %c0_99] : memref<256x72xf32, #tpu.memory_space<vmem>>, vector<256x72xf32>
    %c0_100 = arith.constant 0 : index
    %c0_101 = arith.constant 0 : index
    %69 = vector.load %arg3[%c0_100, %c0_101] : memref<72x8xf32, #tpu.memory_space<vmem>>, vector<72x8xf32>
    %cst_102 = arith.constant dense<0.000000e+00> : vector<256x8xf32>
    %70 = tpu.matmul %68, %69, %cst_102 {dimension_numbers = #tpu.dot_dimension_numbers<[1], [0], [0], [1], [0, 0, 1, 1], [], []>} : vector<256x72xf32>, vector<72x8xf32>, vector<256x8xf32> -> vector<256x8xf32>
    %c0_103 = arith.constant 0 : index
    %c0_104 = arith.constant 0 : index
    %c0_105 = arith.constant 0 : index
    %c0_106 = arith.constant 0 : index
    %71 = vector.load %arg1[%c0_103, %c0_104, %c0_105, %c0_106] : memref<1x16x16x4xf32, #tpu.memory_space<vmem>>, vector<1x16x16x4xf32>
    %72 = vector.shape_cast %71 : vector<1x16x16x4xf32> to vector<16x16x4xf32>
    %73 = vector.shape_cast %72 : vector<16x16x4xf32> to vector<256x4xf32>
    %c0_107 = arith.constant 0 : index
    %c0_108 = arith.constant 0 : index
    %74 = vector.load %arg4[%c0_107, %c0_108] : memref<4x8xf32, #tpu.memory_space<vmem>>, vector<4x8xf32>
    %cst_109 = arith.constant dense<0.000000e+00> : vector<256x8xf32>
    %75 = tpu.matmul %73, %74, %cst_109 {dimension_numbers = #tpu.dot_dimension_numbers<[1], [0], [0], [1], [0, 0, 1, 1], [], []>} : vector<256x4xf32>, vector<4x8xf32>, vector<256x8xf32> -> vector<256x8xf32>
    %76 = arith.addf %70, %75 : vector<256x8xf32>
    %cst_110 = arith.constant 0.000000e+00 : f32
    %77 = vector.broadcast %cst_110 : f32 to vector<256x8xf32>
    %78 = arith.maximumf %76, %77 : vector<256x8xf32>
    %79 = vector.shape_cast %78 : vector<256x8xf32> to vector<1x16x16x8xf32>
    %c0_111 = arith.constant 0 : index
    %c0_112 = arith.constant 0 : index
    %c0_113 = arith.constant 0 : index
    %c0_114 = arith.constant 0 : index
    %80 = vector.load %arg5[%c0_111, %c0_112, %c0_113, %c0_114] : memref<1x16x16x8xf32, #tpu.memory_space<vmem>>, vector<1x16x16x8xf32>
    tpu.vector_store %arg5[%c0_111, %c0_112, %c0_113, %c0_114], %79 {strides = array<i32>} : memref<1x16x16x8xf32, #tpu.memory_space<vmem>>, vector<1x16x16x8xf32>,
    return
  }
  func.func @transform_0(%arg0: i32) -> (i32, i32, i32, i32) {
    %c0_i32 = arith.constant 0 : i32
    %c0_i32_0 = arith.constant 0 : i32
    %c0_i32_1 = arith.constant 0 : i32
    %c0_i32_2 = arith.constant 0 : i32
    return %arg0, %c0_i32, %c0_i32_0, %c0_i32_1 : i32, i32, i32, i32
  }
  func.func @transform_1(%arg0: i32) -> (i32, i32) {
    %c0_i32 = arith.constant 0 : i32
    %c0_i32_0 = arith.constant 0 : i32
    %c0_i32_1 = arith.constant 0 : i32
    return %c0_i32, %c0_i32_0 : i32, i32
  }
  func.func @transform_2(%arg0: i32) -> (i32, i32) {
    %c0_i32 = arith.constant 0 : i32
    %c0_i32_0 = arith.constant 0 : i32
    %c0_i32_1 = arith.constant 0 : i32
    return %c0_i32, %c0_i32_0 : i32, i32
  }
  func.func @transform_3(%arg0: i32) -> (i32, i32) {
    %c0_i32 = arith.constant 0 : i32
    %c0_i32_0 = arith.constant 0 : i32
    %c0_i32_1 = arith.constant 0 : i32
    return %c0_i32, %c0_i32_0 : i32, i32
  }
  func.func @transform_4(%arg0: i32) -> (i32, i32, i32, i32) {
    %c0_i32 = arith.constant 0 : i32
    %c0_i32_0 = arith.constant 0 : i32
    %c0_i32_1 = arith.constant 0 : i32
    %c0_i32_2 = arith.constant 0 : i32
    return %arg0, %c0_i32, %c0_i32_0, %c0_i32_1 : i32, i32, i32, i32
  }
}

</mosaic_0001>

<llo_original>
// kernel: tpu_custom_call.1
$region0: #{tpu_custom_call.1}
  #allocation0 [shape = 'u32[]', space=smem, size = 0x4, offset = 0x4, fixed_abs, tag = 'smem constant byte address 0x4 - core index']
  #allocation1 [shape = 'u32[144,128]{1,0:T(1,128)}', space=vmem, size = 0x12000, scoped, tag = 'internal scratch']
  #allocation2 [shape = 'f32[18,18,4]{2,1,0:T(8,128)}', space=vmem, size = 0x36000, scoped, tag = 'scratch operand']
  #allocation3 [shape = 'f32[256,36]{1,0:T(8,128)}', space=vmem, size = 0x20000, scoped, tag = 'scratch operand']
  #allocation4 [shape = 'f32[18,18,8]{2,1,0:T(8,128)}', space=vmem, size = 0x36000, scoped, tag = 'scratch operand']
  #allocation5 [shape = 'f32[256,72]{1,0:T(8,128)}', space=vmem, size = 0x20000, scoped, tag = 'scratch operand']
  %s0 = inlined_call_operand.vmem [shape: f32[2,16,16,4], index: 0, kind: input, shape index: {}]
  %s1 = inlined_call_operand.vmem [shape: f32[36,8], index: 1, kind: input, shape index: {}]
  %s2 = inlined_call_operand.vmem [shape: f32[72,8], index: 2, kind: input, shape index: {}]
  %s3 = inlined_call_operand.vmem [shape: f32[4,8], index: 3, kind: input, shape index: {}]
  %s4 = inlined_call_operand.vmem [shape: f32[2,16,16,8], index: 4, kind: output, shape index: {}]
  %s5 = sld [smem:[#allocation0]]
  $region49: #{tpu_custom_call.1} parent=0
    _
  %s7 = ssub.s32 1, %s5
  %s8 = scalar_select 0, %s7, %s5
  loop: start=0, step=1, limit=4
  $region2: #{tpu_custom_call.1} parent=0 // loop_pre_header
    _
  $region3: #{tpu_custom_call.1} parent=0 // loop_header
    %s10 = sphi 0, %s14
    %p11 = scmp.ge.s32.totalorder %s10, 4
    %s20 = sphi 0, %s22
    %s23 = sphi 0, %s20
    %s24 = sphi 0, %s23
    %s40 = sphi 0, %s24
    %s44 = sphi 0, %s44
    %s46 = sphi 0, %s44
    %s47 = sphi 0, %s46
    %s61 = sphi 0, %s47
    %s65 = sphi 0, %s65
    %s67 = sphi 0, %s65
    %s68 = sphi 0, %s67
    %s82 = sphi 0, %s68
    %s86 = sphi 0, %s86
    %s88 = sphi 0, %s86
    %s89 = sphi 0, %s88
    %s103 = sphi 0, %s89
    %s109 = sphi 0, %s111
    %s112 = sphi 0, %s109
    %s113 = sphi 0, %s112
    %s129 = sphi 0, %s113
  $region4: #{tpu_custom_call.1} parent=0 // loop_header_branch
    %13 = sbr.rel (%p11) target = $region8
  $region5: #{tpu_custom_call.1} parent=0 // loop_body
    %s15 = ssub.s32 %s10, 1
    %s16 = ssub.s32 %s10, 2
    %s17 = sadd.s32 %s10, 1
    %s18 = ssub.s32 %s10, %s17
    %p19 = scmp.eq.s32.totalorder %s18, 0
    %s21 = sadd.s32 %s20, 1
    %s22 = scalar_select %p19, %s20, %s21
    %p25 = pneg %p19
    %p26 = scmp.eq.s32.totalorder %s10, 1
    %p27 = por %p25, %p26
    %p28 = scmp.ne.s32.totalorder %s20, %s23
    %p29 = scmp.eq.s32.totalorder %s10, 0
    %p30 = por %p28, %p29
    %p31 = scmp.ne.s32.totalorder %s20, %s23
    %p32 = scmp.eq.s32.totalorder %s15, 1
    %p33 = por %p31, %p32
    %p34 = scmp.ne.s32.totalorder %s23, %s24
    %p35 = scmp.eq.s32.totalorder %s15, 0
    %p36 = por %p34, %p35
    %p37 = scmp.ne.s32.totalorder %s23, %s24
    %p38 = scmp.eq.s32.totalorder %s16, 1
    %p39 = por %p37, %p38
    %p41 = scmp.ne.s32.totalorder %s24, %s40
    %p42 = scmp.eq.s32.totalorder %s16, 0
    %p43 = por %p41, %p42
    %s45 = sadd.s32 %s44, 1
    %p48 = scmp.eq.s32.totalorder %s10, 1
    %p49 = scmp.ne.s32.totalorder %s44, %s46
    %p50 = scmp.eq.s32.totalorder %s10, 0
    %p51 = por %p49, %p50
    %p52 = scmp.ne.s32.totalorder %s44, %s46
    %p53 = scmp.eq.s32.totalorder %s15, 1
    %p54 = por %p52, %p53
    %p55 = scmp.ne.s32.totalorder %s46, %s47
    %p56 = scmp.eq.s32.totalorder %s15, 0
    %p57 = por %p55, %p56
    %p58 = scmp.ne.s32.totalorder %s46, %s47
    %p59 = scmp.eq.s32.totalorder %s16, 1
    %p60 = por %p58, %p59
    %p62 = scmp.ne.s32.totalorder %s47, %s61
    %p63 = scmp.eq.s32.totalorder %s16, 0
    %p64 = por %p62, %p63
    %s66 = sadd.s32 %s65, 1
    %p69 = scmp.eq.s32.totalorder %s10, 1
    %p70 = scmp.ne.s32.totalorder %s65, %s67
    %p71 = scmp.eq.s32.totalorder %s10, 0
    %p72 = por %p70, %p71
    %p73 = scmp.ne.s32.totalorder %s65, %s67
    %p74 = scmp.eq.s32.totalorder %s15, 1
    %p75 = por %p73, %p74
    %p76 = scmp.ne.s32.totalorder %s67, %s68
    %p77 = scmp.eq.s32.totalorder %s15, 0
    %p78 = por %p76, %p77
    %p79 = scmp.ne.s32.totalorder %s67, %s68
    %p80 = scmp.eq.s32.totalorder %s16, 1
    %p81 = por %p79, %p80
    %p83 = scmp.ne.s32.totalorder %s68, %s82
    %p84 = scmp.eq.s32.totalorder %s16, 0
    %p85 = por %p83, %p84
    %s87 = sadd.s32 %s86, 1
    %p90 = scmp.eq.s32.totalorder %s10, 1
    %p91 = scmp.ne.s32.totalorder %s86, %s88
    %p92 = scmp.eq.s32.totalorder %s10, 0
    %p93 = por %p91, %p92
    %p94 = scmp.ne.s32.totalorder %s86, %s88
    %p95 = scmp.eq.s32.totalorder %s15, 1
    %p96 = por %p94, %p95
    %p97 = scmp.ne.s32.totalorder %s88, %s89
    %p98 = scmp.eq.s32.totalorder %s15, 0
    %p99 = por %p97, %p98
    %p100 = scmp.ne.s32.totalorder %s88, %s89
    %p101 = scmp.eq.s32.totalorder %s16, 1
    %p102 = por %p100, %p101
    %p104 = scmp.ne.s32.totalorder %s89, %s103
    %p105 = scmp.eq.s32.totalorder %s16, 0
    %p106 = por %p104, %p105
    %s107 = ssub.s32 %s10, %s17
    %p108 = scmp.eq.s32.totalorder %s107, 0
    %s110 = sadd.s32 %s109, 1
    %s111 = scalar_select %p108, %s109, %s110
    %p114 = pneg %p108
    %p115 = scmp.eq.s32.totalorder %s10, 1
    %p116 = por %p114, %p115
    %p117 = scmp.ne.s32.totalorder %s109, %s112
    %p118 = scmp.eq.s32.totalorder %s10, 0
    %p119 = por %p117, %p118
    %p120 = scmp.ne.s32.totalorder %s109, %s112
    %p121 = scmp.eq.s32.totalorder %s15, 1
    %p122 = por %p120, %p121
    %p123 = scmp.ne.s32.totalorder %s112, %s113
    %p124 = scmp.eq.s32.totalorder %s15, 0
    %p125 = por %p123, %p124
    %p126 = scmp.ne.s32.totalorder %s112, %s113
    %p127 = scmp.eq.s32.totalorder %s16, 1
    %p128 = por %p126, %p127
    %p130 = scmp.ne.s32.totalorder %s113, %s129
    %p131 = scmp.eq.s32.totalorder %s16, 0
    %p132 = por %p130, %p131
    %p133 = scmp.le.s32.totalorder 1, %s10
    %p134 = scmp.lt.s32.totalorder %s10, 3
    %p135 = pnand %p133, %p134
    %p136 = pneg %p135
    // Predicated region
    $region9: #{tpu_custom_call.1} parent=5 // pred_check
      _
    $region10: #{tpu_custom_call.1} parent=5 // pred_check_branch
      %138 = sbr.rel (%p135) target = $region12
    $region11: #{tpu_custom_call.1} parent=5 // pred_region
      %s139 = ssub.s32 %s10, 1
      // Predicated region
      $region13: #{tpu_custom_call.1} parent=11 // pred_check
        %p140 = pneg %p57
      $region14: #{tpu_custom_call.1} parent=11 // pred_check_branch
        %142 = sbr.rel (%p140) target = $region16
      $region15: #{tpu_custom_call.1} parent=11 // pred_region
        _
      $region16: #{tpu_custom_call.1} parent=11 // pred_fallthru
        _
      // Predicated region
      $region17: #{tpu_custom_call.1} parent=11 // pred_check
        %p143 = pneg %p78
      $region18: #{tpu_custom_call.1} parent=11 // pred_check_branch
        %145 = sbr.rel (%p143) target = $region20
      $region19: #{tpu_custom_call.1} parent=11 // pred_region
        _
      $region20: #{tpu_custom_call.1} parent=11 // pred_fallthru
        _
      // Predicated region
      $region21: #{tpu_custom_call.1} parent=11 // pred_check
        %p146 = pneg %p99
      $region22: #{tpu_custom_call.1} parent=11 // pred_check_branch
        %148 = sbr.rel (%p146) target = $region24
      $region23: #{tpu_custom_call.1} parent=11 // pred_region
        _
      $region24: #{tpu_custom_call.1} parent=11 // pred_fallthru
        _
    $region12: #{tpu_custom_call.1} parent=5 // pred_fallthru
      _
    %p149 = scmp.lt.s32.totalorder %s10, 2
    // Predicated region
    $region25: #{tpu_custom_call.1} parent=5 // pred_check
      %p150 = pneg %p149
    $region26: #{tpu_custom_call.1} parent=5 // pred_check_branch
      %152 = sbr.rel (%p150) target = $region28
    $region27: #{tpu_custom_call.1} parent=5 // pred_region
      // Predicated region
      $region29: #{tpu_custom_call.1} parent=27 // pred_check
        %p153 = pneg %p30
      $region30: #{tpu_custom_call.1} parent=27 // pred_check_branch
        %155 = sbr.rel (%p153) target = $region32
      $region31: #{tpu_custom_call.1} parent=27 // pred_region
        %p156 = scmp.lt.s32.totalorder %s10, 1
        %s157 = scalar_select %p156, %s10, 1
        %s158 = smul.addr %s157, 32
        %s159 = smul.addr %s158, 8
        %s160 = scalar_lea.vmem %s0, %s159
      $region32: #{tpu_custom_call.1} parent=27 // pred_fallthru
        _
    $region28: #{tpu_custom_call.1} parent=5 // pred_fallthru
      _
    %p161 = scmp.le.s32.totalorder 1, %s10
    %p162 = scmp.lt.s32.totalorder %s10, 3
    %p163 = pnand %p161, %p162
    %p164 = pneg %p163
    // Predicated region
    $region33: #{tpu_custom_call.1} parent=5 // pred_check
      _
    $region34: #{tpu_custom_call.1} parent=5 // pred_check_branch
      %166 = sbr.rel (%p163) target = $region36
    $region35: #{tpu_custom_call.1} parent=5 // pred_region
      %s167 = ssub.s32 %s10, 1
      %p168 = scmp.lt.s32.totalorder %s15, 1
      %s169 = scalar_select %p168, %s15, 1
      %s170 = smul.addr %s169, 32
      %s171 = smul.addr %s170, 8
      %s172 = scalar_lea.vmem %s0, %s171
      %p173 = pneg %p36
      %p174 = pneg %p33
      %p175 = pneg %p57
      %p176 = pneg %p54
      %p177 = pneg %p78
      %p178 = pneg %p75
      %p179 = pneg %p99
      %p180 = pneg %p96
      %p181 = pneg %p125
      %p182 = pneg %p122
      %p183 = scmp.lt.s32.totalorder %s15, 1
      %s184 = scalar_select %p183, %s15, 1
      %s185 = smul.addr %s184, 32
      %s186 = smul.addr %s185, 8
      %s187 = scalar_lea.vmem %s4, %s186
      %p188 = scmp.lt.s32.totalorder %s15, 1
      %s189 = scalar_select %p188, %s15, 1
      %s190 = smul.addr %s189, 32
      %s191 = smul.addr %s190, 8
      %s192 = scalar_lea.vmem %s0, %s191
      %p193 = scmp.lt.s32.totalorder %s15, 1
      %s194 = scalar_select %p193, %s15, 1
      %s195 = smul.addr %s194, 32
      %s196 = smul.addr %s195, 8
      %s197 = scalar_lea.vmem %s4, %s196
      %vm198 = vcmask 31744
      %199 = vst.msk [vmem:[#allocation2] sm:$0xff] %vm198, 0.0
      %200 = vst.msk [vmem:[#allocation2 + $0x8] sm:$0xff] %vm198, 0.0
      %vm201 = vcmask 25600
      %202 = vst.msk [vmem:[#allocation2 + $0x10] sm:$0x3] %vm201, 0.0
      %203 = vst.msk [vmem:[#allocation2 + $0x18] sm:$0xff] %vm198, 0.0
      %204 = vst.msk [vmem:[#allocation2 + $0x20] sm:$0xff] %vm198, 0.0
      %205 = vst.msk [vmem:[#allocation2 + $0x28] sm:$0x3] %vm201, 0.0
      %206 = vst.msk [vmem:[#allocation2 + $0x30] sm:$0xff] %vm198, 0.0
      %207 = vst.msk [vmem:[#allocation2 + $0x38] sm:$0xff] %vm198, 0.0
      %208 = vst.msk [vmem:[#allocation2 + $0x40] sm:$0x3] %vm201, 0.0
      %209 = vst.msk [vmem:[#allocation2 + $0x48] sm:$0xff] %vm198, 0.0
      %210 = vst.msk [vmem:[#allocation2 + $0x50] sm:$0xff] %vm198, 0.0
      %211 = vst.msk [vmem:[#allocation2 + $0x58] sm:$0x3] %vm201, 0.0
      %212 = vst.msk [vmem:[#allocation2 + $0x60] sm:$0xff] %vm198, 0.0
      %213 = vst.msk [vmem:[#allocation2 + $0x68] sm:$0xff] %vm198, 0.0
      %214 = vst.msk [vmem:[#allocation2 + $0x70] sm:$0x3] %vm201, 0.0
      %215 = vst.msk [vmem:[#allocation2 + $0x78] sm:$0xff] %vm198, 0.0
      %216 = vst.msk [vmem:[#allocation2 + $0x80] sm:$0xff] %vm198, 0.0
      %217 = vst.msk [vmem:[#allocation2 + $0x88] sm:$0x3] %vm201, 0.0
      %218 = vst.msk [vmem:[#allocation2 + $0x90] sm:$0xff] %vm198, 0.0
      %219 = vst.msk [vmem:[#allocation2 + $0x98] sm:$0xff] %vm198, 0.0
      %220 = vst.msk [vmem:[#allocation2 + $0xa0] sm:$0x3] %vm201, 0.0
      %221 = vst.msk [vmem:[#allocation2 + $0xa8] sm:$0xff] %vm198, 0.0
      %222 = vst.msk [vmem:[#allocation2 + $0xb0] sm:$0xff] %vm198, 0.0
      %223 = vst.msk [vmem:[#allocation2 + $0xb8] sm:$0x3] %vm201, 0.0
      %224 = vst.msk [vmem:[#allocation2 + $0xc0] sm:$0xff] %vm198, 0.0
      %225 = vst.msk [vmem:[#allocation2 + $0xc8] sm:$0xff] %vm198, 0.0
      %226 = vst.msk [vmem:[#allocation2 + $0xd0] sm:$0x3] %vm201, 0.0
      %227 = vst.msk [vmem:[#allocation2 + $0xd8] sm:$0xff] %vm198, 0.0
      %228 = vst.msk [vmem:[#allocation2 + $0xe0] sm:$0xff] %vm198, 0.0
      %229 = vst.msk [vmem:[#allocation2 + $0xe8] sm:$0x3] %vm201, 0.0
      %230 = vst.msk [vmem:[#allocation2 + $0xf0] sm:$0xff] %vm198, 0.0
      %231 = vst.msk [vmem:[#allocation2 + $0xf8] sm:$0xff] %vm198, 0.0
      %232 = vst.msk [vmem:[#allocation2 + $0x100] sm:$0x3] %vm201, 0.0
      %233 = vst.msk [vmem:[#allocation2 + $0x108] sm:$0xff] %vm198, 0.0
      %234 = vst.msk [vmem:[#allocation2 + $0x110] sm:$0xff] %vm198, 0.0
      %235 = vst.msk [vmem:[#allocation2 + $0x118] sm:$0x3] %vm201, 0.0
      %236 = vst.msk [vmem:[#allocation2 + $0x120] sm:$0xff] %vm198, 0.0
      %237 = vst.msk [vmem:[#allocation2 + $0x128] sm:$0xff] %vm198, 0.0
      %238 = vst.msk [vmem:[#allocation2 + $0x130] sm:$0x3] %vm201, 0.0
      %239 = vst.msk [vmem:[#allocation2 + $0x138] sm:$0xff] %vm198, 0.0
      %240 = vst.msk [vmem:[#allocation2 + $0x140] sm:$0xff] %vm198, 0.0
      %241 = vst.msk [vmem:[#allocation2 + $0x148] sm:$0x3] %vm201, 0.0
      %242 = vst.msk [vmem:[#allocation2 + $0x150] sm:$0xff] %vm198, 0.0
      %243 = vst.msk [vmem:[#allocation2 + $0x158] sm:$0xff] %vm198, 0.0
      %244 = vst.msk [vmem:[#allocation2 + $0x160] sm:$0x3] %vm201, 0.0
      %245 = vst.msk [vmem:[#allocation2 + $0x168] sm:$0xff] %vm198, 0.0
      %246 = vst.msk [vmem:[#allocation2 + $0x170] sm:$0xff] %vm198, 0.0
      %247 = vst.msk [vmem:[#allocation2 + $0x178] sm:$0x3] %vm201, 0.0
      %248 = vst.msk [vmem:[#allocation2 + $0x180] sm:$0xff] %vm198, 0.0
      %249 = vst.msk [vmem:[#allocation2 + $0x188] sm:$0xff] %vm198, 0.0
      %250 = vst.msk [vmem:[#allocation2 + $0x190] sm:$0x3] %vm201, 0.0
      %251 = vst.msk [vmem:[#allocation2 + $0x198] sm:$0xff] %vm198, 0.0
      %252 = vst.msk [vmem:[#allocation2 + $0x1a0] sm:$0xff] %vm198, 0.0
      %253 = vst.msk [vmem:[#allocation2 + $0x1a8] sm:$0x3] %vm201, 0.0
      %v254 = vld [vmem:[%s192] sm:$0xff]
      %v255 = vld [vmem:[%s192 + $0x8] sm:$0xff]
      %v256 = vld [vmem:[%s192 + $0x10] sm:$0xff]
      %v257 = vld [vmem:[%s192 + $0x18] sm:$0xff]
      %v258 = vld [vmem:[%s192 + $0x20] sm:$0xff]
      %v259 = vld [vmem:[%s192 + $0x28] sm:$0xff]
      %v260 = vld [vmem:[%s192 + $0x30] sm:$0xff]
      %v261 = vld [vmem:[%s192 + $0x38] sm:$0xff]
      %v262 = vld [vmem:[%s192 + $0x40] sm:$0xff]
      %v263 = vld [vmem:[%s192 + $0x48] sm:$0xff]
      %v264 = vld [vmem:[%s192 + $0x50] sm:$0xff]
      %v265 = vld [vmem:[%s192 + $0x58] sm:$0xff]
      %v266 = vld [vmem:[%s192 + $0x60] sm:$0xff]
      %v267 = vld [vmem:[%s192 + $0x68] sm:$0xff]
      %v268 = vld [vmem:[%s192 + $0x70] sm:$0xff]
      %v269 = vld [vmem:[%s192 + $0x78] sm:$0xff]
      %v270 = vld [vmem:[%s192 + $0x80] sm:$0xff]
      %v271 = vld [vmem:[%s192 + $0x88] sm:$0xff]
      %v272 = vld [vmem:[%s192 + $0x90] sm:$0xff]
      %v273 = vld [vmem:[%s192 + $0x98] sm:$0xff]
      %v274 = vld [vmem:[%s192 + $0xa0] sm:$0xff]
      %v275 = vld [vmem:[%s192 + $0xa8] sm:$0xff]
      %v276 = vld [vmem:[%s192 + $0xb0] sm:$0xff]
      %v277 = vld [vmem:[%s192 + $0xb8] sm:$0xff]
      %v278 = vld [vmem:[%s192 + $0xc0] sm:$0xff]
      %v279 = vld [vmem:[%s192 + $0xc8] sm:$0xff]
      %v280 = vld [vmem:[%s192 + $0xd0] sm:$0xff]
      %v281 = vld [vmem:[%s192 + $0xd8] sm:$0xff]
      %v282 = vld [vmem:[%s192 + $0xe0] sm:$0xff]
      %v283 = vld [vmem:[%s192 + $0xe8] sm:$0xff]
      %v284 = vld [vmem:[%s192 + $0xf0] sm:$0xff]
      %v285 = vld [vmem:[%s192 + $0xf8] sm:$0xff]
      %s286 = scalar_lea.vmem [#allocation2], 24
      %287 = vst.msk [vmem:[%s286 + $0x1] sm:$0xff] %vm198, %v254
      %288 = vst.msk [vmem:[%s286 + $0x9] sm:$0xff] %vm198, %v255
      %289 = vst.msk [vmem:[%s286 + $0x19] sm:$0xff] %vm198, %v256
      %290 = vst.msk [vmem:[%s286 + $0x21] sm:$0xff] %vm198, %v257
      %291 = vst.msk [vmem:[%s286 + $0x31] sm:$0xff] %vm198, %v258
      %292 = vst.msk [vmem:[%s286 + $0x39] sm:$0xff] %vm198, %v259
      %293 = vst.msk [vmem:[%s286 + $0x49] sm:$0xff] %vm198, %v260
      %294 = vst.msk [vmem:[%s286 + $0x51] sm:$0xff] %vm198, %v261
      %295 = vst.msk [vmem:[%s286 + $0x61] sm:$0xff] %vm198, %v262
      %296 = vst.msk [vmem:[%s286 + $0x69] sm:$0xff] %vm198, %v263
      %297 = vst.msk [vmem:[%s286 + $0x79] sm:$0xff] %vm198, %v264
      %298 = vst.msk [vmem:[%s286 + $0x81] sm:$0xff] %vm198, %v265
      %299 = vst.msk [vmem:[%s286 + $0x91] sm:$0xff] %vm198, %v266
      %300 = vst.msk [vmem:[%s286 + $0x99] sm:$0xff] %vm198, %v267
      %301 = vst.msk [vmem:[%s286 + $0xa9] sm:$0xff] %vm198, %v268
      %302 = vst.msk [vmem:[%s286 + $0xb1] sm:$0xff] %vm198, %v269
      %303 = vst.msk [vmem:[%s286 + $0xc1] sm:$0xff] %vm198, %v270
      %304 = vst.msk [vmem:[%s286 + $0xc9] sm:$0xff] %vm198, %v271
      %305 = vst.msk [vmem:[%s286 + $0xd9] sm:$0xff] %vm198, %v272
      %306 = vst.msk [vmem:[%s286 + $0xe1] sm:$0xff] %vm198, %v273
      %307 = vst.msk [vmem:[%s286 + $0xf1] sm:$0xff] %vm198, %v274
      %308 = vst.msk [vmem:[%s286 + $0xf9] sm:$0xff] %vm198, %v275
      %309 = vst.msk [vmem:[%s286 + $0x109] sm:$0xff] %vm198, %v276
      %310 = vst.msk [vmem:[%s286 + $0x111] sm:$0xff] %vm198, %v277
      %311 = vst.msk [vmem:[%s286 + $0x121] sm:$0xff] %vm198, %v278
      %312 = vst.msk [vmem:[%s286 + $0x129] sm:$0xff] %vm198, %v279
      %313 = vst.msk [vmem:[%s286 + $0x139] sm:$0xff] %vm198, %v280
      %314 = vst.msk [vmem:[%s286 + $0x141] sm:$0xff] %vm198, %v281
      %315 = vst.msk [vmem:[%s286 + $0x151] sm:$0xff] %vm198, %v282
      %316 = vst.msk [vmem:[%s286 + $0x159] sm:$0xff] %vm198, %v283
      %317 = vst.msk [vmem:[%s286 + $0x169] sm:$0xff] %vm198, %v284
      %318 = vst.msk [vmem:[%s286 + $0x171] sm:$0xff] %vm198, %v285
      %v319 = vld [vmem:[#allocation2] sm:$0xff]
      %v320 = vld [vmem:[#allocation2 + $0x8] sm:$0xff]
      %v321 = vld [vmem:[#allocation2 + $0x18] sm:$0xff]
      %v322 = vld [vmem:[#allocation2 + $0x20] sm:$0xff]
      %v323 = vld [vmem:[#allocation2 + $0x30] sm:$0xff]
      %v324 = vld [vmem:[#allocation2 + $0x38] sm:$0xff]
      %v325 = vld [vmem:[#allocation2 + $0x48] sm:$0xff]
      %v326 = vld [vmem:[#allocation2 + $0x50] sm:$0xff]
      %v327 = vld [vmem:[#allocation2 + $0x60] sm:$0xff]
      %v328 = vld [vmem:[#allocation2 + $0x68] sm:$0xff]
      %v329 = vld [vmem:[#allocation2 + $0x78] sm:$0xff]
      %v330 = vld [vmem:[#allocation2 + $0x80] sm:$0xff]
      %v331 = vld [vmem:[#allocation2 + $0x90] sm:$0xff]
      %v332 = vld [vmem:[#allocation2 + $0x98] sm:$0xff]
      %v333 = vld [vmem:[#allocation2 + $0xa8] sm:$0xff]
      %v334 = vld [vmem:[#allocation2 + $0xb0] sm:$0xff]
      %v335 = vld [vmem:[#allocation2 + $0xc0] sm:$0xff]
      %v336 = vld [vmem:[#allocation2 + $0xc8] sm:$0xff]
      %v337 = vld [vmem:[#allocation2 + $0xd8] sm:$0xff]
      %v338 = vld [vmem:[#allocation2 + $0xe0] sm:$0xff]
      %v339 = vld [vmem:[#allocation2 + $0xf0] sm:$0xff]
      %v340 = vld [vmem:[#allocation2 + $0xf8] sm:$0xff]
      %v341 = vld [vmem:[#allocation2 + $0x108] sm:$0xff]
      %v342 = vld [vmem:[#allocation2 + $0x110] sm:$0xff]
      %v343 = vld [vmem:[#allocation2 + $0x120] sm:$0xff]
      %v344 = vld [vmem:[#allocation2 + $0x128] sm:$0xff]
      %v345 = vld [vmem:[#allocation2 + $0x138] sm:$0xff]
      %v346 = vld [vmem:[#allocation2 + $0x140] sm:$0xff]
      %v347 = vld [vmem:[#allocation2 + $0x150] sm:$0xff]
      %v348 = vld [vmem:[#allocation2 + $0x158] sm:$0xff]
      %v349 = vld [vmem:[#allocation2 + $0x168] sm:$0xff]
      %v350 = vld [vmem:[#allocation2 + $0x170] sm:$0xff]
      %351 = vst.msk [vmem:[#allocation3] sm:$0xff] %vm198, %v319
      %352 = vst.msk [vmem:[#allocation3 + $0x8] sm:$0xff] %vm198, %v320
      %353 = vst.msk [vmem:[#allocation3 + $0x10] sm:$0xff] %vm198, %v321
      %354 = vst.msk [vmem:[#allocation3 + $0x18] sm:$0xff] %vm198, %v322
      %355 = vst.msk [vmem:[#allocation3 + $0x20] sm:$0xff] %vm198, %v323
      %356 = vst.msk [vmem:[#allocation3 + $0x28] sm:$0xff] %vm198, %v324
      %357 = vst.msk [vmem:[#allocation3 + $0x30] sm:$0xff] %vm198, %v325
      %358 = vst.msk [vmem:[#allocation3 + $0x38] sm:$0xff] %vm198, %v326
      %359 = vst.msk [vmem:[#allocation3 + $0x40] sm:$0xff] %vm198, %v327
      %360 = vst.msk [vmem:[#allocation3 + $0x48] sm:$0xff] %vm198, %v328
      %361 = vst.msk [vmem:[#allocation3 + $0x50] sm:$0xff] %vm198, %v329
      %362 = vst.msk [vmem:[#allocation3 + $0x58] sm:$0xff] %vm198, %v330
      %363 = vst.msk [vmem:[#allocation3 + $0x60] sm:$0xff] %vm198, %v331
      %364 = vst.msk [vmem:[#allocation3 + $0x68] sm:$0xff] %vm198, %v332
      %365 = vst.msk [vmem:[#allocation3 + $0x70] sm:$0xff] %vm198, %v333
      %366 = vst.msk [vmem:[#allocation3 + $0x78] sm:$0xff] %vm198, %v334
      %367 = vst.msk [vmem:[#allocation3 + $0x80] sm:$0xff] %vm198, %v335
      %368 = vst.msk [vmem:[#allocation3 + $0x88] sm:$0xff] %vm198, %v336
      %369 = vst.msk [vmem:[#allocation3 + $0x90] sm:$0xff] %vm198, %v337
      %370 = vst.msk [vmem:[#allocation3 + $0x98] sm:$0xff] %vm198, %v338
      %371 = vst.msk [vmem:[#allocation3 + $0xa0] sm:$0xff] %vm198, %v339
      %372 = vst.msk [vmem:[#allocation3 + $0xa8] sm:$0xff] %vm198, %v340
      %373 = vst.msk [vmem:[#allocation3 + $0xb0] sm:$0xff] %vm198, %v341
      %374 = vst.msk [vmem:[#allocation3 + $0xb8] sm:$0xff] %vm198, %v342
      %375 = vst.msk [vmem:[#allocation3 + $0xc0] sm:$0xff] %vm198, %v343
      %376 = vst.msk [vmem:[#allocation3 + $0xc8] sm:$0xff] %vm198, %v344
      %377 = vst.msk [vmem:[#allocation3 + $0xd0] sm:$0xff] %vm198, %v345
      %378 = vst.msk [vmem:[#allocation3 + $0xd8] sm:$0xff] %vm198, %v346
      %379 = vst.msk [vmem:[#allocation3 + $0xe0] sm:$0xff] %vm198, %v347
      %380 = vst.msk [vmem:[#allocation3 + $0xe8] sm:$0xff] %vm198, %v348
      %381 = vst.msk [vmem:[#allocation3 + $0xf0] sm:$0xff] %vm198, %v349
      %382 = vst.msk [vmem:[#allocation3 + $0xf8] sm:$0xff] %vm198, %v350
      %v383 = vld [vmem:[#allocation2 + $0x1] sm:$0xff]
      %v384 = vld [vmem:[#allocation2 + $0x9] sm:$0xff]
      %v385 = vld [vmem:[#allocation2 + $0x19] sm:$0xff]
      %v386 = vld [vmem:[#allocation2 + $0x21] sm:$0xff]
      %v387 = vld [vmem:[#allocation2 + $0x31] sm:$0xff]
      %v388 = vld [vmem:[#allocation2 + $0x39] sm:$0xff]
      %v389 = vld [vmem:[#allocation2 + $0x49] sm:$0xff]
      %v390 = vld [vmem:[#allocation2 + $0x51] sm:$0xff]
      %v391 = vld [vmem:[#allocation2 + $0x61] sm:$0xff]
      %v392 = vld [vmem:[#allocation2 + $0x69] sm:$0xff]
      %v393 = vld [vmem:[#allocation2 + $0x79] sm:$0xff]
      %v394 = vld [vmem:[#allocation2 + $0x81] sm:$0xff]
      %v395 = vld [vmem:[#allocation2 + $0x91] sm:$0xff]
      %v396 = vld [vmem:[#allocation2 + $0x99] sm:$0xff]
      %v397 = vld [vmem:[#allocation2 + $0xa9] sm:$0xff]
      %v398 = vld [vmem:[#allocation2 + $0xb1] sm:$0xff]
      %v399 = vld [vmem:[#allocation2 + $0xc1] sm:$0xff]
      %v400 = vld [vmem:[#allocation2 + $0xc9] sm:$0xff]
      %v401 = vld [vmem:[#allocation2 + $0xd9] sm:$0xff]
      %v402 = vld [vmem:[#allocation2 + $0xe1] sm:$0xff]
      %v403 = vld [vmem:[#allocation2 + $0xf1] sm:$0xff]
      %v404 = vld [vmem:[#allocation2 + $0xf9] sm:$0xff]
      %v405 = vld [vmem:[#allocation2 + $0x109] sm:$0xff]
      %v406 = vld [vmem:[#allocation2 + $0x111] sm:$0xff]
      %v407 = vld [vmem:[#allocation2 + $0x121] sm:$0xff]
      %v408 = vld [vmem:[#allocation2 + $0x129] sm:$0xff]
      %v409 = vld [vmem:[#allocation2 + $0x139] sm:$0xff]
      %v410 = vld [vmem:[#allocation2 + $0x141] sm:$0xff]
      %v411 = vld [vmem:[#allocation2 + $0x151] sm:$0xff]
      %v412 = vld [vmem:[#allocation2 + $0x159] sm:$0xff]
      %v413 = vld [vmem:[#allocation2 + $0x169] sm:$0xff]
      %v414 = vld [vmem:[#allocation2 + $0x171] sm:$0xff]
      %447 = vrot.lane.b32.xlu0 %v383, 4
      %v448 = vpop.permute.xlu0 %447
      %449 = vrot.lane.b32.xlu0 %v384, 4
      %v450 = vpop.permute.xlu0 %449
      %451 = vrot.lane.b32.xlu0 %v385, 4
      %v452 = vpop.permute.xlu0 %451
      %453 = vrot.lane.b32.xlu0 %v386, 4
      %v454 = vpop.permute.xlu0 %453
      %455 = vrot.lane.b32.xlu0 %v387, 4
      %v456 = vpop.permute.xlu0 %455
      %457 = vrot.lane.b32.xlu0 %v388, 4
      %v458 = vpop.permute.xlu0 %457
      %459 = vrot.lane.b32.xlu0 %v389, 4
      %v460 = vpop.permute.xlu0 %459
      %461 = vrot.lane.b32.xlu0 %v390, 4
      %v462 = vpop.permute.xlu0 %461
      %463 = vrot.lane.b32.xlu0 %v391, 4
      %v464 = vpop.permute.xlu0 %463
      %465 = vrot.lane.b32.xlu0 %v392, 4
      %v466 = vpop.permute.xlu0 %465
      %467 = vrot.lane.b32.xlu0 %v393, 4
      %v468 = vpop.permute.xlu0 %467
      %469 = vrot.lane.b32.xlu0 %v394, 4
      %v470 = vpop.permute.xlu0 %469
      %471 = vrot.lane.b32.xlu0 %v395, 4
      %v472 = vpop.permute.xlu0 %471
      %473 = vrot.lane.b32.xlu0 %v396, 4
      %v474 = vpop.permute.xlu0 %473
      %475 = vrot.lane.b32.xlu0 %v397, 4
      %v476 = vpop.permute.xlu0 %475
      %477 = vrot.lane.b32.xlu0 %v398, 4
      %v478 = vpop.permute.xlu0 %477
      %479 = vrot.lane.b32.xlu0 %v399, 4
      %v480 = vpop.permute.xlu0 %479
      %481 = vrot.lane.b32.xlu0 %v400, 4
      %v482 = vpop.permute.xlu0 %481
      %483 = vrot.lane.b32.xlu0 %v401, 4
      %v484 = vpop.permute.xlu0 %483
      %485 = vrot.lane.b32.xlu0 %v402, 4
      %v486 = vpop.permute.xlu0 %485
      %487 = vrot.lane.b32.xlu0 %v403, 4
      %v488 = vpop.permute.xlu0 %487
      %489 = vrot.lane.b32.xlu0 %v404, 4
      %v490 = vpop.permute.xlu0 %489
      %491 = vrot.lane.b32.xlu0 %v405, 4
      %v492 = vpop.permute.xlu0 %491
      %493 = vrot.lane.b32.xlu0 %v406, 4
      %v494 = vpop.permute.xlu0 %493
      %495 = vrot.lane.b32.xlu0 %v407, 4
      %v496 = vpop.permute.xlu0 %495
      %497 = vrot.lane.b32.xlu0 %v408, 4
      %v498 = vpop.permute.xlu0 %497
      %499 = vrot.lane.b32.xlu0 %v409, 4
      %v500 = vpop.permute.xlu0 %499
      %501 = vrot.lane.b32.xlu0 %v410, 4
      %v502 = vpop.permute.xlu0 %501
      %503 = vrot.lane.b32.xlu0 %v411, 4
      %v504 = vpop.permute.xlu0 %503
      %505 = vrot.lane.b32.xlu0 %v412, 4
      %v506 = vpop.permute.xlu0 %505
      %507 = vrot.lane.b32.xlu0 %v413, 4
      %v508 = vpop.permute.xlu0 %507
      %509 = vrot.lane.b32.xlu0 %v414, 4
      %v510 = vpop.permute.xlu0 %509
      %vm543 = vcmask 64544
      %544 = vst.msk [vmem:[#allocation3] sm:$0xff] %vm543, %v448
      %545 = vst.msk [vmem:[#allocation3 + $0x8] sm:$0xff] %vm543, %v450
      %546 = vst.msk [vmem:[#allocation3 + $0x10] sm:$0xff] %vm543, %v452
      %547 = vst.msk [vmem:[#allocation3 + $0x18] sm:$0xff] %vm543, %v454
      %548 = vst.msk [vmem:[#allocation3 + $0x20] sm:$0xff] %vm543, %v456
      %549 = vst.msk [vmem:[#allocation3 + $0x28] sm:$0xff] %vm543, %v458
      %550 = vst.msk [vmem:[#allocation3 + $0x30] sm:$0xff] %vm543, %v460
      %551 = vst.msk [vmem:[#allocation3 + $0x38] sm:$0xff] %vm543, %v462
      %552 = vst.msk [vmem:[#allocation3 + $0x40] sm:$0xff] %vm543, %v464
      %553 = vst.msk [vmem:[#allocation3 + $0x48] sm:$0xff] %vm543, %v466
      %554 = vst.msk [vmem:[#allocation3 + $0x50] sm:$0xff] %vm543, %v468
      %555 = vst.msk [vmem:[#allocation3 + $0x58] sm:$0xff] %vm543, %v470
      %556 = vst.msk [vmem:[#allocation3 + $0x60] sm:$0xff] %vm543, %v472
      %557 = vst.msk [vmem:[#allocation3 + $0x68] sm:$0xff] %vm543, %v474
      %558 = vst.msk [vmem:[#allocation3 + $0x70] sm:$0xff] %vm543, %v476
      %559 = vst.msk [vmem:[#allocation3 + $0x78] sm:$0xff] %vm543, %v478
      %560 = vst.msk [vmem:[#allocation3 + $0x80] sm:$0xff] %vm543, %v480
      %561 = vst.msk [vmem:[#allocation3 + $0x88] sm:$0xff] %vm543, %v482
      %562 = vst.msk [vmem:[#allocation3 + $0x90] sm:$0xff] %vm543, %v484
      %563 = vst.msk [vmem:[#allocation3 + $0x98] sm:$0xff] %vm543, %v486
      %564 = vst.msk [vmem:[#allocation3 + $0xa0] sm:$0xff] %vm543, %v488
      %565 = vst.msk [vmem:[#allocation3 + $0xa8] sm:$0xff] %vm543, %v490
      %566 = vst.msk [vmem:[#allocation3 + $0xb0] sm:$0xff] %vm543, %v492
      %567 = vst.msk [vmem:[#allocation3 + $0xb8] sm:$0xff] %vm543, %v494
      %568 = vst.msk [vmem:[#allocation3 + $0xc0] sm:$0xff] %vm543, %v496
      %569 = vst.msk [vmem:[#allocation3 + $0xc8] sm:$0xff] %vm543, %v498
      %570 = vst.msk [vmem:[#allocation3 + $0xd0] sm:$0xff] %vm543, %v500
      %571 = vst.msk [vmem:[#allocation3 + $0xd8] sm:$0xff] %vm543, %v502
      %572 = vst.msk [vmem:[#allocation3 + $0xe0] sm:$0xff] %vm543, %v504
      %573 = vst.msk [vmem:[#allocation3 + $0xe8] sm:$0xff] %vm543, %v506
      %574 = vst.msk [vmem:[#allocation3 + $0xf0] sm:$0xff] %vm543, %v508
      %575 = vst.msk [vmem:[#allocation3 + $0xf8] sm:$0xff] %vm543, %v510
      %v576 = vld [vmem:[#allocation2 + $0x2] sm:$0xff]
      %v577 = vld [vmem:[#allocation2 + $0xa] sm:$0xff]
      %v578 = vld [vmem:[#allocation2 + $0x1a] sm:$0xff]
      %v579 = vld [vmem:[#allocation2 + $0x22] sm:$0xff]
      %v580 = vld [vmem:[#allocation2 + $0x32] sm:$0xff]
      %v581 = vld [vmem:[#allocation2 + $0x3a] sm:$0xff]
      %v582 = vld [vmem:[#allocation2 + $0x4a] sm:$0xff]
      %v583 = vld [vmem:[#allocation2 + $0x52] sm:$0xff]
      %v584 = vld [vmem:[#allocation2 + $0x62] sm:$0xff]
      %v585 = vld [vmem:[#allocation2 + $0x6a] sm:$0xff]
      %v586 = vld [vmem:[#allocation2 + $0x7a] sm:$0xff]
      %v587 = vld [vmem:[#allocation2 + $0x82] sm:$0xff]
      %v588 = vld [vmem:[#allocation2 + $0x92] sm:$0xff]
      %v589 = vld [vmem:[#allocation2 + $0x9a] sm:$0xff]
      %v590 = vld [vmem:[#allocation2 + $0xaa] sm:$0xff]
      %v591 = vld [vmem:[#allocation2 + $0xb2] sm:$0xff]
      %v592 = vld [vmem:[#allocation2 + $0xc2] sm:$0xff]
      %v593 = vld [vmem:[#allocation2 + $0xca] sm:$0xff]
      %v594 = vld [vmem:[#allocation2 + $0xda] sm:$0xff]
      %v595 = vld [vmem:[#allocation2 + $0xe2] sm:$0xff]
      %v596 = vld [vmem:[#allocation2 + $0xf2] sm:$0xff]
      %v597 = vld [vmem:[#allocation2 + $0xfa] sm:$0xff]
      %v598 = vld [vmem:[#allocation2 + $0x10a] sm:$0xff]
      %v599 = vld [vmem:[#allocation2 + $0x112] sm:$0xff]
      %v600 = vld [vmem:[#allocation2 + $0x122] sm:$0xff]
      %v601 = vld [vmem:[#allocation2 + $0x12a] sm:$0xff]
      %v602 = vld [vmem:[#allocation2 + $0x13a] sm:$0xff]
      %v603 = vld [vmem:[#allocation2 + $0x142] sm:$0xff]
      %v604 = vld [vmem:[#allocation2 + $0x152] sm:$0xff]
      %v605 = vld [vmem:[#allocation2 + $0x15a] sm:$0xff]
      %v606 = vld [vmem:[#allocation2 + $0x16a] sm:$0xff]
      %v607 = vld [vmem:[#allocation2 + $0x172] sm:$0xff]
      %640 = vrot.lane.b32.xlu0 %v576, 8
      %v641 = vpop.permute.xlu0 %640
      %642 = vrot.lane.b32.xlu0 %v577, 8
      %v643 = vpop.permute.xlu0 %642
      %644 = vrot.lane.b32.xlu0 %v578, 8
      %v645 = vpop.permute.xlu0 %644
      %646 = vrot.lane.b32.xlu0 %v579, 8
      %v647 = vpop.permute.xlu0 %646
      %648 = vrot.lane.b32.xlu0 %v580, 8
      %v649 = vpop.permute.xlu0 %648
      %650 = vrot.lane.b32.xlu0 %v581, 8
      %v651 = vpop.permute.xlu0 %650
      %652 = vrot.lane.b32.xlu0 %v582, 8
      %v653 = vpop.permute.xlu0 %652
      %654 = vrot.lane.b32.xlu0 %v583, 8
      %v655 = vpop.permute.xlu0 %654
      %656 = vrot.lane.b32.xlu0 %v584, 8
      %v657 = vpop.permute.xlu0 %656
      %658 = vrot.lane.b32.xlu0 %v585, 8
      %v659 = vpop.permute.xlu0 %658
      %660 = vrot.lane.b32.xlu0 %v586, 8
      %v661 = vpop.permute.xlu0 %660
      %662 = vrot.lane.b32.xlu0 %v587, 8
      %v663 = vpop.permute.xlu0 %662
      %664 = vrot.lane.b32.xlu0 %v588, 8
      %v665 = vpop.permute.xlu0 %664
      %666 = vrot.lane.b32.xlu0 %v589, 8
      %v667 = vpop.permute.xlu0 %666
      %668 = vrot.lane.b32.xlu0 %v590, 8
      %v669 = vpop.permute.xlu0 %668
      %670 = vrot.lane.b32.xlu0 %v591, 8
      %v671 = vpop.permute.xlu0 %670
      %672 = vrot.lane.b32.xlu0 %v592, 8
      %v673 = vpop.permute.xlu0 %672
      %674 = vrot.lane.b32.xlu0 %v593, 8
      %v675 = vpop.permute.xlu0 %674
      %676 = vrot.lane.b32.xlu0 %v594, 8
      %v677 = vpop.permute.xlu0 %676
      %678 = vrot.lane.b32.xlu0 %v595, 8
      %v679 = vpop.permute.xlu0 %678
      %680 = vrot.lane.b32.xlu0 %v596, 8
      %v681 = vpop.permute.xlu0 %680
      %682 = vrot.lane.b32.xlu0 %v597, 8
      %v683 = vpop.permute.xlu0 %682
      %684 = vrot.lane.b32.xlu0 %v598, 8
      %v685 = vpop.permute.xlu0 %684
      %686 = vrot.lane.b32.xlu0 %v599, 8
      %v687 = vpop.permute.xlu0 %686
      %688 = vrot.lane.b32.xlu0 %v600, 8
      %v689 = vpop.permute.xlu0 %688
      %690 = vrot.lane.b32.xlu0 %v601, 8
      %v691 = vpop.permute.xlu0 %690
      %692 = vrot.lane.b32.xlu0 %v602, 8
      %v693 = vpop.permute.xlu0 %692
      %694 = vrot.lane.b32.xlu0 %v603, 8
      %v695 = vpop.permute.xlu0 %694
      %696 = vrot.lane.b32.xlu0 %v604, 8
      %v697 = vpop.permute.xlu0 %696
      %698 = vrot.lane.b32.xlu0 %v605, 8
      %v699 = vpop.permute.xlu0 %698
      %700 = vrot.lane.b32.xlu0 %v606, 8
      %v701 = vpop.permute.xlu0 %700
      %702 = vrot.lane.b32.xlu0 %v607, 8
      %v703 = vpop.permute.xlu0 %702
      %vm736 = vcmask 97344
      %737 = vst.msk [vmem:[#allocation3] sm:$0xff] %vm736, %v641
      %738 = vst.msk [vmem:[#allocation3 + $0x8] sm:$0xff] %vm736, %v643
      %739 = vst.msk [vmem:[#allocation3 + $0x10] sm:$0xff] %vm736, %v645
      %740 = vst.msk [vmem:[#allocation3 + $0x18] sm:$0xff] %vm736, %v647
      %741 = vst.msk [vmem:[#allocation3 + $0x20] sm:$0xff] %vm736, %v649
      %742 = vst.msk [vmem:[#allocation3 + $0x28] sm:$0xff] %vm736, %v651
      %743 = vst.msk [vmem:[#allocation3 + $0x30] sm:$0xff] %vm736, %v653
      %744 = vst.msk [vmem:[#allocation3 + $0x38] sm:$0xff] %vm736, %v655
      %745 = vst.msk [vmem:[#allocation3 + $0x40] sm:$0xff] %vm736, %v657
      %746 = vst.msk [vmem:[#allocation3 + $0x48] sm:$0xff] %vm736, %v659
      %747 = vst.msk [vmem:[#allocation3 + $0x50] sm:$0xff] %vm736, %v661
      %748 = vst.msk [vmem:[#allocation3 + $0x58] sm:$0xff] %vm736, %v663
      %749 = vst.msk [vmem:[#allocation3 + $0x60] sm:$0xff] %vm736, %v665
      %750 = vst.msk [vmem:[#allocation3 + $0x68] sm:$0xff] %vm736, %v667
      %751 = vst.msk [vmem:[#allocation3 + $0x70] sm:$0xff] %vm736, %v669
      %752 = vst.msk [vmem:[#allocation3 + $0x78] sm:$0xff] %vm736, %v671
      %753 = vst.msk [vmem:[#allocation3 + $0x80] sm:$0xff] %vm736, %v673
      %754 = vst.msk [vmem:[#allocation3 + $0x88] sm:$0xff] %vm736, %v675
      %755 = vst.msk [vmem:[#allocation3 + $0x90] sm:$0xff] %vm736, %v677
      %756 = vst.msk [vmem:[#allocation3 + $0x98] sm:$0xff] %vm736, %v679
      %757 = vst.msk [vmem:[#allocation3 + $0xa0] sm:$0xff] %vm736, %v681
      %758 = vst.msk [vmem:[#allocation3 + $0xa8] sm:$0xff] %vm736, %v683
      %759 = vst.msk [vmem:[#allocation3 + $0xb0] sm:$0xff] %vm736, %v685
      %760 = vst.msk [vmem:[#allocation3 + $0xb8] sm:$0xff] %vm736, %v687
      %761 = vst.msk [vmem:[#allocation3 + $0xc0] sm:$0xff] %vm736, %v689
      %762 = vst.msk [vmem:[#allocation3 + $0xc8] sm:$0xff] %vm736, %v691
      %763 = vst.msk [vmem:[#allocation3 + $0xd0] sm:$0xff] %vm736, %v693
      %764 = vst.msk [vmem:[#allocation3 + $0xd8] sm:$0xff] %vm736, %v695
      %765 = vst.msk [vmem:[#allocation3 + $0xe0] sm:$0xff] %vm736, %v697
      %766 = vst.msk [vmem:[#allocation3 + $0xe8] sm:$0xff] %vm736, %v699
      %767 = vst.msk [vmem:[#allocation3 + $0xf0] sm:$0xff] %vm736, %v701
      %768 = vst.msk [vmem:[#allocation3 + $0xf8] sm:$0xff] %vm736, %v703
      %v769 = vld [vmem:[%s286] sm:$0xff]
      %v770 = vld [vmem:[%s286 + $0x8] sm:$0xff]
      %v771 = vld [vmem:[%s286 + $0x18] sm:$0xff]
      %v772 = vld [vmem:[%s286 + $0x20] sm:$0xff]
      %v773 = vld [vmem:[%s286 + $0x30] sm:$0xff]
      %v774 = vld [vmem:[%s286 + $0x38] sm:$0xff]
      %v775 = vld [vmem:[%s286 + $0x48] sm:$0xff]
      %v776 = vld [vmem:[%s286 + $0x50] sm:$0xff]
      %v777 = vld [vmem:[%s286 + $0x60] sm:$0xff]
      %v778 = vld [vmem:[%s286 + $0x68] sm:$0xff]
      %v779 = vld [vmem:[%s286 + $0x78] sm:$0xff]
      %v780 = vld [vmem:[%s286 + $0x80] sm:$0xff]
      %v781 = vld [vmem:[%s286 + $0x90] sm:$0xff]
      %v782 = vld [vmem:[%s286 + $0x98] sm:$0xff]
      %v783 = vld [vmem:[%s286 + $0xa8] sm:$0xff]
      %v784 = vld [vmem:[%s286 + $0xb0] sm:$0xff]
      %v785 = vld [vmem:[%s286 + $0xc0] sm:$0xff]
      %v786 = vld [vmem:[%s286 + $0xc8] sm:$0xff]
      %v787 = vld [vmem:[%s286 + $0xd8] sm:$0xff]
      %v788 = vld [vmem:[%s286 + $0xe0] sm:$0xff]
      %v789 = vld [vmem:[%s286 + $0xf0] sm:$0xff]
      %v790 = vld [vmem:[%s286 + $0xf8] sm:$0xff]
      %v791 = vld [vmem:[%s286 + $0x108] sm:$0xff]
      %v792 = vld [vmem:[%s286 + $0x110] sm:$0xff]
      %v793 = vld [vmem:[%s286 + $0x120] sm:$0xff]
      %v794 = vld [vmem:[%s286 + $0x128] sm:$0xff]
      %v795 = vld [vmem:[%s286 + $0x138] sm:$0xff]
      %v796 = vld [vmem:[%s286 + $0x140] sm:$0xff]
      %v797 = vld [vmem:[%s286 + $0x150] sm:$0xff]
      %v798 = vld [vmem:[%s286 + $0x158] sm:$0xff]
      %v799 = vld [vmem:[%s286 + $0x168] sm:$0xff]
      %v800 = vld [vmem:[%s286 + $0x170] sm:$0xff]
      %833 = vrot.lane.b32.xlu0 %v769, 12
      %v834 = vpop.permute.xlu0 %833
      %835 = vrot.lane.b32.xlu0 %v770, 12
      %v836 = vpop.permute.xlu0 %835
      %837 = vrot.lane.b32.xlu0 %v771, 12
      %v838 = vpop.permute.xlu0 %837
      %839 = vrot.lane.b32.xlu0 %v772, 12
      %v840 = vpop.permute.xlu0 %839
      %841 = vrot.lane.b32.xlu0 %v773, 12
      %v842 = vpop.permute.xlu0 %841
      %843 = vrot.lane.b32.xlu0 %v774, 12
      %v844 = vpop.permute.xlu0 %843
      %845 = vrot.lane.b32.xlu0 %v775, 12
      %v846 = vpop.permute.xlu0 %845
      %847 = vrot.lane.b32.xlu0 %v776, 12
      %v848 = vpop.permute.xlu0 %847
      %849 = vrot.lane.b32.xlu0 %v777, 12
      %v850 = vpop.permute.xlu0 %849
      %851 = vrot.lane.b32.xlu0 %v778, 12
      %v852 = vpop.permute.xlu0 %851
      %853 = vrot.lane.b32.xlu0 %v779, 12
      %v854 = vpop.permute.xlu0 %853
      %855 = vrot.lane.b32.xlu0 %v780, 12
      %v856 = vpop.permute.xlu0 %855
      %857 = vrot.lane.b32.xlu0 %v781, 12
      %v858 = vpop.permute.xlu0 %857
      %859 = vrot.lane.b32.xlu0 %v782, 12
      %v860 = vpop.permute.xlu0 %859
      %861 = vrot.lane.b32.xlu0 %v783, 12
      %v862 = vpop.permute.xlu0 %861
      %863 = vrot.lane.b32.xlu0 %v784, 12
      %v864 = vpop.permute.xlu0 %863
      %865 = vrot.lane.b32.xlu0 %v785, 12
      %v866 = vpop.permute.xlu0 %865
      %867 = vrot.lane.b32.xlu0 %v786, 12
      %v868 = vpop.permute.xlu0 %867
      %869 = vrot.lane.b32.xlu0 %v787, 12
      %v870 = vpop.permute.xlu0 %869
      %871 = vrot.lane.b32.xlu0 %v788, 12
      %v872 = vpop.permute.xlu0 %871
      %873 = vrot.lane.b32.xlu0 %v789, 12
      %v874 = vpop.permute.xlu0 %873
      %875 = vrot.lane.b32.xlu0 %v790, 12
      %v876 = vpop.permute.xlu0 %875
      %877 = vrot.lane.b32.xlu0 %v791, 12
      %v878 = vpop.permute.xlu0 %877
      %879 = vrot.lane.b32.xlu0 %v792, 12
      %v880 = vpop.permute.xlu0 %879
      %881 = vrot.lane.b32.xlu0 %v793, 12
      %v882 = vpop.permute.xlu0 %881
      %883 = vrot.lane.b32.xlu0 %v794, 12
      %v884 = vpop.permute.xlu0 %883
      %885 = vrot.lane.b32.xlu0 %v795, 12
      %v886 = vpop.permute.xlu0 %885
      %887 = vrot.lane.b32.xlu0 %v796, 12
      %v888 = vpop.permute.xlu0 %887
      %889 = vrot.lane.b32.xlu0 %v797, 12
      %v890 = vpop.permute.xlu0 %889
      %891 = vrot.lane.b32.xlu0 %v798, 12
      %v892 = vpop.permute.xlu0 %891
      %893 = vrot.lane.b32.xlu0 %v799, 12
      %v894 = vpop.permute.xlu0 %893
      %895 = vrot.lane.b32.xlu0 %v800, 12
      %v896 = vpop.permute.xlu0 %895
      %vm929 = vcmask 130144
      %930 = vst.msk [vmem:[#allocation3] sm:$0xff] %vm929, %v834
      %931 = vst.msk [vmem:[#allocation3 + $0x8] sm:$0xff] %vm929, %v836
      %932 = vst.msk [vmem:[#allocation3 + $0x10] sm:$0xff] %vm929, %v838
      %933 = vst.msk [vmem:[#allocation3 + $0x18] sm:$0xff] %vm929, %v840
      %934 = vst.msk [vmem:[#allocation3 + $0x20] sm:$0xff] %vm929, %v842
      %935 = vst.msk [vmem:[#allocation3 + $0x28] sm:$0xff] %vm929, %v844
      %936 = vst.msk [vmem:[#allocation3 + $0x30] sm:$0xff] %vm929, %v846
      %937 = vst.msk [vmem:[#allocation3 + $0x38] sm:$0xff] %vm929, %v848
      %938 = vst.msk [vmem:[#allocation3 + $0x40] sm:$0xff] %vm929, %v850
      %939 = vst.msk [vmem:[#allocation3 + $0x48] sm:$0xff] %vm929, %v852
      %940 = vst.msk [vmem:[#allocation3 + $0x50] sm:$0xff] %vm929, %v854
      %941 = vst.msk [vmem:[#allocation3 + $0x58] sm:$0xff] %vm929, %v856
      %942 = vst.msk [vmem:[#allocation3 + $0x60] sm:$0xff] %vm929, %v858
      %943 = vst.msk [vmem:[#allocation3 + $0x68] sm:$0xff] %vm929, %v860
      %944 = vst.msk [vmem:[#allocation3 + $0x70] sm:$0xff] %vm929, %v862
      %945 = vst.msk [vmem:[#allocation3 + $0x78] sm:$0xff] %vm929, %v864
      %946 = vst.msk [vmem:[#allocation3 + $0x80] sm:$0xff] %vm929, %v866
      %947 = vst.msk [vmem:[#allocation3 + $0x88] sm:$0xff] %vm929, %v868
      %948 = vst.msk [vmem:[#allocation3 + $0x90] sm:$0xff] %vm929, %v870
      %949 = vst.msk [vmem:[#allocation3 + $0x98] sm:$0xff] %vm929, %v872
      %950 = vst.msk [vmem:[#allocation3 + $0xa0] sm:$0xff] %vm929, %v874
      %951 = vst.msk [vmem:[#allocation3 + $0xa8] sm:$0xff] %vm929, %v876
      %952 = vst.msk [vmem:[#allocation3 + $0xb0] sm:$0xff] %vm929, %v878
      %953 = vst.msk [vmem:[#allocation3 + $0xb8] sm:$0xff] %vm929, %v880
      %954 = vst.msk [vmem:[#allocation3 + $0xc0] sm:$0xff] %vm929, %v882
      %955 = vst.msk [vmem:[#allocation3 + $0xc8] sm:$0xff] %vm929, %v884
      %956 = vst.msk [vmem:[#allocation3 + $0xd0] sm:$0xff] %vm929, %v886
      %957 = vst.msk [vmem:[#allocation3 + $0xd8] sm:$0xff] %vm929, %v888
      %958 = vst.msk [vmem:[#allocation3 + $0xe0] sm:$0xff] %vm929, %v890
      %959 = vst.msk [vmem:[#allocation3 + $0xe8] sm:$0xff] %vm929, %v892
      %960 = vst.msk [vmem:[#allocation3 + $0xf0] sm:$0xff] %vm929, %v894
      %961 = vst.msk [vmem:[#allocation3 + $0xf8] sm:$0xff] %vm929, %v896
      %v962 = vld [vmem:[%s286 + $0x1] sm:$0xff]
      %v963 = vld [vmem:[%s286 + $0x9] sm:$0xff]
      %v964 = vld [vmem:[%s286 + $0x19] sm:$0xff]
      %v965 = vld [vmem:[%s286 + $0x21] sm:$0xff]
      %v966 = vld [vmem:[%s286 + $0x31] sm:$0xff]
      %v967 = vld [vmem:[%s286 + $0x39] sm:$0xff]
      %v968 = vld [vmem:[%s286 + $0x49] sm:$0xff]
      %v969 = vld [vmem:[%s286 + $0x51] sm:$0xff]
      %v970 = vld [vmem:[%s286 + $0x61] sm:$0xff]
      %v971 = vld [vmem:[%s286 + $0x69] sm:$0xff]
      %v972 = vld [vmem:[%s286 + $0x79] sm:$0xff]
      %v973 = vld [vmem:[%s286 + $0x81] sm:$0xff]
      %v974 = vld [vmem:[%s286 + $0x91] sm:$0xff]
      %v975 = vld [vmem:[%s286 + $0x99] sm:$0xff]
      %v976 = vld [vmem:[%s286 + $0xa9] sm:$0xff]
      %v977 = vld [vmem:[%s286 + $0xb1] sm:$0xff]
      %v978 = vld [vmem:[%s286 + $0xc1] sm:$0xff]
      %v979 = vld [vmem:[%s286 + $0xc9] sm:$0xff]
      %v980 = vld [vmem:[%s286 + $0xd9] sm:$0xff]
      %v981 = vld [vmem:[%s286 + $0xe1] sm:$0xff]
      %v982 = vld [vmem:[%s286 + $0xf1] sm:$0xff]
      %v983 = vld [vmem:[%s286 + $0xf9] sm:$0xff]
      %v984 = vld [vmem:[%s286 + $0x109] sm:$0xff]
      %v985 = vld [vmem:[%s286 + $0x111] sm:$0xff]
      %v986 = vld [vmem:[%s286 + $0x121] sm:$0xff]
      %v987 = vld [vmem:[%s286 + $0x129] sm:$0xff]
      %v988 = vld [vmem:[%s286 + $0x139] sm:$0xff]
      %v989 = vld [vmem:[%s286 + $0x141] sm:$0xff]
      %v990 = vld [vmem:[%s286 + $0x151] sm:$0xff]
      %v991 = vld [vmem:[%s286 + $0x159] sm:$0xff]
      %v992 = vld [vmem:[%s286 + $0x169] sm:$0xff]
      %v993 = vld [vmem:[%s286 + $0x171] sm:$0xff]
      %1026 = vrot.lane.b32.xlu0 %v962, 16
      %v1027 = vpop.permute.xlu0 %1026
      %1028 = vrot.lane.b32.xlu0 %v963, 16
      %v1029 = vpop.permute.xlu0 %1028
      %1030 = vrot.lane.b32.xlu0 %v964, 16
      %v1031 = vpop.permute.xlu0 %1030
      %1032 = vrot.lane.b32.xlu0 %v965, 16
      %v1033 = vpop.permute.xlu0 %1032
      %1034 = vrot.lane.b32.xlu0 %v966, 16
      %v1035 = vpop.permute.xlu0 %1034
      %1036 = vrot.lane.b32.xlu0 %v967, 16
      %v1037 = vpop.permute.xlu0 %1036
      %1038 = vrot.lane.b32.xlu0 %v968, 16
      %v1039 = vpop.permute.xlu0 %1038
      %1040 = vrot.lane.b32.xlu0 %v969, 16
      %v1041 = vpop.permute.xlu0 %1040
      %1042 = vrot.lane.b32.xlu0 %v970, 16
      %v1043 = vpop.permute.xlu0 %1042
      %1044 = vrot.lane.b32.xlu0 %v971, 16
      %v1045 = vpop.permute.xlu0 %1044
      %1046 = vrot.lane.b32.xlu0 %v972, 16
      %v1047 = vpop.permute.xlu0 %1046
      %1048 = vrot.lane.b32.xlu0 %v973, 16
      %v1049 = vpop.permute.xlu0 %1048
      %1050 = vrot.lane.b32.xlu0 %v974, 16
      %v1051 = vpop.permute.xlu0 %1050
      %1052 = vrot.lane.b32.xlu0 %v975, 16
      %v1053 = vpop.permute.xlu0 %1052
      %1054 = vrot.lane.b32.xlu0 %v976, 16
      %v1055 = vpop.permute.xlu0 %1054
      %1056 = vrot.lane.b32.xlu0 %v977, 16
      %v1057 = vpop.permute.xlu0 %1056
      %1058 = vrot.lane.b32.xlu0 %v978, 16
      %v1059 = vpop.permute.xlu0 %1058
      %1060 = vrot.lane.b32.xlu0 %v979, 16
      %v1061 = vpop.permute.xlu0 %1060
      %1062 = vrot.lane.b32.xlu0 %v980, 16
      %v1063 = vpop.permute.xlu0 %1062
      %1064 = vrot.lane.b32.xlu0 %v981, 16
      %v1065 = vpop.permute.xlu0 %1064
      %1066 = vrot.lane.b32.xlu0 %v982, 16
      %v1067 = vpop.permute.xlu0 %1066
      %1068 = vrot.lane.b32.xlu0 %v983, 16
      %v1069 = vpop.permute.xlu0 %1068
      %1070 = vrot.lane.b32.xlu0 %v984, 16
      %v1071 = vpop.permute.xlu0 %1070
      %1072 = vrot.lane.b32.xlu0 %v985, 16
      %v1073 = vpop.permute.xlu0 %1072
      %1074 = vrot.lane.b32.xlu0 %v986, 16
      %v1075 = vpop.permute.xlu0 %1074
      %1076 = vrot.lane.b32.xlu0 %v987, 16
      %v1077 = vpop.permute.xlu0 %1076
      %1078 = vrot.lane.b32.xlu0 %v988, 16
      %v1079 = vpop.permute.xlu0 %1078
      %1080 = vrot.lane.b32.xlu0 %v989, 16
      %v1081 = vpop.permute.xlu0 %1080
      %1082 = vrot.lane.b32.xlu0 %v990, 16
      %v1083 = vpop.permute.xlu0 %1082
      %1084 = vrot.lane.b32.xlu0 %v991, 16
      %v1085 = vpop.permute.xlu0 %1084
      %1086 = vrot.lane.b32.xlu0 %v992, 16
      %v1087 = vpop.permute.xlu0 %1086
      %1088 = vrot.lane.b32.xlu0 %v993, 16
      %v1089 = vpop.permute.xlu0 %1088
      %vm1122 = vcmask 162944
      %1123 = vst.msk [vmem:[#allocation3] sm:$0xff] %vm1122, %v1027
      %1124 = vst.msk [vmem:[#allocation3 + $0x8] sm:$0xff] %vm1122, %v1029
      %1125 = vst.msk [vmem:[#allocation3 + $0x10] sm:$0xff] %vm1122, %v1031
      %1126 = vst.msk [vmem:[#allocation3 + $0x18] sm:$0xff] %vm1122, %v1033
      %1127 = vst.msk [vmem:[#allocation3 + $0x20] sm:$0xff] %vm1122, %v1035
      %1128 = vst.msk [vmem:[#allocation3 + $0x28] sm:$0xff] %vm1122, %v1037
      %1129 = vst.msk [vmem:[#allocation3 + $0x30] sm:$0xff] %vm1122, %v1039
      %1130 = vst.msk [vmem:[#allocation3 + $0x38] sm:$0xff] %vm1122, %v1041
      %1131 = vst.msk [vmem:[#allocation3 + $0x40] sm:$0xff] %vm1122, %v1043
      %1132 = vst.msk [vmem:[#allocation3 + $0x48] sm:$0xff] %vm1122, %v1045
      %1133 = vst.msk [vmem:[#allocation3 + $0x50] sm:$0xff] %vm1122, %v1047
      %1134 = vst.msk [vmem:[#allocation3 + $0x58] sm:$0xff] %vm1122, %v1049
      %1135 = vst.msk [vmem:[#allocation3 + $0x60] sm:$0xff] %vm1122, %v1051
      %1136 = vst.msk [vmem:[#allocation3 + $0x68] sm:$0xff] %vm1122, %v1053
      %1137 = vst.msk [vmem:[#allocation3 + $0x70] sm:$0xff] %vm1122, %v1055
      %1138 = vst.msk [vmem:[#allocation3 + $0x78] sm:$0xff] %vm1122, %v1057
      %1139 = vst.msk [vmem:[#allocation3 + $0x80] sm:$0xff] %vm1122, %v1059
      %1140 = vst.msk [vmem:[#allocation3 + $0x88] sm:$0xff] %vm1122, %v1061
      %1141 = vst.msk [vmem:[#allocation3 + $0x90] sm:$0xff] %vm1122, %v1063
      %1142 = vst.msk [vmem:[#allocation3 + $0x98] sm:$0xff] %vm1122, %v1065
      %1143 = vst.msk [vmem:[#allocation3 + $0xa0] sm:$0xff] %vm1122, %v1067
      %1144 = vst.msk [vmem:[#allocation3 + $0xa8] sm:$0xff] %vm1122, %v1069
      %1145 = vst.msk [vmem:[#allocation3 + $0xb0] sm:$0xff] %vm1122, %v1071
      %1146 = vst.msk [vmem:[#allocation3 + $0xb8] sm:$0xff] %vm1122, %v1073
      %1147 = vst.msk [vmem:[#allocation3 + $0xc0] sm:$0xff] %vm1122, %v1075
      %1148 = vst.msk [vmem:[#allocation3 + $0xc8] sm:$0xff] %vm1122, %v1077
      %1149 = vst.msk [vmem:[#allocation3 + $0xd0] sm:$0xff] %vm1122, %v1079
      %1150 = vst.msk [vmem:[#allocation3 + $0xd8] sm:$0xff] %vm1122, %v1081
      %1151 = vst.msk [vmem:[#allocation3 + $0xe0] sm:$0xff] %vm1122, %v1083
      %1152 = vst.msk [vmem:[#allocation3 + $0xe8] sm:$0xff] %vm1122, %v1085
      %1153 = vst.msk [vmem:[#allocation3 + $0xf0] sm:$0xff] %vm1122, %v1087
      %1154 = vst.msk [vmem:[#allocation3 + $0xf8] sm:$0xff] %vm1122, %v1089
      %v1155 = vld [vmem:[%s286 + $0x2] sm:$0xff]
      %v1156 = vld [vmem:[%s286 + $0xa] sm:$0xff]
      %v1157 = vld [vmem:[%s286 + $0x1a] sm:$0xff]
      %v1158 = vld [vmem:[%s286 + $0x22] sm:$0xff]
      %v1159 = vld [vmem:[%s286 + $0x32] sm:$0xff]
      %v1160 = vld [vmem:[%s286 + $0x3a] sm:$0xff]
      %v1161 = vld [vmem:[%s286 + $0x4a] sm:$0xff]
      %v1162 = vld [vmem:[%s286 + $0x52] sm:$0xff]
      %v1163 = vld [vmem:[%s286 + $0x62] sm:$0xff]
      %v1164 = vld [vmem:[%s286 + $0x6a] sm:$0xff]
      %v1165 = vld [vmem:[%s286 + $0x7a] sm:$0xff]
      %v1166 = vld [vmem:[%s286 + $0x82] sm:$0xff]
      %v1167 = vld [vmem:[%s286 + $0x92] sm:$0xff]
      %v1168 = vld [vmem:[%s286 + $0x9a] sm:$0xff]
      %v1169 = vld [vmem:[%s286 + $0xaa] sm:$0xff]
      %v1170 = vld [vmem:[%s286 + $0xb2] sm:$0xff]
      %v1171 = vld [vmem:[%s286 + $0xc2] sm:$0xff]
      %v1172 = vld [vmem:[%s286 + $0xca] sm:$0xff]
      %v1173 = vld [vmem:[%s286 + $0xda] sm:$0xff]
      %v1174 = vld [vmem:[%s286 + $0xe2] sm:$0xff]
      %v1175 = vld [vmem:[%s286 + $0xf2] sm:$0xff]
      %v1176 = vld [vmem:[%s286 + $0xfa] sm:$0xff]
      %v1177 = vld [vmem:[%s286 + $0x10a] sm:$0xff]
      %v1178 = vld [vmem:[%s286 + $0x112] sm:$0xff]
      %v1179 = vld [vmem:[%s286 + $0x122] sm:$0xff]
      %v1180 = vld [vmem:[%s286 + $0x12a] sm:$0xff]
      %v1181 = vld [vmem:[%s286 + $0x13a] sm:$0xff]
      %v1182 = vld [vmem:[%s286 + $0x142] sm:$0xff]
      %v1183 = vld [vmem:[%s286 + $0x152] sm:$0xff]
      %v1184 = vld [vmem:[%s286 + $0x15a] sm:$0xff]
      %v1185 = vld [vmem:[%s286 + $0x16a] sm:$0xff]
      %v1186 = vld [vmem:[%s286 + $0x172] sm:$0xff]
      %1219 = vrot.lane.b32.xlu0 %v1155, 20
      %v1220 = vpop.permute.xlu0 %1219
      %1221 = vrot.lane.b32.xlu0 %v1156, 20
      %v1222 = vpop.permute.xlu0 %1221
      %1223 = vrot.lane.b32.xlu0 %v1157, 20
      %v1224 = vpop.permute.xlu0 %1223
      %1225 = vrot.lane.b32.xlu0 %v1158, 20
      %v1226 = vpop.permute.xlu0 %1225
      %1227 = vrot.lane.b32.xlu0 %v1159, 20
      %v1228 = vpop.permute.xlu0 %1227
      %1229 = vrot.lane.b32.xlu0 %v1160, 20
      %v1230 = vpop.permute.xlu0 %1229
      %1231 = vrot.lane.b32.xlu0 %v1161, 20
      %v1232 = vpop.permute.xlu0 %1231
      %1233 = vrot.lane.b32.xlu0 %v1162, 20
      %v1234 = vpop.permute.xlu0 %1233
      %1235 = vrot.lane.b32.xlu0 %v1163, 20
      %v1236 = vpop.permute.xlu0 %1235
      %1237 = vrot.lane.b32.xlu0 %v1164, 20
      %v1238 = vpop.permute.xlu0 %1237
      %1239 = vrot.lane.b32.xlu0 %v1165, 20
      %v1240 = vpop.permute.xlu0 %1239
      %1241 = vrot.lane.b32.xlu0 %v1166, 20
      %v1242 = vpop.permute.xlu0 %1241
      %1243 = vrot.lane.b32.xlu0 %v1167, 20
      %v1244 = vpop.permute.xlu0 %1243
      %1245 = vrot.lane.b32.xlu0 %v1168, 20
      %v1246 = vpop.permute.xlu0 %1245
      %1247 = vrot.lane.b32.xlu0 %v1169, 20
      %v1248 = vpop.permute.xlu0 %1247
      %1249 = vrot.lane.b32.xlu0 %v1170, 20
      %v1250 = vpop.permute.xlu0 %1249
      %1251 = vrot.lane.b32.xlu0 %v1171, 20
      %v1252 = vpop.permute.xlu0 %1251
      %1253 = vrot.lane.b32.xlu0 %v1172, 20
      %v1254 = vpop.permute.xlu0 %1253
      %1255 = vrot.lane.b32.xlu0 %v1173, 20
      %v1256 = vpop.permute.xlu0 %1255
      %1257 = vrot.lane.b32.xlu0 %v1174, 20
      %v1258 = vpop.permute.xlu0 %1257
      %1259 = vrot.lane.b32.xlu0 %v1175, 20
      %v1260 = vpop.permute.xlu0 %1259
      %1261 = vrot.lane.b32.xlu0 %v1176, 20
      %v1262 = vpop.permute.xlu0 %1261
      %1263 = vrot.lane.b32.xlu0 %v1177, 20
      %v1264 = vpop.permute.xlu0 %1263
      %1265 = vrot.lane.b32.xlu0 %v1178, 20
      %v1266 = vpop.permute.xlu0 %1265
      %1267 = vrot.lane.b32.xlu0 %v1179, 20
      %v1268 = vpop.permute.xlu0 %1267
      %1269 = vrot.lane.b32.xlu0 %v1180, 20
      %v1270 = vpop.permute.xlu0 %1269
      %1271 = vrot.lane.b32.xlu0 %v1181, 20
      %v1272 = vpop.permute.xlu0 %1271
      %1273 = vrot.lane.b32.xlu0 %v1182, 20
      %v1274 = vpop.permute.xlu0 %1273
      %1275 = vrot.lane.b32.xlu0 %v1183, 20
      %v1276 = vpop.permute.xlu0 %1275
      %1277 = vrot.lane.b32.xlu0 %v1184, 20
      %v1278 = vpop.permute.xlu0 %1277
      %1279 = vrot.lane.b32.xlu0 %v1185, 20
      %v1280 = vpop.permute.xlu0 %1279
      %1281 = vrot.lane.b32.xlu0 %v1186, 20
      %v1282 = vpop.permute.xlu0 %1281
      %vm1315 = vcmask 195744
      %1316 = vst.msk [vmem:[#allocation3] sm:$0xff] %vm1315, %v1220
      %1317 = vst.msk [vmem:[#allocation3 + $0x8] sm:$0xff] %vm1315, %v1222
      %1318 = vst.msk [vmem:[#allocation3 + $0x10] sm:$0xff] %vm1315, %v1224
      %1319 = vst.msk [vmem:[#allocation3 + $0x18] sm:$0xff] %vm1315, %v1226
      %1320 = vst.msk [vmem:[#allocation3 + $0x20] sm:$0xff] %vm1315, %v1228
      %1321 = vst.msk [vmem:[#allocation3 + $0x28] sm:$0xff] %vm1315, %v1230
      %1322 = vst.msk [vmem:[#allocation3 + $0x30] sm:$0xff] %vm1315, %v1232
      %1323 = vst.msk [vmem:[#allocation3 + $0x38] sm:$0xff] %vm1315, %v1234
      %1324 = vst.msk [vmem:[#allocation3 + $0x40] sm:$0xff] %vm1315, %v1236
      %1325 = vst.msk [vmem:[#allocation3 + $0x48] sm:$0xff] %vm1315, %v1238
      %1326 = vst.msk [vmem:[#allocation3 + $0x50] sm:$0xff] %vm1315, %v1240
      %1327 = vst.msk [vmem:[#allocation3 + $0x58] sm:$0xff] %vm1315, %v1242
      %1328 = vst.msk [vmem:[#allocation3 + $0x60] sm:$0xff] %vm1315, %v1244
      %1329 = vst.msk [vmem:[#allocation3 + $0x68] sm:$0xff] %vm1315, %v1246
      %1330 = vst.msk [vmem:[#allocation3 + $0x70] sm:$0xff] %vm1315, %v1248
      %1331 = vst.msk [vmem:[#allocation3 + $0x78] sm:$0xff] %vm1315, %v1250
      %1332 = vst.msk [vmem:[#allocation3 + $0x80] sm:$0xff] %vm1315, %v1252
      %1333 = vst.msk [vmem:[#allocation3 + $0x88] sm:$0xff] %vm1315, %v1254
      %1334 = vst.msk [vmem:[#allocation3 + $0x90] sm:$0xff] %vm1315, %v1256
      %1335 = vst.msk [vmem:[#allocation3 + $0x98] sm:$0xff] %vm1315, %v1258
      %1336 = vst.msk [vmem:[#allocation3 + $0xa0] sm:$0xff] %vm1315, %v1260
      %1337 = vst.msk [vmem:[#allocation3 + $0xa8] sm:$0xff] %vm1315, %v1262
      %1338 = vst.msk [vmem:[#allocation3 + $0xb0] sm:$0xff] %vm1315, %v1264
      %1339 = vst.msk [vmem:[#allocation3 + $0xb8] sm:$0xff] %vm1315, %v1266
      %1340 = vst.msk [vmem:[#allocation3 + $0xc0] sm:$0xff] %vm1315, %v1268
      %1341 = vst.msk [vmem:[#allocation3 + $0xc8] sm:$0xff] %vm1315, %v1270
      %1342 = vst.msk [vmem:[#allocation3 + $0xd0] sm:$0xff] %vm1315, %v1272
      %1343 = vst.msk [vmem:[#allocation3 + $0xd8] sm:$0xff] %vm1315, %v1274
      %1344 = vst.msk [vmem:[#allocation3 + $0xe0] sm:$0xff] %vm1315, %v1276
      %1345 = vst.msk [vmem:[#allocation3 + $0xe8] sm:$0xff] %vm1315, %v1278
      %1346 = vst.msk [vmem:[#allocation3 + $0xf0] sm:$0xff] %vm1315, %v1280
      %1347 = vst.msk [vmem:[#allocation3 + $0xf8] sm:$0xff] %vm1315, %v1282
      %s1348 = scalar_lea.vmem [#allocation2], 48
      %v1349 = vld [vmem:[%s1348] sm:$0xff]
      %v1350 = vld [vmem:[%s1348 + $0x8] sm:$0xff]
      %v1351 = vld [vmem:[%s1348 + $0x18] sm:$0xff]
      %v1352 = vld [vmem:[%s1348 + $0x20] sm:$0xff]
      %v1353 = vld [vmem:[%s1348 + $0x30] sm:$0xff]
      %v1354 = vld [vmem:[%s1348 + $0x38] sm:$0xff]
      %v1355 = vld [vmem:[%s1348 + $0x48] sm:$0xff]
      %v1356 = vld [vmem:[%s1348 + $0x50] sm:$0xff]
      %v1357 = vld [vmem:[%s1348 + $0x60] sm:$0xff]
      %v1358 = vld [vmem:[%s1348 + $0x68] sm:$0xff]
      %v1359 = vld [vmem:[%s1348 + $0x78] sm:$0xff]
      %v1360 = vld [vmem:[%s1348 + $0x80] sm:$0xff]
      %v1361 = vld [vmem:[%s1348 + $0x90] sm:$0xff]
      %v1362 = vld [vmem:[%s1348 + $0x98] sm:$0xff]
      %v1363 = vld [vmem:[%s1348 + $0xa8] sm:$0xff]
      %v1364 = vld [vmem:[%s1348 + $0xb0] sm:$0xff]
      %v1365 = vld [vmem:[%s1348 + $0xc0] sm:$0xff]
      %v1366 = vld [vmem:[%s1348 + $0xc8] sm:$0xff]
      %v1367 = vld [vmem:[%s1348 + $0xd8] sm:$0xff]
      %v1368 = vld [vmem:[%s1348 + $0xe0] sm:$0xff]
      %v1369 = vld [vmem:[%s1348 + $0xf0] sm:$0xff]
      %v1370 = vld [vmem:[%s1348 + $0xf8] sm:$0xff]
      %v1371 = vld [vmem:[%s1348 + $0x108] sm:$0xff]
      %v1372 = vld [vmem:[%s1348 + $0x110] sm:$0xff]
      %v1373 = vld [vmem:[%s1348 + $0x120] sm:$0xff]
      %v1374 = vld [vmem:[%s1348 + $0x128] sm:$0xff]
      %v1375 = vld [vmem:[%s1348 + $0x138] sm:$0xff]
      %v1376 = vld [vmem:[%s1348 + $0x140] sm:$0xff]
      %v1377 = vld [vmem:[%s1348 + $0x150] sm:$0xff]
      %v1378 = vld [vmem:[%s1348 + $0x158] sm:$0xff]
      %v1379 = vld [vmem:[%s1348 + $0x168] sm:$0xff]
      %v1380 = vld [vmem:[%s1348 + $0x170] sm:$0xff]
      %1413 = vrot.lane.b32.xlu0 %v1349, 24
      %v1414 = vpop.permute.xlu0 %1413
      %1415 = vrot.lane.b32.xlu0 %v1350, 24
      %v1416 = vpop.permute.xlu0 %1415
      %1417 = vrot.lane.b32.xlu0 %v1351, 24
      %v1418 = vpop.permute.xlu0 %1417
      %1419 = vrot.lane.b32.xlu0 %v1352, 24
      %v1420 = vpop.permute.xlu0 %1419
      %1421 = vrot.lane.b32.xlu0 %v1353, 24
      %v1422 = vpop.permute.xlu0 %1421
      %1423 = vrot.lane.b32.xlu0 %v1354, 24
      %v1424 = vpop.permute.xlu0 %1423
      %1425 = vrot.lane.b32.xlu0 %v1355, 24
      %v1426 = vpop.permute.xlu0 %1425
      %1427 = vrot.lane.b32.xlu0 %v1356, 24
      %v1428 = vpop.permute.xlu0 %1427
      %1429 = vrot.lane.b32.xlu0 %v1357, 24
      %v1430 = vpop.permute.xlu0 %1429
      %1431 = vrot.lane.b32.xlu0 %v1358, 24
      %v1432 = vpop.permute.xlu0 %1431
      %1433 = vrot.lane.b32.xlu0 %v1359, 24
      %v1434 = vpop.permute.xlu0 %1433
      %1435 = vrot.lane.b32.xlu0 %v1360, 24
      %v1436 = vpop.permute.xlu0 %1435
      %1437 = vrot.lane.b32.xlu0 %v1361, 24
      %v1438 = vpop.permute.xlu0 %1437
      %1439 = vrot.lane.b32.xlu0 %v1362, 24
      %v1440 = vpop.permute.xlu0 %1439
      %1441 = vrot.lane.b32.xlu0 %v1363, 24
      %v1442 = vpop.permute.xlu0 %1441
      %1443 = vrot.lane.b32.xlu0 %v1364, 24
      %v1444 = vpop.permute.xlu0 %1443
      %1445 = vrot.lane.b32.xlu0 %v1365, 24
      %v1446 = vpop.permute.xlu0 %1445
      %1447 = vrot.lane.b32.xlu0 %v1366, 24
      %v1448 = vpop.permute.xlu0 %1447
      %1449 = vrot.lane.b32.xlu0 %v1367, 24
      %v1450 = vpop.permute.xlu0 %1449
      %1451 = vrot.lane.b32.xlu0 %v1368, 24
      %v1452 = vpop.permute.xlu0 %1451
      %1453 = vrot.lane.b32.xlu0 %v1369, 24
      %v1454 = vpop.permute.xlu0 %1453
      %1455 = vrot.lane.b32.xlu0 %v1370, 24
      %v1456 = vpop.permute.xlu0 %1455
      %1457 = vrot.lane.b32.xlu0 %v1371, 24
      %v1458 = vpop.permute.xlu0 %1457
      %1459 = vrot.lane.b32.xlu0 %v1372, 24
      %v1460 = vpop.permute.xlu0 %1459
      %1461 = vrot.lane.b32.xlu0 %v1373, 24
      %v1462 = vpop.permute.xlu0 %1461
      %1463 = vrot.lane.b32.xlu0 %v1374, 24
      %v1464 = vpop.permute.xlu0 %1463
      %1465 = vrot.lane.b32.xlu0 %v1375, 24
      %v1466 = vpop.permute.xlu0 %1465
      %1467 = vrot.lane.b32.xlu0 %v1376, 24
      %v1468 = vpop.permute.xlu0 %1467
      %1469 = vrot.lane.b32.xlu0 %v1377, 24
      %v1470 = vpop.permute.xlu0 %1469
      %1471 = vrot.lane.b32.xlu0 %v1378, 24
      %v1472 = vpop.permute.xlu0 %1471
      %1473 = vrot.lane.b32.xlu0 %v1379, 24
      %v1474 = vpop.permute.xlu0 %1473
      %1475 = vrot.lane.b32.xlu0 %v1380, 24
      %v1476 = vpop.permute.xlu0 %1475
      %vm1509 = vcmask 228544
      %1510 = vst.msk [vmem:[#allocation3] sm:$0xff] %vm1509, %v1414
      %1511 = vst.msk [vmem:[#allocation3 + $0x8] sm:$0xff] %vm1509, %v1416
      %1512 = vst.msk [vmem:[#allocation3 + $0x10] sm:$0xff] %vm1509, %v1418
      %1513 = vst.msk [vmem:[#allocation3 + $0x18] sm:$0xff] %vm1509, %v1420
      %1514 = vst.msk [vmem:[#allocation3 + $0x20] sm:$0xff] %vm1509, %v1422
      %1515 = vst.msk [vmem:[#allocation3 + $0x28] sm:$0xff] %vm1509, %v1424
      %1516 = vst.msk [vmem:[#allocation3 + $0x30] sm:$0xff] %vm1509, %v1426
      %1517 = vst.msk [vmem:[#allocation3 + $0x38] sm:$0xff] %vm1509, %v1428
      %1518 = vst.msk [vmem:[#allocation3 + $0x40] sm:$0xff] %vm1509, %v1430
      %1519 = vst.msk [vmem:[#allocation3 + $0x48] sm:$0xff] %vm1509, %v1432
      %1520 = vst.msk [vmem:[#allocation3 + $0x50] sm:$0xff] %vm1509, %v1434
      %1521 = vst.msk [vmem:[#allocation3 + $0x58] sm:$0xff] %vm1509, %v1436
      %1522 = vst.msk [vmem:[#allocation3 + $0x60] sm:$0xff] %vm1509, %v1438
      %1523 = vst.msk [vmem:[#allocation3 + $0x68] sm:$0xff] %vm1509, %v1440
      %1524 = vst.msk [vmem:[#allocation3 + $0x70] sm:$0xff] %vm1509, %v1442
      %1525 = vst.msk [vmem:[#allocation3 + $0x78] sm:$0xff] %vm1509, %v1444
      %1526 = vst.msk [vmem:[#allocation3 + $0x80] sm:$0xff] %vm1509, %v1446
      %1527 = vst.msk [vmem:[#allocation3 + $0x88] sm:$0xff] %vm1509, %v1448
      %1528 = vst.msk [vmem:[#allocation3 + $0x90] sm:$0xff] %vm1509, %v1450
      %1529 = vst.msk [vmem:[#allocation3 + $0x98] sm:$0xff] %vm1509, %v1452
      %1530 = vst.msk [vmem:[#allocation3 + $0xa0] sm:$0xff] %vm1509, %v1454
      %1531 = vst.msk [vmem:[#allocation3 + $0xa8] sm:$0xff] %vm1509, %v1456
      %1532 = vst.msk [vmem:[#allocation3 + $0xb0] sm:$0xff] %vm1509, %v1458
      %1533 = vst.msk [vmem:[#allocation3 + $0xb8] sm:$0xff] %vm1509, %v1460
      %1534 = vst.msk [vmem:[#allocation3 + $0xc0] sm:$0xff] %vm1509, %v1462
      %1535 = vst.msk [vmem:[#allocation3 + $0xc8] sm:$0xff] %vm1509, %v1464
      %1536 = vst.msk [vmem:[#allocation3 + $0xd0] sm:$0xff] %vm1509, %v1466
      %1537 = vst.msk [vmem:[#allocation3 + $0xd8] sm:$0xff] %vm1509, %v1468
      %1538 = vst.msk [vmem:[#allocation3 + $0xe0] sm:$0xff] %vm1509, %v1470
      %1539 = vst.msk [vmem:[#allocation3 + $0xe8] sm:$0xff] %vm1509, %v1472
      %1540 = vst.msk [vmem:[#allocation3 + $0xf0] sm:$0xff] %vm1509, %v1474
      %1541 = vst.msk [vmem:[#allocation3 + $0xf8] sm:$0xff] %vm1509, %v1476
      %v1542 = vld [vmem:[%s1348 + $0x1] sm:$0xff]
      %v1543 = vld [vmem:[%s1348 + $0x9] sm:$0xff]
      %v1544 = vld [vmem:[%s1348 + $0x19] sm:$0xff]
      %v1545 = vld [vmem:[%s1348 + $0x21] sm:$0xff]
      %v1546 = vld [vmem:[%s1348 + $0x31] sm:$0xff]
      %v1547 = vld [vmem:[%s1348 + $0x39] sm:$0xff]
      %v1548 = vld [vmem:[%s1348 + $0x49] sm:$0xff]
      %v1549 = vld [vmem:[%s1348 + $0x51] sm:$0xff]
      %v1550 = vld [vmem:[%s1348 + $0x61] sm:$0xff]
      %v1551 = vld [vmem:[%s1348 + $0x69] sm:$0xff]
      %v1552 = vld [vmem:[%s1348 + $0x79] sm:$0xff]
      %v1553 = vld [vmem:[%s1348 + $0x81] sm:$0xff]
      %v1554 = vld [vmem:[%s1348 + $0x91] sm:$0xff]
      %v1555 = vld [vmem:[%s1348 + $0x99] sm:$0xff]
      %v1556 = vld [vmem:[%s1348 + $0xa9] sm:$0xff]
      %v1557 = vld [vmem:[%s1348 + $0xb1] sm:$0xff]
      %v1558 = vld [vmem:[%s1348 + $0xc1] sm:$0xff]
      %v1559 = vld [vmem:[%s1348 + $0xc9] sm:$0xff]
      %v1560 = vld [vmem:[%s1348 + $0xd9] sm:$0xff]
      %v1561 = vld [vmem:[%s1348 + $0xe1] sm:$0xff]
      %v1562 = vld [vmem:[%s1348 + $0xf1] sm:$0xff]
      %v1563 = vld [vmem:[%s1348 + $0xf9] sm:$0xff]
      %v1564 = vld [vmem:[%s1348 + $0x109] sm:$0xff]
      %v1565 = vld [vmem:[%s1348 + $0x111] sm:$0xff]
      %v1566 = vld [vmem:[%s1348 + $0x121] sm:$0xff]
      %v1567 = vld [vmem:[%s1348 + $0x129] sm:$0xff]
      %v1568 = vld [vmem:[%s1348 + $0x139] sm:$0xff]
      %v1569 = vld [vmem:[%s1348 + $0x141] sm:$0xff]
      %v1570 = vld [vmem:[%s1348 + $0x151] sm:$0xff]
      %v1571 = vld [vmem:[%s1348 + $0x159] sm:$0xff]
      %v1572 = vld [vmem:[%s1348 + $0x169] sm:$0xff]
      %v1573 = vld [vmem:[%s1348 + $0x171] sm:$0xff]
      %1606 = vrot.lane.b32.xlu0 %v1542, 28
      %v1607 = vpop.permute.xlu0 %1606
      %1608 = vrot.lane.b32.xlu0 %v1543, 28
      %v1609 = vpop.permute.xlu0 %1608
      %1610 = vrot.lane.b32.xlu0 %v1544, 28
      %v1611 = vpop.permute.xlu0 %1610
      %1612 = vrot.lane.b32.xlu0 %v1545, 28
      %v1613 = vpop.permute.xlu0 %1612
      %1614 = vrot.lane.b32.xlu0 %v1546, 28
      %v1615 = vpop.permute.xlu0 %1614
      %1616 = vrot.lane.b32.xlu0 %v1547, 28
      %v1617 = vpop.permute.xlu0 %1616
      %1618 = vrot.lane.b32.xlu0 %v1548, 28
      %v1619 = vpop.permute.xlu0 %1618
      %1620 = vrot.lane.b32.xlu0 %v1549, 28
      %v1621 = vpop.permute.xlu0 %1620
      %1622 = vrot.lane.b32.xlu0 %v1550, 28
      %v1623 = vpop.permute.xlu0 %1622
      %1624 = vrot.lane.b32.xlu0 %v1551, 28
      %v1625 = vpop.permute.xlu0 %1624
      %1626 = vrot.lane.b32.xlu0 %v1552, 28
      %v1627 = vpop.permute.xlu0 %1626
      %1628 = vrot.lane.b32.xlu0 %v1553, 28
      %v1629 = vpop.permute.xlu0 %1628
      %1630 = vrot.lane.b32.xlu0 %v1554, 28
      %v1631 = vpop.permute.xlu0 %1630
      %1632 = vrot.lane.b32.xlu0 %v1555, 28
      %v1633 = vpop.permute.xlu0 %1632
      %1634 = vrot.lane.b32.xlu0 %v1556, 28
      %v1635 = vpop.permute.xlu0 %1634
      %1636 = vrot.lane.b32.xlu0 %v1557, 28
      %v1637 = vpop.permute.xlu0 %1636
      %1638 = vrot.lane.b32.xlu0 %v1558, 28
      %v1639 = vpop.permute.xlu0 %1638
      %1640 = vrot.lane.b32.xlu0 %v1559, 28
      %v1641 = vpop.permute.xlu0 %1640
      %1642 = vrot.lane.b32.xlu0 %v1560, 28
      %v1643 = vpop.permute.xlu0 %1642
      %1644 = vrot.lane.b32.xlu0 %v1561, 28
      %v1645 = vpop.permute.xlu0 %1644
      %1646 = vrot.lane.b32.xlu0 %v1562, 28
      %v1647 = vpop.permute.xlu0 %1646
      %1648 = vrot.lane.b32.xlu0 %v1563, 28
      %v1649 = vpop.permute.xlu0 %1648
      %1650 = vrot.lane.b32.xlu0 %v1564, 28
      %v1651 = vpop.permute.xlu0 %1650
      %1652 = vrot.lane.b32.xlu0 %v1565, 28
      %v1653 = vpop.permute.xlu0 %1652
      %1654 = vrot.lane.b32.xlu0 %v1566, 28
      %v1655 = vpop.permute.xlu0 %1654
      %1656 = vrot.lane.b32.xlu0 %v1567, 28
      %v1657 = vpop.permute.xlu0 %1656
      %1658 = vrot.lane.b32.xlu0 %v1568, 28
      %v1659 = vpop.permute.xlu0 %1658
      %1660 = vrot.lane.b32.xlu0 %v1569, 28
      %v1661 = vpop.permute.xlu0 %1660
      %1662 = vrot.lane.b32.xlu0 %v1570, 28
      %v1663 = vpop.permute.xlu0 %1662
      %1664 = vrot.lane.b32.xlu0 %v1571, 28
      %v1665 = vpop.permute.xlu0 %1664
      %1666 = vrot.lane.b32.xlu0 %v1572, 28
      %v1667 = vpop.permute.xlu0 %1666
      %1668 = vrot.lane.b32.xlu0 %v1573, 28
      %v1669 = vpop.permute.xlu0 %1668
      %vm1702 = vcmask 261344
      %1703 = vst.msk [vmem:[#allocation3] sm:$0xff] %vm1702, %v1607
      %1704 = vst.msk [vmem:[#allocation3 + $0x8] sm:$0xff] %vm1702, %v1609
      %1705 = vst.msk [vmem:[#allocation3 + $0x10] sm:$0xff] %vm1702, %v1611
      %1706 = vst.msk [vmem:[#allocation3 + $0x18] sm:$0xff] %vm1702, %v1613
      %1707 = vst.msk [vmem:[#allocation3 + $0x20] sm:$0xff] %vm1702, %v1615
      %1708 = vst.msk [vmem:[#allocation3 + $0x28] sm:$0xff] %vm1702, %v1617
      %1709 = vst.msk [vmem:[#allocation3 + $0x30] sm:$0xff] %vm1702, %v1619
      %1710 = vst.msk [vmem:[#allocation3 + $0x38] sm:$0xff] %vm1702, %v1621
      %1711 = vst.msk [vmem:[#allocation3 + $0x40] sm:$0xff] %vm1702, %v1623
      %1712 = vst.msk [vmem:[#allocation3 + $0x48] sm:$0xff] %vm1702, %v1625
      %1713 = vst.msk [vmem:[#allocation3 + $0x50] sm:$0xff] %vm1702, %v1627
      %1714 = vst.msk [vmem:[#allocation3 + $0x58] sm:$0xff] %vm1702, %v1629
      %1715 = vst.msk [vmem:[#allocation3 + $0x60] sm:$0xff] %vm1702, %v1631
      %1716 = vst.msk [vmem:[#allocation3 + $0x68] sm:$0xff] %vm1702, %v1633
      %1717 = vst.msk [vmem:[#allocation3 + $0x70] sm:$0xff] %vm1702, %v1635
      %1718 = vst.msk [vmem:[#allocation3 + $0x78] sm:$0xff] %vm1702, %v1637
      %1719 = vst.msk [vmem:[#allocation3 + $0x80] sm:$0xff] %vm1702, %v1639
      %1720 = vst.msk [vmem:[#allocation3 + $0x88] sm:$0xff] %vm1702, %v1641
      %1721 = vst.msk [vmem:[#allocation3 + $0x90] sm:$0xff] %vm1702, %v1643
      %1722 = vst.msk [vmem:[#allocation3 + $0x98] sm:$0xff] %vm1702, %v1645
      %1723 = vst.msk [vmem:[#allocation3 + $0xa0] sm:$0xff] %vm1702, %v1647
      %1724 = vst.msk [vmem:[#allocation3 + $0xa8] sm:$0xff] %vm1702, %v1649
      %1725 = vst.msk [vmem:[#allocation3 + $0xb0] sm:$0xff] %vm1702, %v1651
      %1726 = vst.msk [vmem:[#allocation3 + $0xb8] sm:$0xff] %vm1702, %v1653
      %1727 = vst.msk [vmem:[#allocation3 + $0xc0] sm:$0xff] %vm1702, %v1655
      %1728 = vst.msk [vmem:[#allocation3 + $0xc8] sm:$0xff] %vm1702, %v1657
      %1729 = vst.msk [vmem:[#allocation3 + $0xd0] sm:$0xff] %vm1702, %v1659
      %1730 = vst.msk [vmem:[#allocation3 + $0xd8] sm:$0xff] %vm1702, %v1661
      %1731 = vst.msk [vmem:[#allocation3 + $0xe0] sm:$0xff] %vm1702, %v1663
      %1732 = vst.msk [vmem:[#allocation3 + $0xe8] sm:$0xff] %vm1702, %v1665
      %1733 = vst.msk [vmem:[#allocation3 + $0xf0] sm:$0xff] %vm1702, %v1667
      %1734 = vst.msk [vmem:[#allocation3 + $0xf8] sm:$0xff] %vm1702, %v1669
      %v1735 = vld [vmem:[%s1348 + $0x2] sm:$0xff]
      %v1736 = vld [vmem:[%s1348 + $0xa] sm:$0xff]
      %v1737 = vld [vmem:[%s1348 + $0x1a] sm:$0xff]
      %v1738 = vld [vmem:[%s1348 + $0x22] sm:$0xff]
      %v1739 = vld [vmem:[%s1348 + $0x32] sm:$0xff]
      %v1740 = vld [vmem:[%s1348 + $0x3a] sm:$0xff]
      %v1741 = vld [vmem:[%s1348 + $0x4a] sm:$0xff]
      %v1742 = vld [vmem:[%s1348 + $0x52] sm:$0xff]
      %v1743 = vld [vmem:[%s1348 + $0x62] sm:$0xff]
      %v1744 = vld [vmem:[%s1348 + $0x6a] sm:$0xff]
      %v1745 = vld [vmem:[%s1348 + $0x7a] sm:$0xff]
      %v1746 = vld [vmem:[%s1348 + $0x82] sm:$0xff]
      %v1747 = vld [vmem:[%s1348 + $0x92] sm:$0xff]
      %v1748 = vld [vmem:[%s1348 + $0x9a] sm:$0xff]
      %v1749 = vld [vmem:[%s1348 + $0xaa] sm:$0xff]
      %v1750 = vld [vmem:[%s1348 + $0xb2] sm:$0xff]
      %v1751 = vld [vmem:[%s1348 + $0xc2] sm:$0xff]
      %v1752 = vld [vmem:[%s1348 + $0xca] sm:$0xff]
      %v1753 = vld [vmem:[%s1348 + $0xda] sm:$0xff]
      %v1754 = vld [vmem:[%s1348 + $0xe2] sm:$0xff]
      %v1755 = vld [vmem:[%s1348 + $0xf2] sm:$0xff]
      %v1756 = vld [vmem:[%s1348 + $0xfa] sm:$0xff]
      %v1757 = vld [vmem:[%s1348 + $0x10a] sm:$0xff]
      %v1758 = vld [vmem:[%s1348 + $0x112] sm:$0xff]
      %v1759 = vld [vmem:[%s1348 + $0x122] sm:$0xff]
      %v1760 = vld [vmem:[%s1348 + $0x12a] sm:$0xff]
      %v1761 = vld [vmem:[%s1348 + $0x13a] sm:$0xff]
      %v1762 = vld [vmem:[%s1348 + $0x142] sm:$0xff]
      %v1763 = vld [vmem:[%s1348 + $0x152] sm:$0xff]
      %v1764 = vld [vmem:[%s1348 + $0x15a] sm:$0xff]
      %v1765 = vld [vmem:[%s1348 + $0x16a] sm:$0xff]
      %v1766 = vld [vmem:[%s1348 + $0x172] sm:$0xff]
      %1799 = vrot.lane.b32.xlu0 %v1735, 32
      %v1800 = vpop.permute.xlu0 %1799
      %1801 = vrot.lane.b32.xlu0 %v1736, 32
      %v1802 = vpop.permute.xlu0 %1801
      %1803 = vrot.lane.b32.xlu0 %v1737, 32
      %v1804 = vpop.permute.xlu0 %1803
      %1805 = vrot.lane.b32.xlu0 %v1738, 32
      %v1806 = vpop.permute.xlu0 %1805
      %1807 = vrot.lane.b32.xlu0 %v1739, 32
      %v1808 = vpop.permute.xlu0 %1807
      %1809 = vrot.lane.b32.xlu0 %v1740, 32
      %v1810 = vpop.permute.xlu0 %1809
      %1811 = vrot.lane.b32.xlu0 %v1741, 32
      %v1812 = vpop.permute.xlu0 %1811
      %1813 = vrot.lane.b32.xlu0 %v1742, 32
      %v1814 = vpop.permute.xlu0 %1813
      %1815 = vrot.lane.b32.xlu0 %v1743, 32
      %v1816 = vpop.permute.xlu0 %1815
      %1817 = vrot.lane.b32.xlu0 %v1744, 32
      %v1818 = vpop.permute.xlu0 %1817
      %1819 = vrot.lane.b32.xlu0 %v1745, 32
      %v1820 = vpop.permute.xlu0 %1819
      %1821 = vrot.lane.b32.xlu0 %v1746, 32
      %v1822 = vpop.permute.xlu0 %1821
      %1823 = vrot.lane.b32.xlu0 %v1747, 32
      %v1824 = vpop.permute.xlu0 %1823
      %1825 = vrot.lane.b32.xlu0 %v1748, 32
      %v1826 = vpop.permute.xlu0 %1825
      %1827 = vrot.lane.b32.xlu0 %v1749, 32
      %v1828 = vpop.permute.xlu0 %1827
      %1829 = vrot.lane.b32.xlu0 %v1750, 32
      %v1830 = vpop.permute.xlu0 %1829
      %1831 = vrot.lane.b32.xlu0 %v1751, 32
      %v1832 = vpop.permute.xlu0 %1831
      %1833 = vrot.lane.b32.xlu0 %v1752, 32
      %v1834 = vpop.permute.xlu0 %1833
      %1835 = vrot.lane.b32.xlu0 %v1753, 32
      %v1836 = vpop.permute.xlu0 %1835
      %1837 = vrot.lane.b32.xlu0 %v1754, 32
      %v1838 = vpop.permute.xlu0 %1837
      %1839 = vrot.lane.b32.xlu0 %v1755, 32
      %v1840 = vpop.permute.xlu0 %1839
      %1841 = vrot.lane.b32.xlu0 %v1756, 32
      %v1842 = vpop.permute.xlu0 %1841
      %1843 = vrot.lane.b32.xlu0 %v1757, 32
      %v1844 = vpop.permute.xlu0 %1843
      %1845 = vrot.lane.b32.xlu0 %v1758, 32
      %v1846 = vpop.permute.xlu0 %1845
      %1847 = vrot.lane.b32.xlu0 %v1759, 32
      %v1848 = vpop.permute.xlu0 %1847
      %1849 = vrot.lane.b32.xlu0 %v1760, 32
      %v1850 = vpop.permute.xlu0 %1849
      %1851 = vrot.lane.b32.xlu0 %v1761, 32
      %v1852 = vpop.permute.xlu0 %1851
      %1853 = vrot.lane.b32.xlu0 %v1762, 32
      %v1854 = vpop.permute.xlu0 %1853
      %1855 = vrot.lane.b32.xlu0 %v1763, 32
      %v1856 = vpop.permute.xlu0 %1855
      %1857 = vrot.lane.b32.xlu0 %v1764, 32
      %v1858 = vpop.permute.xlu0 %1857
      %1859 = vrot.lane.b32.xlu0 %v1765, 32
      %v1860 = vpop.permute.xlu0 %1859
      %1861 = vrot.lane.b32.xlu0 %v1766, 32
      %v1862 = vpop.permute.xlu0 %1861
      %vm1895 = vcmask 294144
      %1896 = vst.msk [vmem:[#allocation3] sm:$0xff] %vm1895, %v1800
      %1897 = vst.msk [vmem:[#allocation3 + $0x8] sm:$0xff] %vm1895, %v1802
      %1898 = vst.msk [vmem:[#allocation3 + $0x10] sm:$0xff] %vm1895, %v1804
      %1899 = vst.msk [vmem:[#allocation3 + $0x18] sm:$0xff] %vm1895, %v1806
      %1900 = vst.msk [vmem:[#allocation3 + $0x20] sm:$0xff] %vm1895, %v1808
      %1901 = vst.msk [vmem:[#allocation3 + $0x28] sm:$0xff] %vm1895, %v1810
      %1902 = vst.msk [vmem:[#allocation3 + $0x30] sm:$0xff] %vm1895, %v1812
      %1903 = vst.msk [vmem:[#allocation3 + $0x38] sm:$0xff] %vm1895, %v1814
      %1904 = vst.msk [vmem:[#allocation3 + $0x40] sm:$0xff] %vm1895, %v1816
      %1905 = vst.msk [vmem:[#allocation3 + $0x48] sm:$0xff] %vm1895, %v1818
      %1906 = vst.msk [vmem:[#allocation3 + $0x50] sm:$0xff] %vm1895, %v1820
      %1907 = vst.msk [vmem:[#allocation3 + $0x58] sm:$0xff] %vm1895, %v1822
      %1908 = vst.msk [vmem:[#allocation3 + $0x60] sm:$0xff] %vm1895, %v1824
      %1909 = vst.msk [vmem:[#allocation3 + $0x68] sm:$0xff] %vm1895, %v1826
      %1910 = vst.msk [vmem:[#allocation3 + $0x70] sm:$0xff] %vm1895, %v1828
      %1911 = vst.msk [vmem:[#allocation3 + $0x78] sm:$0xff] %vm1895, %v1830
      %1912 = vst.msk [vmem:[#allocation3 + $0x80] sm:$0xff] %vm1895, %v1832
      %1913 = vst.msk [vmem:[#allocation3 + $0x88] sm:$0xff] %vm1895, %v1834
      %1914 = vst.msk [vmem:[#allocation3 + $0x90] sm:$0xff] %vm1895, %v1836
      %1915 = vst.msk [vmem:[#allocation3 + $0x98] sm:$0xff] %vm1895, %v1838
      %1916 = vst.msk [vmem:[#allocation3 + $0xa0] sm:$0xff] %vm1895, %v1840
      %1917 = vst.msk [vmem:[#allocation3 + $0xa8] sm:$0xff] %vm1895, %v1842
      %1918 = vst.msk [vmem:[#allocation3 + $0xb0] sm:$0xff] %vm1895, %v1844
      %1919 = vst.msk [vmem:[#allocation3 + $0xb8] sm:$0xff] %vm1895, %v1846
      %1920 = vst.msk [vmem:[#allocation3 + $0xc0] sm:$0xff] %vm1895, %v1848
      %1921 = vst.msk [vmem:[#allocation3 + $0xc8] sm:$0xff] %vm1895, %v1850
      %1922 = vst.msk [vmem:[#allocation3 + $0xd0] sm:$0xff] %vm1895, %v1852
      %1923 = vst.msk [vmem:[#allocation3 + $0xd8] sm:$0xff] %vm1895, %v1854
      %1924 = vst.msk [vmem:[#allocation3 + $0xe0] sm:$0xff] %vm1895, %v1856
      %1925 = vst.msk [vmem:[#allocation3 + $0xe8] sm:$0xff] %vm1895, %v1858
      %1926 = vst.msk [vmem:[#allocation3 + $0xf0] sm:$0xff] %vm1895, %v1860
      %1927 = vst.msk [vmem:[#allocation3 + $0xf8] sm:$0xff] %vm1895, %v1862
      %v1928 = vld [vmem:[#allocation3] sm:$0xff]
      %v1929 = vld [vmem:[#allocation3 + $0x8] sm:$0xff]
      %v1930 = vld [vmem:[#allocation3 + $0x10] sm:$0xff]
      %v1931 = vld [vmem:[#allocation3 + $0x18] sm:$0xff]
      %v1932 = vld [vmem:[#allocation3 + $0x20] sm:$0xff]
      %v1933 = vld [vmem:[#allocation3 + $0x28] sm:$0xff]
      %v1934 = vld [vmem:[#allocation3 + $0x30] sm:$0xff]
      %v1935 = vld [vmem:[#allocation3 + $0x38] sm:$0xff]
      %v1936 = vld [vmem:[#allocation3 + $0x40] sm:$0xff]
      %v1937 = vld [vmem:[#allocation3 + $0x48] sm:$0xff]
      %v1938 = vld [vmem:[#allocation3 + $0x50] sm:$0xff]
      %v1939 = vld [vmem:[#allocation3 + $0x58] sm:$0xff]
      %v1940 = vld [vmem:[#allocation3 + $0x60] sm:$0xff]
      %v1941 = vld [vmem:[#allocation3 + $0x68] sm:$0xff]
      %v1942 = vld [vmem:[#allocation3 + $0x70] sm:$0xff]
      %v1943 = vld [vmem:[#allocation3 + $0x78] sm:$0xff]
      %v1944 = vld [vmem:[#allocation3 + $0x80] sm:$0xff]
      %v1945 = vld [vmem:[#allocation3 + $0x88] sm:$0xff]
      %v1946 = vld [vmem:[#allocation3 + $0x90] sm:$0xff]
      %v1947 = vld [vmem:[#allocation3 + $0x98] sm:$0xff]
      %v1948 = vld [vmem:[#allocation3 + $0xa0] sm:$0xff]
      %v1949 = vld [vmem:[#allocation3 + $0xa8] sm:$0xff]
      %v1950 = vld [vmem:[#allocation3 + $0xb0] sm:$0xff]
      %v1951 = vld [vmem:[#allocation3 + $0xb8] sm:$0xff]
      %v1952 = vld [vmem:[#allocation3 + $0xc0] sm:$0xff]
      %v1953 = vld [vmem:[#allocation3 + $0xc8] sm:$0xff]
      %v1954 = vld [vmem:[#allocation3 + $0xd0] sm:$0xff]
      %v1955 = vld [vmem:[#allocation3 + $0xd8] sm:$0xff]
      %v1956 = vld [vmem:[#allocation3 + $0xe0] sm:$0xff]
      %v1957 = vld [vmem:[#allocation3 + $0xe8] sm:$0xff]
      %v1958 = vld [vmem:[#allocation3 + $0xf0] sm:$0xff]
      %v1959 = vld [vmem:[#allocation3 + $0xf8] sm:$0xff]
      %v1960 = vld [vmem:[%s1] sm:$0xff]
      %v1961 = vld [vmem:[%s1 + $0x8] sm:$0xff]
      %v1962 = vld [vmem:[%s1 + $0x10] sm:$0xff]
      %v1963 = vld [vmem:[%s1 + $0x18] sm:$0xff]
      %v1964 = vld [vmem:[%s1 + $0x20] sm:$0xf]
      %vm1965 = vcmask 293888
      %v1967 = vsel %vm1965, %v1928, 0
      %v1970 = vsel %vm1965, %v1929, 0
      %v1973 = vsel %vm1965, %v1930, 0
      %v1976 = vsel %vm1965, %v1931, 0
      %v1979 = vsel %vm1965, %v1932, 0
      %v1982 = vsel %vm1965, %v1933, 0
      %v1985 = vsel %vm1965, %v1934, 0
      %v1988 = vsel %vm1965, %v1935, 0
      %v1991 = vsel %vm1965, %v1936, 0
      %v1994 = vsel %vm1965, %v1937, 0
      %v1997 = vsel %vm1965, %v1938, 0
      %v2000 = vsel %vm1965, %v1939, 0
      %v2003 = vsel %vm1965, %v1940, 0
      %v2006 = vsel %vm1965, %v1941, 0
      %v2009 = vsel %vm1965, %v1942, 0
      %v2012 = vsel %vm1965, %v1943, 0
      %v2015 = vsel %vm1965, %v1944, 0
      %v2018 = vsel %vm1965, %v1945, 0
      %v2021 = vsel %vm1965, %v1946, 0
      %v2024 = vsel %vm1965, %v1947, 0
      %v2027 = vsel %vm1965, %v1948, 0
      %v2030 = vsel %vm1965, %v1949, 0
      %v2033 = vsel %vm1965, %v1950, 0
      %v2036 = vsel %vm1965, %v1951, 0
      %v2039 = vsel %vm1965, %v1952, 0
      %v2042 = vsel %vm1965, %v1953, 0
      %v2045 = vsel %vm1965, %v1954, 0
      %v2048 = vsel %vm1965, %v1955, 0
      %v2051 = vsel %vm1965, %v1956, 0
      %v2054 = vsel %vm1965, %v1957, 0
      %v2057 = vsel %vm1965, %v1958, 0
      %v2060 = vsel %vm1965, %v1959, 0
      %vm2062 = vcmask 1043456
      %v2064 = vsel %vm2062, %v1964, 0
      %2066 = vmatprep.subr.mxu0 0.0
      %2067 = vmatpush1.msra.mxu0 %v1960
      %2068 = vmatprep.subr.mxu0 0.0
      %2069 = vmatpush1.msra.mxu0 %v1961
      %2070 = vmatprep.subr.mxu0 0.0
      %2071 = vmatpush1.msra.mxu0 %v1962
      %2072 = vmatprep.subr.mxu0 0.0
      %2073 = vmatpush1.msra.mxu0 %v1963
      %2074 = vmatprep.subr.mxu0 0.0
      %2075 = vmatpush1.msra.mxu0 %v2064
      %2076 = vmatprep.subr.mxu0 0.0
      %2077 = vmatpush1.msra.mxu0 0.0
      %2078 = vmatprep.subr.mxu0 0.0
      %2079 = vmatpush1.msra.mxu0 0.0
      %2080 = vmatprep.subr.mxu0 0.0
      %2081 = vmatpush1.msra.mxu0 0.0
      %2082 = vmatprep.subr.mxu0 0.0
      %2083 = vmatpush1.msra.mxu0 0.0
      %2084 = vmatprep.subr.mxu0 0.0
      %2085 = vmatpush1.msra.mxu0 0.0
      %2086 = vmatprep.subr.mxu0 0.0
      %2087 = vmatpush1.msra.mxu0 0.0
      %2088 = vmatprep.subr.mxu0 0.0
      %2089 = vmatpush1.msra.mxu0 0.0
      %2090 = vmatprep.subr.mxu0 0.0
      %2091 = vmatpush1.msra.mxu0 0.0
      %2092 = vmatprep.subr.mxu0 0.0
      %2093 = vmatpush1.msra.mxu0 0.0
      %2094 = vmatprep.subr.mxu0 0.0
      %2095 = vmatpush1.msra.mxu0 0.0
      %2096 = vmatprep.subr.mxu0 0.0
      %2097 = vmatpush1.msra.mxu0 0.0
      %2098 = vmatprep.subr.mxu0 0.0
      %2099 = vmatpush1.msra.mxu0 0.0
      %2100 = vmatprep.subr.mxu0 0.0
      %2101 = vmatpush1.msra.mxu0 0.0
      %2102 = vmatprep.subr.mxu0 0.0
      %2103 = vmatpush1.msra.mxu0 0.0
      %2104 = vmatprep.subr.mxu0 0.0
      %2105 = vmatpush1.msra.mxu0 0.0
      %2106 = vmatprep.subr.mxu0 0.0
      %2107 = vmatpush1.msra.mxu0 0.0
      %2108 = vmatprep.subr.mxu0 0.0
      %2109 = vmatpush1.msra.mxu0 0.0
      %2110 = vmatprep.subr.mxu0 0.0
      %2111 = vmatpush1.msra.mxu0 0.0
      %2112 = vmatprep.subr.mxu0 0.0
      %2113 = vmatpush1.msra.mxu0 0.0
      %2114 = vmatprep.subr.mxu0 0.0
      %2115 = vmatpush1.msra.mxu0 0.0
      %2116 = vmatprep.subr.mxu0 0.0
      %2117 = vmatpush1.msra.mxu0 0.0
      %2118 = vmatprep.subr.mxu0 0.0
      %2119 = vmatpush1.msra.mxu0 0.0
      %2120 = vmatprep.subr.mxu0 0.0
      %2121 = vmatpush1.msra.mxu0 0.0
      %2122 = vmatprep.subr.mxu0 0.0
      %2123 = vmatpush1.msra.mxu0 0.0
      %2124 = vmatprep.subr.mxu0 0.0
      %2125 = vmatpush1.msra.mxu0 0.0
      %2126 = vmatprep.subr.mxu0 0.0
      %2127 = vmatpush1.msra.mxu0 0.0
      %2128 = vmatprep.subr.mxu0 0.0
      %2129 = vmatpush1.msra.mxu0 0.0
      %2130 = vmatprep.mubr.f32.mxu0 0.0
      %2131 = vmatmul.mubr.f32.gmra.mrb[0].mxu0 %v1967
      %v2132 = vpop.f32.mrb[0].mxu0
      %v2133 = vadd.f32 0.0, %v2132
      %v2134 = vpop.f32.mrb[0].mxu0
      %2135 = vmatprep.mubr.f32.mxu0 0.0
      %2136 = vmatmul.mubr.f32.gmra.mrb[0].mxu0 %v1970
      %v2137 = vpop.f32.mrb[0].mxu0
      %v2138 = vadd.f32 0.0, %v2137
      %v2139 = vpop.f32.mrb[0].mxu0
      %2140 = vmatprep.mubr.f32.mxu0 0.0
      %2141 = vmatmul.mubr.f32.gmra.mrb[0].mxu0 %v1973
      %v2142 = vpop.f32.mrb[0].mxu0
      %v2143 = vadd.f32 0.0, %v2142
      %v2144 = vpop.f32.mrb[0].mxu0
      %2145 = vmatprep.mubr.f32.mxu0 0.0
      %2146 = vmatmul.mubr.f32.gmra.mrb[0].mxu0 %v1976
      %v2147 = vpop.f32.mrb[0].mxu0
      %v2148 = vadd.f32 0.0, %v2147
      %v2149 = vpop.f32.mrb[0].mxu0
      %2150 = vmatprep.mubr.f32.mxu0 0.0
      %2151 = vmatmul.mubr.f32.gmra.mrb[0].mxu0 %v1979
      %v2152 = vpop.f32.mrb[0].mxu0
      %v2153 = vadd.f32 0.0, %v2152
      %v2154 = vpop.f32.mrb[0].mxu0
      %2155 = vmatprep.mubr.f32.mxu0 0.0
      %2156 = vmatmul.mubr.f32.gmra.mrb[0].mxu0 %v1982
      %v2157 = vpop.f32.mrb[0].mxu0
      %v2158 = vadd.f32 0.0, %v2157
      %v2159 = vpop.f32.mrb[0].mxu0
      %2160 = vmatprep.mubr.f32.mxu0 0.0
      %2161 = vmatmul.mubr.f32.gmra.mrb[0].mxu0 %v1985
      %v2162 = vpop.f32.mrb[0].mxu0
      %v2163 = vadd.f32 0.0, %v2162
      %v2164 = vpop.f32.mrb[0].mxu0
      %2165 = vmatprep.mubr.f32.mxu0 0.0
      %2166 = vmatmul.mubr.f32.gmra.mrb[0].mxu0 %v1988
      %v2167 = vpop.f32.mrb[0].mxu0
      %v2168 = vadd.f32 0.0, %v2167
      %v2169 = vpop.f32.mrb[0].mxu0
      %2170 = vmatprep.mubr.f32.mxu0 0.0
      %2171 = vmatmul.mubr.f32.gmra.mrb[0].mxu0 %v1991
      %v2172 = vpop.f32.mrb[0].mxu0
      %v2173 = vadd.f32 0.0, %v2172
      %v2174 = vpop.f32.mrb[0].mxu0
      %2175 = vmatprep.mubr.f32.mxu0 0.0
      %2176 = vmatmul.mubr.f32.gmra.mrb[0].mxu0 %v1994
      %v2177 = vpop.f32.mrb[0].mxu0
      %v2178 = vadd.f32 0.0, %v2177
      %v2179 = vpop.f32.mrb[0].mxu0
      %2180 = vmatprep.mubr.f32.mxu0 0.0
      %2181 = vmatmul.mubr.f32.gmra.mrb[0].mxu0 %v1997
      %v2182 = vpop.f32.mrb[0].mxu0
      %v2183 = vadd.f32 0.0, %v2182
      %v2184 = vpop.f32.mrb[0].mxu0
      %2185 = vmatprep.mubr.f32.mxu0 0.0
      %2186 = vmatmul.mubr.f32.gmra.mrb[0].mxu0 %v2000
      %v2187 = vpop.f32.mrb[0].mxu0
      %v2188 = vadd.f32 0.0, %v2187
      %v2189 = vpop.f32.mrb[0].mxu0
      %2190 = vmatprep.mubr.f32.mxu0 0.0
      %2191 = vmatmul.mubr.f32.gmra.mrb[0].mxu0 %v2003
      %v2192 = vpop.f32.mrb[0].mxu0
      %v2193 = vadd.f32 0.0, %v2192
      %v2194 = vpop.f32.mrb[0].mxu0
      %2195 = vmatprep.mubr.f32.mxu0 0.0
      %2196 = vmatmul.mubr.f32.gmra.mrb[0].mxu0 %v2006
      %v2197 = vpop.f32.mrb[0].mxu0
      %v2198 = vadd.f32 0.0, %v2197
      %v2199 = vpop.f32.mrb[0].mxu0
      %2200 = vmatprep.mubr.f32.mxu0 0.0
      %2201 = vmatmul.mubr.f32.gmra.mrb[0].mxu0 %v2009
      %v2202 = vpop.f32.mrb[0].mxu0
      %v2203 = vadd.f32 0.0, %v2202
      %v2204 = vpop.f32.mrb[0].mxu0
      %2205 = vmatprep.mubr.f32.mxu0 0.0
      %2206 = vmatmul.mubr.f32.gmra.mrb[0].mxu0 %v2012
      %v2207 = vpop.f32.mrb[0].mxu0
      %v2208 = vadd.f32 0.0, %v2207
      %v2209 = vpop.f32.mrb[0].mxu0
      %2210 = vmatprep.mubr.f32.mxu0 0.0
      %2211 = vmatmul.mubr.f32.gmra.mrb[0].mxu0 %v2015
      %v2212 = vpop.f32.mrb[0].mxu0
      %v2213 = vadd.f32 0.0, %v2212
      %v2214 = vpop.f32.mrb[0].mxu0
      %2215 = vmatprep.mubr.f32.mxu0 0.0
      %2216 = vmatmul.mubr.f32.gmra.mrb[0].mxu0 %v2018
      %v2217 = vpop.f32.mrb[0].mxu0
      %v2218 = vadd.f32 0.0, %v2217
      %v2219 = vpop.f32.mrb[0].mxu0
      %2220 = vmatprep.mubr.f32.mxu0 0.0
      %2221 = vmatmul.mubr.f32.gmra.mrb[0].mxu0 %v2021
      %v2222 = vpop.f32.mrb[0].mxu0
      %v2223 = vadd.f32 0.0, %v2222
      %v2224 = vpop.f32.mrb[0].mxu0
      %2225 = vmatprep.mubr.f32.mxu0 0.0
      %2226 = vmatmul.mubr.f32.gmra.mrb[0].mxu0 %v2024
      %v2227 = vpop.f32.mrb[0].mxu0
      %v2228 = vadd.f32 0.0, %v2227
      %v2229 = vpop.f32.mrb[0].mxu0
      %2230 = vmatprep.mubr.f32.mxu0 0.0
      %2231 = vmatmul.mubr.f32.gmra.mrb[0].mxu0 %v2027
      %v2232 = vpop.f32.mrb[0].mxu0
      %v2233 = vadd.f32 0.0, %v2232
      %v2234 = vpop.f32.mrb[0].mxu0
      %2235 = vmatprep.mubr.f32.mxu0 0.0
      %2236 = vmatmul.mubr.f32.gmra.mrb[0].mxu0 %v2030
      %v2237 = vpop.f32.mrb[0].mxu0
      %v2238 = vadd.f32 0.0, %v2237
      %v2239 = vpop.f32.mrb[0].mxu0
      %2240 = vmatprep.mubr.f32.mxu0 0.0
      %2241 = vmatmul.mubr.f32.gmra.mrb[0].mxu0 %v2033
      %v2242 = vpop.f32.mrb[0].mxu0
      %v2243 = vadd.f32 0.0, %v2242
      %v2244 = vpop.f32.mrb[0].mxu0
      %2245 = vmatprep.mubr.f32.mxu0 0.0
      %2246 = vmatmul.mubr.f32.gmra.mrb[0].mxu0 %v2036
      %v2247 = vpop.f32.mrb[0].mxu0
      %v2248 = vadd.f32 0.0, %v2247
      %v2249 = vpop.f32.mrb[0].mxu0
      %2250 = vmatprep.mubr.f32.mxu0 0.0
      %2251 = vmatmul.mubr.f32.gmra.mrb[0].mxu0 %v2039
      %v2252 = vpop.f32.mrb[0].mxu0
      %v2253 = vadd.f32 0.0, %v2252
      %v2254 = vpop.f32.mrb[0].mxu0
      %2255 = vmatprep.mubr.f32.mxu0 0.0
      %2256 = vmatmul.mubr.f32.gmra.mrb[0].mxu0 %v2042
      %v2257 = vpop.f32.mrb[0].mxu0
      %v2258 = vadd.f32 0.0, %v2257
      %v2259 = vpop.f32.mrb[0].mxu0
      %2260 = vmatprep.mubr.f32.mxu0 0.0
      %2261 = vmatmul.mubr.f32.gmra.mrb[0].mxu0 %v2045
      %v2262 = vpop.f32.mrb[0].mxu0
      %v2263 = vadd.f32 0.0, %v2262
      %v2264 = vpop.f32.mrb[0].mxu0
      %2265 = vmatprep.mubr.f32.mxu0 0.0
      %2266 = vmatmul.mubr.f32.gmra.mrb[0].mxu0 %v2048
      %v2267 = vpop.f32.mrb[0].mxu0
      %v2268 = vadd.f32 0.0, %v2267
      %v2269 = vpop.f32.mrb[0].mxu0
      %2270 = vmatprep.mubr.f32.mxu0 0.0
      %2271 = vmatmul.mubr.f32.gmra.mrb[0].mxu0 %v2051
      %v2272 = vpop.f32.mrb[0].mxu0
      %v2273 = vadd.f32 0.0, %v2272
      %v2274 = vpop.f32.mrb[0].mxu0
      %2275 = vmatprep.mubr.f32.mxu0 0.0
      %2276 = vmatmul.mubr.f32.gmra.mrb[0].mxu0 %v2054
      %v2277 = vpop.f32.mrb[0].mxu0
      %v2278 = vadd.f32 0.0, %v2277
      %v2279 = vpop.f32.mrb[0].mxu0
      %2280 = vmatprep.mubr.f32.mxu0 0.0
      %2281 = vmatmul.mubr.f32.gmra.mrb[0].mxu0 %v2057
      %v2282 = vpop.f32.mrb[0].mxu0
      %v2283 = vadd.f32 0.0, %v2282
      %v2284 = vpop.f32.mrb[0].mxu0
      %2285 = vmatprep.mubr.f32.mxu0 0.0
      %2286 = vmatmul.mubr.f32.gmra.mrb[0].mxu0 %v2060
      %v2287 = vpop.f32.mrb[0].mxu0
      %v2288 = vadd.f32 0.0, %v2287
      %v2289 = vpop.f32.mrb[0].mxu0
      %2290 = vdwg.mxu0
      %v2291 = vmax.f32 %v2133, 0.0
      %v2292 = vmax.f32 %v2138, 0.0
      %v2293 = vmax.f32 %v2143, 0.0
      %v2294 = vmax.f32 %v2148, 0.0
      %v2295 = vmax.f32 %v2153, 0.0
      %v2296 = vmax.f32 %v2158, 0.0
      %v2297 = vmax.f32 %v2163, 0.0
      %v2298 = vmax.f32 %v2168, 0.0
      %v2299 = vmax.f32 %v2173, 0.0
      %v2300 = vmax.f32 %v2178, 0.0
      %v2301 = vmax.f32 %v2183, 0.0
      %v2302 = vmax.f32 %v2188, 0.0
      %v2303 = vmax.f32 %v2193, 0.0
      %v2304 = vmax.f32 %v2198, 0.0
      %v2305 = vmax.f32 %v2203, 0.0
      %v2306 = vmax.f32 %v2208, 0.0
      %v2307 = vmax.f32 %v2213, 0.0
      %v2308 = vmax.f32 %v2218, 0.0
      %v2309 = vmax.f32 %v2223, 0.0
      %v2310 = vmax.f32 %v2228, 0.0
      %v2311 = vmax.f32 %v2233, 0.0
      %v2312 = vmax.f32 %v2238, 0.0
      %v2313 = vmax.f32 %v2243, 0.0
      %v2314 = vmax.f32 %v2248, 0.0
      %v2315 = vmax.f32 %v2253, 0.0
      %v2316 = vmax.f32 %v2258, 0.0
      %v2317 = vmax.f32 %v2263, 0.0
      %v2318 = vmax.f32 %v2268, 0.0
      %v2319 = vmax.f32 %v2273, 0.0
      %v2320 = vmax.f32 %v2278, 0.0
      %v2321 = vmax.f32 %v2283, 0.0
      %v2322 = vmax.f32 %v2288, 0.0
      %vm2323 = vcmask 64512
      %2324 = vst.msk [vmem:[#allocation4] sm:$0xff] %vm2323, 0.0
      %2325 = vst.msk [vmem:[#allocation4 + $0x8] sm:$0xff] %vm2323, 0.0
      %vm2326 = vcmask 58368
      %2327 = vst.msk [vmem:[#allocation4 + $0x10] sm:$0x3] %vm2326, 0.0
      %2328 = vst.msk [vmem:[#allocation4 + $0x18] sm:$0xff] %vm2323, 0.0
      %2329 = vst.msk [vmem:[#allocation4 + $0x20] sm:$0xff] %vm2323, 0.0
      %2330 = vst.msk [vmem:[#allocation4 + $0x28] sm:$0x3] %vm2326, 0.0
      %2331 = vst.msk [vmem:[#allocation4 + $0x30] sm:$0xff] %vm2323, 0.0
      %2332 = vst.msk [vmem:[#allocation4 + $0x38] sm:$0xff] %vm2323, 0.0
      %2333 = vst.msk [vmem:[#allocation4 + $0x40] sm:$0x3] %vm2326, 0.0
      %2334 = vst.msk [vmem:[#allocation4 + $0x48] sm:$0xff] %vm2323, 0.0
      %2335 = vst.msk [vmem:[#allocation4 + $0x50] sm:$0xff] %vm2323, 0.0
      %2336 = vst.msk [vmem:[#allocation4 + $0x58] sm:$0x3] %vm2326, 0.0
      %2337 = vst.msk [vmem:[#allocation4 + $0x60] sm:$0xff] %vm2323, 0.0
      %2338 = vst.msk [vmem:[#allocation4 + $0x68] sm:$0xff] %vm2323, 0.0
      %2339 = vst.msk [vmem:[#allocation4 + $0x70] sm:$0x3] %vm2326, 0.0
      %2340 = vst.msk [vmem:[#allocation4 + $0x78] sm:$0xff] %vm2323, 0.0
      %2341 = vst.msk [vmem:[#allocation4 + $0x80] sm:$0xff] %vm2323, 0.0
      %2342 = vst.msk [vmem:[#allocation4 + $0x88] sm:$0x3] %vm2326, 0.0
      %2343 = vst.msk [vmem:[#allocation4 + $0x90] sm:$0xff] %vm2323, 0.0
      %2344 = vst.msk [vmem:[#allocation4 + $0x98] sm:$0xff] %vm2323, 0.0
      %2345 = vst.msk [vmem:[#allocation4 + $0xa0] sm:$0x3] %vm2326, 0.0
      %2346 = vst.msk [vmem:[#allocation4 + $0xa8] sm:$0xff] %vm2323, 0.0
      %2347 = vst.msk [vmem:[#allocation4 + $0xb0] sm:$0xff] %vm2323, 0.0
      %2348 = vst.msk [vmem:[#allocation4 + $0xb8] sm:$0x3] %vm2326, 0.0
      %2349 = vst.msk [vmem:[#allocation4 + $0xc0] sm:$0xff] %vm2323, 0.0
      %2350 = vst.msk [vmem:[#allocation4 + $0xc8] sm:$0xff] %vm2323, 0.0
      %2351 = vst.msk [vmem:[#allocation4 + $0xd0] sm:$0x3] %vm2326, 0.0
      %2352 = vst.msk [vmem:[#allocation4 + $0xd8] sm:$0xff] %vm2323, 0.0
      %2353 = vst.msk [vmem:[#allocation4 + $0xe0] sm:$0xff] %vm2323, 0.0
      %2354 = vst.msk [vmem:[#allocation4 + $0xe8] sm:$0x3] %vm2326, 0.0
      %2355 = vst.msk [vmem:[#allocation4 + $0xf0] sm:$0xff] %vm2323, 0.0
      %2356 = vst.msk [vmem:[#allocation4 + $0xf8] sm:$0xff] %vm2323, 0.0
      %2357 = vst.msk [vmem:[#allocation4 + $0x100] sm:$0x3] %vm2326, 0.0
      %2358 = vst.msk [vmem:[#allocation4 + $0x108] sm:$0xff] %vm2323, 0.0
      %2359 = vst.msk [vmem:[#allocation4 + $0x110] sm:$0xff] %vm2323, 0.0
      %2360 = vst.msk [vmem:[#allocation4 + $0x118] sm:$0x3] %vm2326, 0.0
      %2361 = vst.msk [vmem:[#allocation4 + $0x120] sm:$0xff] %vm2323, 0.0
      %2362 = vst.msk [vmem:[#allocation4 + $0x128] sm:$0xff] %vm2323, 0.0
      %2363 = vst.msk [vmem:[#allocation4 + $0x130] sm:$0x3] %vm2326, 0.0
      %2364 = vst.msk [vmem:[#allocation4 + $0x138] sm:$0xff] %vm2323, 0.0
      %2365 = vst.msk [vmem:[#allocation4 + $0x140] sm:$0xff] %vm2323, 0.0
      %2366 = vst.msk [vmem:[#allocation4 + $0x148] sm:$0x3] %vm2326, 0.0
      %2367 = vst.msk [vmem:[#allocation4 + $0x150] sm:$0xff] %vm2323, 0.0
      %2368 = vst.msk [vmem:[#allocation4 + $0x158] sm:$0xff] %vm2323, 0.0
      %2369 = vst.msk [vmem:[#allocation4 + $0x160] sm:$0x3] %vm2326, 0.0
      %2370 = vst.msk [vmem:[#allocation4 + $0x168] sm:$0xff] %vm2323, 0.0
      %2371 = vst.msk [vmem:[#allocation4 + $0x170] sm:$0xff] %vm2323, 0.0
      %2372 = vst.msk [vmem:[#allocation4 + $0x178] sm:$0x3] %vm2326, 0.0
      %2373 = vst.msk [vmem:[#allocation4 + $0x180] sm:$0xff] %vm2323, 0.0
      %2374 = vst.msk [vmem:[#allocation4 + $0x188] sm:$0xff] %vm2323, 0.0
      %2375 = vst.msk [vmem:[#allocation4 + $0x190] sm:$0x3] %vm2326, 0.0
      %2376 = vst.msk [vmem:[#allocation4 + $0x198] sm:$0xff] %vm2323, 0.0
      %2377 = vst.msk [vmem:[#allocation4 + $0x1a0] sm:$0xff] %vm2323, 0.0
      %2378 = vst.msk [vmem:[#allocation4 + $0x1a8] sm:$0x3] %vm2326, 0.0
      %s2379 = scalar_lea.vmem [#allocation4], 24
      %2380 = vst.msk [vmem:[%s2379 + $0x1] sm:$0xff] %vm2323, %v2291
      %2381 = vst.msk [vmem:[%s2379 + $0x9] sm:$0xff] %vm2323, %v2292
      %2382 = vst.msk [vmem:[%s2379 + $0x19] sm:$0xff] %vm2323, %v2293
      %2383 = vst.msk [vmem:[%s2379 + $0x21] sm:$0xff] %vm2323, %v2294
      %2384 = vst.msk [vmem:[%s2379 + $0x31] sm:$0xff] %vm2323, %v2295
      %2385 = vst.msk [vmem:[%s2379 + $0x39] sm:$0xff] %vm2323, %v2296
      %2386 = vst.msk [vmem:[%s2379 + $0x49] sm:$0xff] %vm2323, %v2297
      %2387 = vst.msk [vmem:[%s2379 + $0x51] sm:$0xff] %vm2323, %v2298
      %2388 = vst.msk [vmem:[%s2379 + $0x61] sm:$0xff] %vm2323, %v2299
      %2389 = vst.msk [vmem:[%s2379 + $0x69] sm:$0xff] %vm2323, %v2300
      %2390 = vst.msk [vmem:[%s2379 + $0x79] sm:$0xff] %vm2323, %v2301
      %2391 = vst.msk [vmem:[%s2379 + $0x81] sm:$0xff] %vm2323, %v2302
      %2392 = vst.msk [vmem:[%s2379 + $0x91] sm:$0xff] %vm2323, %v2303
      %2393 = vst.msk [vmem:[%s2379 + $0x99] sm:$0xff] %vm2323, %v2304
      %2394 = vst.msk [vmem:[%s2379 + $0xa9] sm:$0xff] %vm2323, %v2305
      %2395 = vst.msk [vmem:[%s2379 + $0xb1] sm:$0xff] %vm2323, %v2306
      %2396 = vst.msk [vmem:[%s2379 + $0xc1] sm:$0xff] %vm2323, %v2307
      %2397 = vst.msk [vmem:[%s2379 + $0xc9] sm:$0xff] %vm2323, %v2308
      %2398 = vst.msk [vmem:[%s2379 + $0xd9] sm:$0xff] %vm2323, %v2309
      %2399 = vst.msk [vmem:[%s2379 + $0xe1] sm:$0xff] %vm2323, %v2310
      %2400 = vst.msk [vmem:[%s2379 + $0xf1] sm:$0xff] %vm2323, %v2311
      %2401 = vst.msk [vmem:[%s2379 + $0xf9] sm:$0xff] %vm2323, %v2312
      %2402 = vst.msk [vmem:[%s2379 + $0x109] sm:$0xff] %vm2323, %v2313
      %2403 = vst.msk [vmem:[%s2379 + $0x111] sm:$0xff] %vm2323, %v2314
      %2404 = vst.msk [vmem:[%s2379 + $0x121] sm:$0xff] %vm2323, %v2315
      %2405 = vst.msk [vmem:[%s2379 + $0x129] sm:$0xff] %vm2323, %v2316
      %2406 = vst.msk [vmem:[%s2379 + $0x139] sm:$0xff] %vm2323, %v2317
      %2407 = vst.msk [vmem:[%s2379 + $0x141] sm:$0xff] %vm2323, %v2318
      %2408 = vst.msk [vmem:[%s2379 + $0x151] sm:$0xff] %vm2323, %v2319
      %2409 = vst.msk [vmem:[%s2379 + $0x159] sm:$0xff] %vm2323, %v2320
      %2410 = vst.msk [vmem:[%s2379 + $0x169] sm:$0xff] %vm2323, %v2321
      %2411 = vst.msk [vmem:[%s2379 + $0x171] sm:$0xff] %vm2323, %v2322
      %v2412 = vld [vmem:[#allocation4] sm:$0xff]
      %v2413 = vld [vmem:[#allocation4 + $0x8] sm:$0xff]
      %v2414 = vld [vmem:[#allocation4 + $0x18] sm:$0xff]
      %v2415 = vld [vmem:[#allocation4 + $0x20] sm:$0xff]
      %v2416 = vld [vmem:[#allocation4 + $0x30] sm:$0xff]
      %v2417 = vld [vmem:[#allocation4 + $0x38] sm:$0xff]
      %v2418 = vld [vmem:[#allocation4 + $0x48] sm:$0xff]
      %v2419 = vld [vmem:[#allocation4 + $0x50] sm:$0xff]
      %v2420 = vld [vmem:[#allocation4 + $0x60] sm:$0xff]
      %v2421 = vld [vmem:[#allocation4 + $0x68] sm:$0xff]
      %v2422 = vld [vmem:[#allocation4 + $0x78] sm:$0xff]
      %v2423 = vld [vmem:[#allocation4 + $0x80] sm:$0xff]
      %v2424 = vld [vmem:[#allocation4 + $0x90] sm:$0xff]
      %v2425 = vld [vmem:[#allocation4 + $0x98] sm:$0xff]
      %v2426 = vld [vmem:[#allocation4 + $0xa8] sm:$0xff]
      %v2427 = vld [vmem:[#allocation4 + $0xb0] sm:$0xff]
      %v2428 = vld [vmem:[#allocation4 + $0xc0] sm:$0xff]
      %v2429 = vld [vmem:[#allocation4 + $0xc8] sm:$0xff]
      %v2430 = vld [vmem:[#allocation4 + $0xd8] sm:$0xff]
      %v2431 = vld [vmem:[#allocation4 + $0xe0] sm:$0xff]
      %v2432 = vld [vmem:[#allocation4 + $0xf0] sm:$0xff]
      %v2433 = vld [vmem:[#allocation4 + $0xf8] sm:$0xff]
      %v2434 = vld [vmem:[#allocation4 + $0x108] sm:$0xff]
      %v2435 = vld [vmem:[#allocation4 + $0x110] sm:$0xff]
      %v2436 = vld [vmem:[#allocation4 + $0x120] sm:$0xff]
      %v2437 = vld [vmem:[#allocation4 + $0x128] sm:$0xff]
      %v2438 = vld [vmem:[#allocation4 + $0x138] sm:$0xff]
      %v2439 = vld [vmem:[#allocation4 + $0x140] sm:$0xff]
      %v2440 = vld [vmem:[#allocation4 + $0x150] sm:$0xff]
      %v2441 = vld [vmem:[#allocation4 + $0x158] sm:$0xff]
      %v2442 = vld [vmem:[#allocation4 + $0x168] sm:$0xff]
      %v2443 = vld [vmem:[#allocation4 + $0x170] sm:$0xff]
      %2444 = vst.msk [vmem:[#allocation5] sm:$0xff] %vm2323, %v2412
      %2445 = vst.msk [vmem:[#allocation5 + $0x8] sm:$0xff] %vm2323, %v2413
      %2446 = vst.msk [vmem:[#allocation5 + $0x10] sm:$0xff] %vm2323, %v2414
      %2447 = vst.msk [vmem:[#allocation5 + $0x18] sm:$0xff] %vm2323, %v2415
      %2448 = vst.msk [vmem:[#allocation5 + $0x20] sm:$0xff] %vm2323, %v2416
      %2449 = vst.msk [vmem:[#allocation5 + $0x28] sm:$0xff] %vm2323, %v2417
      %2450 = vst.msk [vmem:[#allocation5 + $0x30] sm:$0xff] %vm2323, %v2418
      %2451 = vst.msk [vmem:[#allocation5 + $0x38] sm:$0xff] %vm2323, %v2419
      %2452 = vst.msk [vmem:[#allocation5 + $0x40] sm:$0xff] %vm2323, %v2420
      %2453 = vst.msk [vmem:[#allocation5 + $0x48] sm:$0xff] %vm2323, %v2421
      %2454 = vst.msk [vmem:[#allocation5 + $0x50] sm:$0xff] %vm2323, %v2422
      %2455 = vst.msk [vmem:[#allocation5 + $0x58] sm:$0xff] %vm2323, %v2423
      %2456 = vst.msk [vmem:[#allocation5 + $0x60] sm:$0xff] %vm2323, %v2424
      %2457 = vst.msk [vmem:[#allocation5 + $0x68] sm:$0xff] %vm2323, %v2425
      %2458 = vst.msk [vmem:[#allocation5 + $0x70] sm:$0xff] %vm2323, %v2426
      %2459 = vst.msk [vmem:[#allocation5 + $0x78] sm:$0xff] %vm2323, %v2427
      %2460 = vst.msk [vmem:[#allocation5 + $0x80] sm:$0xff] %vm2323, %v2428
      %2461 = vst.msk [vmem:[#allocation5 + $0x88] sm:$0xff] %vm2323, %v2429
      %2462 = vst.msk [vmem:[#allocation5 + $0x90] sm:$0xff] %vm2323, %v2430
      %2463 = vst.msk [vmem:[#allocation5 + $0x98] sm:$0xff] %vm2323, %v2431
      %2464 = vst.msk [vmem:[#allocation5 + $0xa0] sm:$0xff] %vm2323, %v2432
      %2465 = vst.msk [vmem:[#allocation5 + $0xa8] sm:$0xff] %vm2323, %v2433
      %2466 = vst.msk [vmem:[#allocation5 + $0xb0] sm:$0xff] %vm2323, %v2434
      %2467 = vst.msk [vmem:[#allocation5 + $0xb8] sm:$0xff] %vm2323, %v2435
      %2468 = vst.msk [vmem:[#allocation5 + $0xc0] sm:$0xff] %vm2323, %v2436
      %2469 = vst.msk [vmem:[#allocation5 + $0xc8] sm:$0xff] %vm2323, %v2437
      %2470 = vst.msk [vmem:[#allocation5 + $0xd0] sm:$0xff] %vm2323, %v2438
      %2471 = vst.msk [vmem:[#allocation5 + $0xd8] sm:$0xff] %vm2323, %v2439
      %2472 = vst.msk [vmem:[#allocation5 + $0xe0] sm:$0xff] %vm2323, %v2440
      %2473 = vst.msk [vmem:[#allocation5 + $0xe8] sm:$0xff] %vm2323, %v2441
      %2474 = vst.msk [vmem:[#allocation5 + $0xf0] sm:$0xff] %vm2323, %v2442
      %2475 = vst.msk [vmem:[#allocation5 + $0xf8] sm:$0xff] %vm2323, %v2443
      %v2476 = vld [vmem:[#allocation4 + $0x1] sm:$0xff]
      %v2477 = vld [vmem:[#allocation4 + $0x9] sm:$0xff]
      %v2478 = vld [vmem:[#allocation4 + $0x19] sm:$0xff]
      %v2479 = vld [vmem:[#allocation4 + $0x21] sm:$0xff]
      %v2480 = vld [vmem:[#allocation4 + $0x31] sm:$0xff]
      %v2481 = vld [vmem:[#allocation4 + $0x39] sm:$0xff]
      %v2482 = vld [vmem:[#allocation4 + $0x49] sm:$0xff]
      %v2483 = vld [vmem:[#allocation4 + $0x51] sm:$0xff]
      %v2484 = vld [vmem:[#allocation4 + $0x61] sm:$0xff]
      %v2485 = vld [vmem:[#allocation4 + $0x69] sm:$0xff]
      %v2486 = vld [vmem:[#allocation4 + $0x79] sm:$0xff]
      %v2487 = vld [vmem:[#allocation4 + $0x81] sm:$0xff]
      %v2488 = vld [vmem:[#allocation4 + $0x91] sm:$0xff]
      %v2489 = vld [vmem:[#allocation4 + $0x99] sm:$0xff]
      %v2490 = vld [vmem:[#allocation4 + $0xa9] sm:$0xff]
      %v2491 = vld [vmem:[#allocation4 + $0xb1] sm:$0xff]
      %v2492 = vld [vmem:[#allocation4 + $0xc1] sm:$0xff]
      %v2493 = vld [vmem:[#allocation4 + $0xc9] sm:$0xff]
      %v2494 = vld [vmem:[#allocation4 + $0xd9] sm:$0xff]
      %v2495 = vld [vmem:[#allocation4 + $0xe1] sm:$0xff]
      %v2496 = vld [vmem:[#allocation4 + $0xf1] sm:$0xff]
      %v2497 = vld [vmem:[#allocation4 + $0xf9] sm:$0xff]
      %v2498 = vld [vmem:[#allocation4 + $0x109] sm:$0xff]
      %v2499 = vld [vmem:[#allocation4 + $0x111] sm:$0xff]
      %v2500 = vld [vmem:[#allocation4 + $0x121] sm:$0xff]
      %v2501 = vld [vmem:[#allocation4 + $0x129] sm:$0xff]
      %v2502 = vld [vmem:[#allocation4 + $0x139] sm:$0xff]
      %v2503 = vld [vmem:[#allocation4 + $0x141] sm:$0xff]
      %v2504 = vld [vmem:[#allocation4 + $0x151] sm:$0xff]
      %v2505 = vld [vmem:[#allocation4 + $0x159] sm:$0xff]
      %v2506 = vld [vmem:[#allocation4 + $0x169] sm:$0xff]
      %v2507 = vld [vmem:[#allocation4 + $0x171] sm:$0xff]
      %2540 = vrot.lane.b32.xlu0 %v2476, 8
      %v2541 = vpop.permute.xlu0 %2540
      %2542 = vrot.lane.b32.xlu0 %v2477, 8
      %v2543 = vpop.permute.xlu0 %2542
      %2544 = vrot.lane.b32.xlu0 %v2478, 8
      %v2545 = vpop.permute.xlu0 %2544
      %2546 = vrot.lane.b32.xlu0 %v2479, 8
      %v2547 = vpop.permute.xlu0 %2546
      %2548 = vrot.lane.b32.xlu0 %v2480, 8
      %v2549 = vpop.permute.xlu0 %2548
      %2550 = vrot.lane.b32.xlu0 %v2481, 8
      %v2551 = vpop.permute.xlu0 %2550
      %2552 = vrot.lane.b32.xlu0 %v2482, 8
      %v2553 = vpop.permute.xlu0 %2552
      %2554 = vrot.lane.b32.xlu0 %v2483, 8
      %v2555 = vpop.permute.xlu0 %2554
      %2556 = vrot.lane.b32.xlu0 %v2484, 8
      %v2557 = vpop.permute.xlu0 %2556
      %2558 = vrot.lane.b32.xlu0 %v2485, 8
      %v2559 = vpop.permute.xlu0 %2558
      %2560 = vrot.lane.b32.xlu0 %v2486, 8
      %v2561 = vpop.permute.xlu0 %2560
      %2562 = vrot.lane.b32.xlu0 %v2487, 8
      %v2563 = vpop.permute.xlu0 %2562
      %2564 = vrot.lane.b32.xlu0 %v2488, 8
      %v2565 = vpop.permute.xlu0 %2564
      %2566 = vrot.lane.b32.xlu0 %v2489, 8
      %v2567 = vpop.permute.xlu0 %2566
      %2568 = vrot.lane.b32.xlu0 %v2490, 8
      %v2569 = vpop.permute.xlu0 %2568
      %2570 = vrot.lane.b32.xlu0 %v2491, 8
      %v2571 = vpop.permute.xlu0 %2570
      %2572 = vrot.lane.b32.xlu0 %v2492, 8
      %v2573 = vpop.permute.xlu0 %2572
      %2574 = vrot.lane.b32.xlu0 %v2493, 8
      %v2575 = vpop.permute.xlu0 %2574
      %2576 = vrot.lane.b32.xlu0 %v2494, 8
      %v2577 = vpop.permute.xlu0 %2576
      %2578 = vrot.lane.b32.xlu0 %v2495, 8
      %v2579 = vpop.permute.xlu0 %2578
      %2580 = vrot.lane.b32.xlu0 %v2496, 8
      %v2581 = vpop.permute.xlu0 %2580
      %2582 = vrot.lane.b32.xlu0 %v2497, 8
      %v2583 = vpop.permute.xlu0 %2582
      %2584 = vrot.lane.b32.xlu0 %v2498, 8
      %v2585 = vpop.permute.xlu0 %2584
      %2586 = vrot.lane.b32.xlu0 %v2499, 8
      %v2587 = vpop.permute.xlu0 %2586
      %2588 = vrot.lane.b32.xlu0 %v2500, 8
      %v2589 = vpop.permute.xlu0 %2588
      %2590 = vrot.lane.b32.xlu0 %v2501, 8
      %v2591 = vpop.permute.xlu0 %2590
      %2592 = vrot.lane.b32.xlu0 %v2502, 8
      %v2593 = vpop.permute.xlu0 %2592
      %2594 = vrot.lane.b32.xlu0 %v2503, 8
      %v2595 = vpop.permute.xlu0 %2594
      %2596 = vrot.lane.b32.xlu0 %v2504, 8
      %v2597 = vpop.permute.xlu0 %2596
      %2598 = vrot.lane.b32.xlu0 %v2505, 8
      %v2599 = vpop.permute.xlu0 %2598
      %2600 = vrot.lane.b32.xlu0 %v2506, 8
      %v2601 = vpop.permute.xlu0 %2600
      %2602 = vrot.lane.b32.xlu0 %v2507, 8
      %v2603 = vpop.permute.xlu0 %2602
      %vm2636 = vcmask 130112
      %2637 = vst.msk [vmem:[#allocation5] sm:$0xff] %vm2636, %v2541
      %2638 = vst.msk [vmem:[#allocation5 + $0x8] sm:$0xff] %vm2636, %v2543
      %2639 = vst.msk [vmem:[#allocation5 + $0x10] sm:$0xff] %vm2636, %v2545
      %2640 = vst.msk [vmem:[#allocation5 + $0x18] sm:$0xff] %vm2636, %v2547
      %2641 = vst.msk [vmem:[#allocation5 + $0x20] sm:$0xff] %vm2636, %v2549
      %2642 = vst.msk [vmem:[#allocation5 + $0x28] sm:$0xff] %vm2636, %v2551
      %2643 = vst.msk [vmem:[#allocation5 + $0x30] sm:$0xff] %vm2636, %v2553
      %2644 = vst.msk [vmem:[#allocation5 + $0x38] sm:$0xff] %vm2636, %v2555
      %2645 = vst.msk [vmem:[#allocation5 + $0x40] sm:$0xff] %vm2636, %v2557
      %2646 = vst.msk [vmem:[#allocation5 + $0x48] sm:$0xff] %vm2636, %v2559
      %2647 = vst.msk [vmem:[#allocation5 + $0x50] sm:$0xff] %vm2636, %v2561
      %2648 = vst.msk [vmem:[#allocation5 + $0x58] sm:$0xff] %vm2636, %v2563
      %2649 = vst.msk [vmem:[#allocation5 + $0x60] sm:$0xff] %vm2636, %v2565
      %2650 = vst.msk [vmem:[#allocation5 + $0x68] sm:$0xff] %vm2636, %v2567
      %2651 = vst.msk [vmem:[#allocation5 + $0x70] sm:$0xff] %vm2636, %v2569
      %2652 = vst.msk [vmem:[#allocation5 + $0x78] sm:$0xff] %vm2636, %v2571
      %2653 = vst.msk [vmem:[#allocation5 + $0x80] sm:$0xff] %vm2636, %v2573
      %2654 = vst.msk [vmem:[#allocation5 + $0x88] sm:$0xff] %vm2636, %v2575
      %2655 = vst.msk [vmem:[#allocation5 + $0x90] sm:$0xff] %vm2636, %v2577
      %2656 = vst.msk [vmem:[#allocation5 + $0x98] sm:$0xff] %vm2636, %v2579
      %2657 = vst.msk [vmem:[#allocation5 + $0xa0] sm:$0xff] %vm2636, %v2581
      %2658 = vst.msk [vmem:[#allocation5 + $0xa8] sm:$0xff] %vm2636, %v2583
      %2659 = vst.msk [vmem:[#allocation5 + $0xb0] sm:$0xff] %vm2636, %v2585
      %2660 = vst.msk [vmem:[#allocation5 + $0xb8] sm:$0xff] %vm2636, %v2587
      %2661 = vst.msk [vmem:[#allocation5 + $0xc0] sm:$0xff] %vm2636, %v2589
      %2662 = vst.msk [vmem:[#allocation5 + $0xc8] sm:$0xff] %vm2636, %v2591
      %2663 = vst.msk [vmem:[#allocation5 + $0xd0] sm:$0xff] %vm2636, %v2593
      %2664 = vst.msk [vmem:[#allocation5 + $0xd8] sm:$0xff] %vm2636, %v2595
      %2665 = vst.msk [vmem:[#allocation5 + $0xe0] sm:$0xff] %vm2636, %v2597
      %2666 = vst.msk [vmem:[#allocation5 + $0xe8] sm:$0xff] %vm2636, %v2599
      %2667 = vst.msk [vmem:[#allocation5 + $0xf0] sm:$0xff] %vm2636, %v2601
      %2668 = vst.msk [vmem:[#allocation5 + $0xf8] sm:$0xff] %vm2636, %v2603
      %v2669 = vld [vmem:[#allocation4 + $0x2] sm:$0xff]
      %v2670 = vld [vmem:[#allocation4 + $0xa] sm:$0xff]
      %v2671 = vld [vmem:[#allocation4 + $0x1a] sm:$0xff]
      %v2672 = vld [vmem:[#allocation4 + $0x22] sm:$0xff]
      %v2673 = vld [vmem:[#allocation4 + $0x32] sm:$0xff]
      %v2674 = vld [vmem:[#allocation4 + $0x3a] sm:$0xff]
      %v2675 = vld [vmem:[#allocation4 + $0x4a] sm:$0xff]
      %v2676 = vld [vmem:[#allocation4 + $0x52] sm:$0xff]
      %v2677 = vld [vmem:[#allocation4 + $0x62] sm:$0xff]
      %v2678 = vld [vmem:[#allocation4 + $0x6a] sm:$0xff]
      %v2679 = vld [vmem:[#allocation4 + $0x7a] sm:$0xff]
      %v2680 = vld [vmem:[#allocation4 + $0x82] sm:$0xff]
      %v2681 = vld [vmem:[#allocation4 + $0x92] sm:$0xff]
      %v2682 = vld [vmem:[#allocation4 + $0x9a] sm:$0xff]
      %v2683 = vld [vmem:[#allocation4 + $0xaa] sm:$0xff]
      %v2684 = vld [vmem:[#allocation4 + $0xb2] sm:$0xff]
      %v2685 = vld [vmem:[#allocation4 + $0xc2] sm:$0xff]
      %v2686 = vld [vmem:[#allocation4 + $0xca] sm:$0xff]
      %v2687 = vld [vmem:[#allocation4 + $0xda] sm:$0xff]
      %v2688 = vld [vmem:[#allocation4 + $0xe2] sm:$0xff]
      %v2689 = vld [vmem:[#allocation4 + $0xf2] sm:$0xff]
      %v2690 = vld [vmem:[#allocation4 + $0xfa] sm:$0xff]
      %v2691 = vld [vmem:[#allocation4 + $0x10a] sm:$0xff]
      %v2692 = vld [vmem:[#allocation4 + $0x112] sm:$0xff]
      %v2693 = vld [vmem:[#allocation4 + $0x122] sm:$0xff]
      %v2694 = vld [vmem:[#allocation4 + $0x12a] sm:$0xff]
      %v2695 = vld [vmem:[#allocation4 + $0x13a] sm:$0xff]
      %v2696 = vld [vmem:[#allocation4 + $0x142] sm:$0xff]
      %v2697 = vld [vmem:[#allocation4 + $0x152] sm:$0xff]
      %v2698 = vld [vmem:[#allocation4 + $0x15a] sm:$0xff]
      %v2699 = vld [vmem:[#allocation4 + $0x16a] sm:$0xff]
      %v2700 = vld [vmem:[#allocation4 + $0x172] sm:$0xff]
      %2733 = vrot.lane.b32.xlu0 %v2669, 16
      %v2734 = vpop.permute.xlu0 %2733
      %2735 = vrot.lane.b32.xlu0 %v2670, 16
      %v2736 = vpop.permute.xlu0 %2735
      %2737 = vrot.lane.b32.xlu0 %v2671, 16
      %v2738 = vpop.permute.xlu0 %2737
      %2739 = vrot.lane.b32.xlu0 %v2672, 16
      %v2740 = vpop.permute.xlu0 %2739
      %2741 = vrot.lane.b32.xlu0 %v2673, 16
      %v2742 = vpop.permute.xlu0 %2741
      %2743 = vrot.lane.b32.xlu0 %v2674, 16
      %v2744 = vpop.permute.xlu0 %2743
      %2745 = vrot.lane.b32.xlu0 %v2675, 16
      %v2746 = vpop.permute.xlu0 %2745
      %2747 = vrot.lane.b32.xlu0 %v2676, 16
      %v2748 = vpop.permute.xlu0 %2747
      %2749 = vrot.lane.b32.xlu0 %v2677, 16
      %v2750 = vpop.permute.xlu0 %2749
      %2751 = vrot.lane.b32.xlu0 %v2678, 16
      %v2752 = vpop.permute.xlu0 %2751
      %2753 = vrot.lane.b32.xlu0 %v2679, 16
      %v2754 = vpop.permute.xlu0 %2753
      %2755 = vrot.lane.b32.xlu0 %v2680, 16
      %v2756 = vpop.permute.xlu0 %2755
      %2757 = vrot.lane.b32.xlu0 %v2681, 16
      %v2758 = vpop.permute.xlu0 %2757
      %2759 = vrot.lane.b32.xlu0 %v2682, 16
      %v2760 = vpop.permute.xlu0 %2759
      %2761 = vrot.lane.b32.xlu0 %v2683, 16
      %v2762 = vpop.permute.xlu0 %2761
      %2763 = vrot.lane.b32.xlu0 %v2684, 16
      %v2764 = vpop.permute.xlu0 %2763
      %2765 = vrot.lane.b32.xlu0 %v2685, 16
      %v2766 = vpop.permute.xlu0 %2765
      %2767 = vrot.lane.b32.xlu0 %v2686, 16
      %v2768 = vpop.permute.xlu0 %2767
      %2769 = vrot.lane.b32.xlu0 %v2687, 16
      %v2770 = vpop.permute.xlu0 %2769
      %2771 = vrot.lane.b32.xlu0 %v2688, 16
      %v2772 = vpop.permute.xlu0 %2771
      %2773 = vrot.lane.b32.xlu0 %v2689, 16
      %v2774 = vpop.permute.xlu0 %2773
      %2775 = vrot.lane.b32.xlu0 %v2690, 16
      %v2776 = vpop.permute.xlu0 %2775
      %2777 = vrot.lane.b32.xlu0 %v2691, 16
      %v2778 = vpop.permute.xlu0 %2777
      %2779 = vrot.lane.b32.xlu0 %v2692, 16
      %v2780 = vpop.permute.xlu0 %2779
      %2781 = vrot.lane.b32.xlu0 %v2693, 16
      %v2782 = vpop.permute.xlu0 %2781
      %2783 = vrot.lane.b32.xlu0 %v2694, 16
      %v2784 = vpop.permute.xlu0 %2783
      %2785 = vrot.lane.b32.xlu0 %v2695, 16
      %v2786 = vpop.permute.xlu0 %2785
      %2787 = vrot.lane.b32.xlu0 %v2696, 16
      %v2788 = vpop.permute.xlu0 %2787
      %2789 = vrot.lane.b32.xlu0 %v2697, 16
      %v2790 = vpop.permute.xlu0 %2789
      %2791 = vrot.lane.b32.xlu0 %v2698, 16
      %v2792 = vpop.permute.xlu0 %2791
      %2793 = vrot.lane.b32.xlu0 %v2699, 16
      %v2794 = vpop.permute.xlu0 %2793
      %2795 = vrot.lane.b32.xlu0 %v2700, 16
      %v2796 = vpop.permute.xlu0 %2795
      %vm2829 = vcmask 195712
      %2830 = vst.msk [vmem:[#allocation5] sm:$0xff] %vm2829, %v2734
      %2831 = vst.msk [vmem:[#allocation5 + $0x8] sm:$0xff] %vm2829, %v2736
      %2832 = vst.msk [vmem:[#allocation5 + $0x10] sm:$0xff] %vm2829, %v2738
      %2833 = vst.msk [vmem:[#allocation5 + $0x18] sm:$0xff] %vm2829, %v2740
      %2834 = vst.msk [vmem:[#allocation5 + $0x20] sm:$0xff] %vm2829, %v2742
      %2835 = vst.msk [vmem:[#allocation5 + $0x28] sm:$0xff] %vm2829, %v2744
      %2836 = vst.msk [vmem:[#allocation5 + $0x30] sm:$0xff] %vm2829, %v2746
      %2837 = vst.msk [vmem:[#allocation5 + $0x38] sm:$0xff] %vm2829, %v2748
      %2838 = vst.msk [vmem:[#allocation5 + $0x40] sm:$0xff] %vm2829, %v2750
      %2839 = vst.msk [vmem:[#allocation5 + $0x48] sm:$0xff] %vm2829, %v2752
      %2840 = vst.msk [vmem:[#allocation5 + $0x50] sm:$0xff] %vm2829, %v2754
      %2841 = vst.msk [vmem:[#allocation5 + $0x58] sm:$0xff] %vm2829, %v2756
      %2842 = vst.msk [vmem:[#allocation5 + $0x60] sm:$0xff] %vm2829, %v2758
      %2843 = vst.msk [vmem:[#allocation5 + $0x68] sm:$0xff] %vm2829, %v2760
      %2844 = vst.msk [vmem:[#allocation5 + $0x70] sm:$0xff] %vm2829, %v2762
      %2845 = vst.msk [vmem:[#allocation5 + $0x78] sm:$0xff] %vm2829, %v2764
      %2846 = vst.msk [vmem:[#allocation5 + $0x80] sm:$0xff] %vm2829, %v2766
      %2847 = vst.msk [vmem:[#allocation5 + $0x88] sm:$0xff] %vm2829, %v2768
      %2848 = vst.msk [vmem:[#allocation5 + $0x90] sm:$0xff] %vm2829, %v2770
      %2849 = vst.msk [vmem:[#allocation5 + $0x98] sm:$0xff] %vm2829, %v2772
      %2850 = vst.msk [vmem:[#allocation5 + $0xa0] sm:$0xff] %vm2829, %v2774
      %2851 = vst.msk [vmem:[#allocation5 + $0xa8] sm:$0xff] %vm2829, %v2776
      %2852 = vst.msk [vmem:[#allocation5 + $0xb0] sm:$0xff] %vm2829, %v2778
      %2853 = vst.msk [vmem:[#allocation5 + $0xb8] sm:$0xff] %vm2829, %v2780
      %2854 = vst.msk [vmem:[#allocation5 + $0xc0] sm:$0xff] %vm2829, %v2782
      %2855 = vst.msk [vmem:[#allocation5 + $0xc8] sm:$0xff] %vm2829, %v2784
      %2856 = vst.msk [vmem:[#allocation5 + $0xd0] sm:$0xff] %vm2829, %v2786
      %2857 = vst.msk [vmem:[#allocation5 + $0xd8] sm:$0xff] %vm2829, %v2788
      %2858 = vst.msk [vmem:[#allocation5 + $0xe0] sm:$0xff] %vm2829, %v2790
      %2859 = vst.msk [vmem:[#allocation5 + $0xe8] sm:$0xff] %vm2829, %v2792
      %2860 = vst.msk [vmem:[#allocation5 + $0xf0] sm:$0xff] %vm2829, %v2794
      %2861 = vst.msk [vmem:[#allocation5 + $0xf8] sm:$0xff] %vm2829, %v2796
      %v2862 = vld [vmem:[%s2379] sm:$0xff]
      %v2863 = vld [vmem:[%s2379 + $0x8] sm:$0xff]
      %v2864 = vld [vmem:[%s2379 + $0x18] sm:$0xff]
      %v2865 = vld [vmem:[%s2379 + $0x20] sm:$0xff]
      %v2866 = vld [vmem:[%s2379 + $0x30] sm:$0xff]
      %v2867 = vld [vmem:[%s2379 + $0x38] sm:$0xff]
      %v2868 = vld [vmem:[%s2379 + $0x48] sm:$0xff]
      %v2869 = vld [vmem:[%s2379 + $0x50] sm:$0xff]
      %v2870 = vld [vmem:[%s2379 + $0x60] sm:$0xff]
      %v2871 = vld [vmem:[%s2379 + $0x68] sm:$0xff]
      %v2872 = vld [vmem:[%s2379 + $0x78] sm:$0xff]
      %v2873 = vld [vmem:[%s2379 + $0x80] sm:$0xff]
      %v2874 = vld [vmem:[%s2379 + $0x90] sm:$0xff]
      %v2875 = vld [vmem:[%s2379 + $0x98] sm:$0xff]
      %v2876 = vld [vmem:[%s2379 + $0xa8] sm:$0xff]
      %v2877 = vld [vmem:[%s2379 + $0xb0] sm:$0xff]
      %v2878 = vld [vmem:[%s2379 + $0xc0] sm:$0xff]
      %v2879 = vld [vmem:[%s2379 + $0xc8] sm:$0xff]
      %v2880 = vld [vmem:[%s2379 + $0xd8] sm:$0xff]
      %v2881 = vld [vmem:[%s2379 + $0xe0] sm:$0xff]
      %v2882 = vld [vmem:[%s2379 + $0xf0] sm:$0xff]
      %v2883 = vld [vmem:[%s2379 + $0xf8] sm:$0xff]
      %v2884 = vld [vmem:[%s2379 + $0x108] sm:$0xff]
      %v2885 = vld [vmem:[%s2379 + $0x110] sm:$0xff]
      %v2886 = vld [vmem:[%s2379 + $0x120] sm:$0xff]
      %v2887 = vld [vmem:[%s2379 + $0x128] sm:$0xff]
      %v2888 = vld [vmem:[%s2379 + $0x138] sm:$0xff]
      %v2889 = vld [vmem:[%s2379 + $0x140] sm:$0xff]
      %v2890 = vld [vmem:[%s2379 + $0x150] sm:$0xff]
      %v2891 = vld [vmem:[%s2379 + $0x158] sm:$0xff]
      %v2892 = vld [vmem:[%s2379 + $0x168] sm:$0xff]
      %v2893 = vld [vmem:[%s2379 + $0x170] sm:$0xff]
      %2926 = vrot.lane.b32.xlu0 %v2862, 24
      %v2927 = vpop.permute.xlu0 %2926
      %2928 = vrot.lane.b32.xlu0 %v2863, 24
      %v2929 = vpop.permute.xlu0 %2928
      %2930 = vrot.lane.b32.xlu0 %v2864, 24
      %v2931 = vpop.permute.xlu0 %2930
      %2932 = vrot.lane.b32.xlu0 %v2865, 24
      %v2933 = vpop.permute.xlu0 %2932
      %2934 = vrot.lane.b32.xlu0 %v2866, 24
      %v2935 = vpop.permute.xlu0 %2934
      %2936 = vrot.lane.b32.xlu0 %v2867, 24
      %v2937 = vpop.permute.xlu0 %2936
      %2938 = vrot.lane.b32.xlu0 %v2868, 24
      %v2939 = vpop.permute.xlu0 %2938
      %2940 = vrot.lane.b32.xlu0 %v2869, 24
      %v2941 = vpop.permute.xlu0 %2940
      %2942 = vrot.lane.b32.xlu0 %v2870, 24
      %v2943 = vpop.permute.xlu0 %2942
      %2944 = vrot.lane.b32.xlu0 %v2871, 24
      %v2945 = vpop.permute.xlu0 %2944
      %2946 = vrot.lane.b32.xlu0 %v2872, 24
      %v2947 = vpop.permute.xlu0 %2946
      %2948 = vrot.lane.b32.xlu0 %v2873, 24
      %v2949 = vpop.permute.xlu0 %2948
      %2950 = vrot.lane.b32.xlu0 %v2874, 24
      %v2951 = vpop.permute.xlu0 %2950
      %2952 = vrot.lane.b32.xlu0 %v2875, 24
      %v2953 = vpop.permute.xlu0 %2952
      %2954 = vrot.lane.b32.xlu0 %v2876, 24
      %v2955 = vpop.permute.xlu0 %2954
      %2956 = vrot.lane.b32.xlu0 %v2877, 24
      %v2957 = vpop.permute.xlu0 %2956
      %2958 = vrot.lane.b32.xlu0 %v2878, 24
      %v2959 = vpop.permute.xlu0 %2958
      %2960 = vrot.lane.b32.xlu0 %v2879, 24
      %v2961 = vpop.permute.xlu0 %2960
      %2962 = vrot.lane.b32.xlu0 %v2880, 24
      %v2963 = vpop.permute.xlu0 %2962
      %2964 = vrot.lane.b32.xlu0 %v2881, 24
      %v2965 = vpop.permute.xlu0 %2964
      %2966 = vrot.lane.b32.xlu0 %v2882, 24
      %v2967 = vpop.permute.xlu0 %2966
      %2968 = vrot.lane.b32.xlu0 %v2883, 24
      %v2969 = vpop.permute.xlu0 %2968
      %2970 = vrot.lane.b32.xlu0 %v2884, 24
      %v2971 = vpop.permute.xlu0 %2970
      %2972 = vrot.lane.b32.xlu0 %v2885, 24
      %v2973 = vpop.permute.xlu0 %2972
      %2974 = vrot.lane.b32.xlu0 %v2886, 24
      %v2975 = vpop.permute.xlu0 %2974
      %2976 = vrot.lane.b32.xlu0 %v2887, 24
      %v2977 = vpop.permute.xlu0 %2976
      %2978 = vrot.lane.b32.xlu0 %v2888, 24
      %v2979 = vpop.permute.xlu0 %2978
      %2980 = vrot.lane.b32.xlu0 %v2889, 24
      %v2981 = vpop.permute.xlu0 %2980
      %2982 = vrot.lane.b32.xlu0 %v2890, 24
      %v2983 = vpop.permute.xlu0 %2982
      %2984 = vrot.lane.b32.xlu0 %v2891, 24
      %v2985 = vpop.permute.xlu0 %2984
      %2986 = vrot.lane.b32.xlu0 %v2892, 24
      %v2987 = vpop.permute.xlu0 %2986
      %2988 = vrot.lane.b32.xlu0 %v2893, 24
      %v2989 = vpop.permute.xlu0 %2988
      %vm3022 = vcmask 261312
      %3023 = vst.msk [vmem:[#allocation5] sm:$0xff] %vm3022, %v2927
      %3024 = vst.msk [vmem:[#allocation5 + $0x8] sm:$0xff] %vm3022, %v2929
      %3025 = vst.msk [vmem:[#allocation5 + $0x10] sm:$0xff] %vm3022, %v2931
      %3026 = vst.msk [vmem:[#allocation5 + $0x18] sm:$0xff] %vm3022, %v2933
      %3027 = vst.msk [vmem:[#allocation5 + $0x20] sm:$0xff] %vm3022, %v2935
      %3028 = vst.msk [vmem:[#allocation5 + $0x28] sm:$0xff] %vm3022, %v2937
      %3029 = vst.msk [vmem:[#allocation5 + $0x30] sm:$0xff] %vm3022, %v2939
      %3030 = vst.msk [vmem:[#allocation5 + $0x38] sm:$0xff] %vm3022, %v2941
      %3031 = vst.msk [vmem:[#allocation5 + $0x40] sm:$0xff] %vm3022, %v2943
      %3032 = vst.msk [vmem:[#allocation5 + $0x48] sm:$0xff] %vm3022, %v2945
      %3033 = vst.msk [vmem:[#allocation5 + $0x50] sm:$0xff] %vm3022, %v2947
      %3034 = vst.msk [vmem:[#allocation5 + $0x58] sm:$0xff] %vm3022, %v2949
      %3035 = vst.msk [vmem:[#allocation5 + $0x60] sm:$0xff] %vm3022, %v2951
      %3036 = vst.msk [vmem:[#allocation5 + $0x68] sm:$0xff] %vm3022, %v2953
      %3037 = vst.msk [vmem:[#allocation5 + $0x70] sm:$0xff] %vm3022, %v2955
      %3038 = vst.msk [vmem:[#allocation5 + $0x78] sm:$0xff] %vm3022, %v2957
      %3039 = vst.msk [vmem:[#allocation5 + $0x80] sm:$0xff] %vm3022, %v2959
      %3040 = vst.msk [vmem:[#allocation5 + $0x88] sm:$0xff] %vm3022, %v2961
      %3041 = vst.msk [vmem:[#allocation5 + $0x90] sm:$0xff] %vm3022, %v2963
      %3042 = vst.msk [vmem:[#allocation5 + $0x98] sm:$0xff] %vm3022, %v2965
      %3043 = vst.msk [vmem:[#allocation5 + $0xa0] sm:$0xff] %vm3022, %v2967
      %3044 = vst.msk [vmem:[#allocation5 + $0xa8] sm:$0xff] %vm3022, %v2969
      %3045 = vst.msk [vmem:[#allocation5 + $0xb0] sm:$0xff] %vm3022, %v2971
      %3046 = vst.msk [vmem:[#allocation5 + $0xb8] sm:$0xff] %vm3022, %v2973
      %3047 = vst.msk [vmem:[#allocation5 + $0xc0] sm:$0xff] %vm3022, %v2975
      %3048 = vst.msk [vmem:[#allocation5 + $0xc8] sm:$0xff] %vm3022, %v2977
      %3049 = vst.msk [vmem:[#allocation5 + $0xd0] sm:$0xff] %vm3022, %v2979
      %3050 = vst.msk [vmem:[#allocation5 + $0xd8] sm:$0xff] %vm3022, %v2981
      %3051 = vst.msk [vmem:[#allocation5 + $0xe0] sm:$0xff] %vm3022, %v2983
      %3052 = vst.msk [vmem:[#allocation5 + $0xe8] sm:$0xff] %vm3022, %v2985
      %3053 = vst.msk [vmem:[#allocation5 + $0xf0] sm:$0xff] %vm3022, %v2987
      %3054 = vst.msk [vmem:[#allocation5 + $0xf8] sm:$0xff] %vm3022, %v2989
      %v3055 = vld [vmem:[%s2379 + $0x1] sm:$0xff]
      %v3056 = vld [vmem:[%s2379 + $0x9] sm:$0xff]
      %v3057 = vld [vmem:[%s2379 + $0x19] sm:$0xff]
      %v3058 = vld [vmem:[%s2379 + $0x21] sm:$0xff]
      %v3059 = vld [vmem:[%s2379 + $0x31] sm:$0xff]
      %v3060 = vld [vmem:[%s2379 + $0x39] sm:$0xff]
      %v3061 = vld [vmem:[%s2379 + $0x49] sm:$0xff]
      %v3062 = vld [vmem:[%s2379 + $0x51] sm:$0xff]
      %v3063 = vld [vmem:[%s2379 + $0x61] sm:$0xff]
      %v3064 = vld [vmem:[%s2379 + $0x69] sm:$0xff]
      %v3065 = vld [vmem:[%s2379 + $0x79] sm:$0xff]
      %v3066 = vld [vmem:[%s2379 + $0x81] sm:$0xff]
      %v3067 = vld [vmem:[%s2379 + $0x91] sm:$0xff]
      %v3068 = vld [vmem:[%s2379 + $0x99] sm:$0xff]
      %v3069 = vld [vmem:[%s2379 + $0xa9] sm:$0xff]
      %v3070 = vld [vmem:[%s2379 + $0xb1] sm:$0xff]
      %v3071 = vld [vmem:[%s2379 + $0xc1] sm:$0xff]
      %v3072 = vld [vmem:[%s2379 + $0xc9] sm:$0xff]
      %v3073 = vld [vmem:[%s2379 + $0xd9] sm:$0xff]
      %v3074 = vld [vmem:[%s2379 + $0xe1] sm:$0xff]
      %v3075 = vld [vmem:[%s2379 + $0xf1] sm:$0xff]
      %v3076 = vld [vmem:[%s2379 + $0xf9] sm:$0xff]
      %v3077 = vld [vmem:[%s2379 + $0x109] sm:$0xff]
      %v3078 = vld [vmem:[%s2379 + $0x111] sm:$0xff]
      %v3079 = vld [vmem:[%s2379 + $0x121] sm:$0xff]
      %v3080 = vld [vmem:[%s2379 + $0x129] sm:$0xff]
      %v3081 = vld [vmem:[%s2379 + $0x139] sm:$0xff]
      %v3082 = vld [vmem:[%s2379 + $0x141] sm:$0xff]
      %v3083 = vld [vmem:[%s2379 + $0x151] sm:$0xff]
      %v3084 = vld [vmem:[%s2379 + $0x159] sm:$0xff]
      %v3085 = vld [vmem:[%s2379 + $0x169] sm:$0xff]
      %v3086 = vld [vmem:[%s2379 + $0x171] sm:$0xff]
      %3119 = vrot.lane.b32.xlu0 %v3055, 32
      %v3120 = vpop.permute.xlu0 %3119
      %3121 = vrot.lane.b32.xlu0 %v3056, 32
      %v3122 = vpop.permute.xlu0 %3121
      %3123 = vrot.lane.b32.xlu0 %v3057, 32
      %v3124 = vpop.permute.xlu0 %3123
      %3125 = vrot.lane.b32.xlu0 %v3058, 32
      %v3126 = vpop.permute.xlu0 %3125
      %3127 = vrot.lane.b32.xlu0 %v3059, 32
      %v3128 = vpop.permute.xlu0 %3127
      %3129 = vrot.lane.b32.xlu0 %v3060, 32
      %v3130 = vpop.permute.xlu0 %3129
      %3131 = vrot.lane.b32.xlu0 %v3061, 32
      %v3132 = vpop.permute.xlu0 %3131
      %3133 = vrot.lane.b32.xlu0 %v3062, 32
      %v3134 = vpop.permute.xlu0 %3133
      %3135 = vrot.lane.b32.xlu0 %v3063, 32
      %v3136 = vpop.permute.xlu0 %3135
      %3137 = vrot.lane.b32.xlu0 %v3064, 32
      %v3138 = vpop.permute.xlu0 %3137
      %3139 = vrot.lane.b32.xlu0 %v3065, 32
      %v3140 = vpop.permute.xlu0 %3139
      %3141 = vrot.lane.b32.xlu0 %v3066, 32
      %v3142 = vpop.permute.xlu0 %3141
      %3143 = vrot.lane.b32.xlu0 %v3067, 32
      %v3144 = vpop.permute.xlu0 %3143
      %3145 = vrot.lane.b32.xlu0 %v3068, 32
      %v3146 = vpop.permute.xlu0 %3145
      %3147 = vrot.lane.b32.xlu0 %v3069, 32
      %v3148 = vpop.permute.xlu0 %3147
      %3149 = vrot.lane.b32.xlu0 %v3070, 32
      %v3150 = vpop.permute.xlu0 %3149
      %3151 = vrot.lane.b32.xlu0 %v3071, 32
      %v3152 = vpop.permute.xlu0 %3151
      %3153 = vrot.lane.b32.xlu0 %v3072, 32
      %v3154 = vpop.permute.xlu0 %3153
      %3155 = vrot.lane.b32.xlu0 %v3073, 32
      %v3156 = vpop.permute.xlu0 %3155
      %3157 = vrot.lane.b32.xlu0 %v3074, 32
      %v3158 = vpop.permute.xlu0 %3157
      %3159 = vrot.lane.b32.xlu0 %v3075, 32
      %v3160 = vpop.permute.xlu0 %3159
      %3161 = vrot.lane.b32.xlu0 %v3076, 32
      %v3162 = vpop.permute.xlu0 %3161
      %3163 = vrot.lane.b32.xlu0 %v3077, 32
      %v3164 = vpop.permute.xlu0 %3163
      %3165 = vrot.lane.b32.xlu0 %v3078, 32
      %v3166 = vpop.permute.xlu0 %3165
      %3167 = vrot.lane.b32.xlu0 %v3079, 32
      %v3168 = vpop.permute.xlu0 %3167
      %3169 = vrot.lane.b32.xlu0 %v3080, 32
      %v3170 = vpop.permute.xlu0 %3169
      %3171 = vrot.lane.b32.xlu0 %v3081, 32
      %v3172 = vpop.permute.xlu0 %3171
      %3173 = vrot.lane.b32.xlu0 %v3082, 32
      %v3174 = vpop.permute.xlu0 %3173
      %3175 = vrot.lane.b32.xlu0 %v3083, 32
      %v3176 = vpop.permute.xlu0 %3175
      %3177 = vrot.lane.b32.xlu0 %v3084, 32
      %v3178 = vpop.permute.xlu0 %3177
      %3179 = vrot.lane.b32.xlu0 %v3085, 32
      %v3180 = vpop.permute.xlu0 %3179
      %3181 = vrot.lane.b32.xlu0 %v3086, 32
      %v3182 = vpop.permute.xlu0 %3181
      %vm3215 = vcmask 326912
      %3216 = vst.msk [vmem:[#allocation5] sm:$0xff] %vm3215, %v3120
      %3217 = vst.msk [vmem:[#allocation5 + $0x8] sm:$0xff] %vm3215, %v3122
      %3218 = vst.msk [vmem:[#allocation5 + $0x10] sm:$0xff] %vm3215, %v3124
      %3219 = vst.msk [vmem:[#allocation5 + $0x18] sm:$0xff] %vm3215, %v3126
      %3220 = vst.msk [vmem:[#allocation5 + $0x20] sm:$0xff] %vm3215, %v3128
      %3221 = vst.msk [vmem:[#allocation5 + $0x28] sm:$0xff] %vm3215, %v3130
      %3222 = vst.msk [vmem:[#allocation5 + $0x30] sm:$0xff] %vm3215, %v3132
      %3223 = vst.msk [vmem:[#allocation5 + $0x38] sm:$0xff] %vm3215, %v3134
      %3224 = vst.msk [vmem:[#allocation5 + $0x40] sm:$0xff] %vm3215, %v3136
      %3225 = vst.msk [vmem:[#allocation5 + $0x48] sm:$0xff] %vm3215, %v3138
      %3226 = vst.msk [vmem:[#allocation5 + $0x50] sm:$0xff] %vm3215, %v3140
      %3227 = vst.msk [vmem:[#allocation5 + $0x58] sm:$0xff] %vm3215, %v3142
      %3228 = vst.msk [vmem:[#allocation5 + $0x60] sm:$0xff] %vm3215, %v3144
      %3229 = vst.msk [vmem:[#allocation5 + $0x68] sm:$0xff] %vm3215, %v3146
      %3230 = vst.msk [vmem:[#allocation5 + $0x70] sm:$0xff] %vm3215, %v3148
      %3231 = vst.msk [vmem:[#allocation5 + $0x78] sm:$0xff] %vm3215, %v3150
      %3232 = vst.msk [vmem:[#allocation5 + $0x80] sm:$0xff] %vm3215, %v3152
      %3233 = vst.msk [vmem:[#allocation5 + $0x88] sm:$0xff] %vm3215, %v3154
      %3234 = vst.msk [vmem:[#allocation5 + $0x90] sm:$0xff] %vm3215, %v3156
      %3235 = vst.msk [vmem:[#allocation5 + $0x98] sm:$0xff] %vm3215, %v3158
      %3236 = vst.msk [vmem:[#allocation5 + $0xa0] sm:$0xff] %vm3215, %v3160
      %3237 = vst.msk [vmem:[#allocation5 + $0xa8] sm:$0xff] %vm3215, %v3162
      %3238 = vst.msk [vmem:[#allocation5 + $0xb0] sm:$0xff] %vm3215, %v3164
      %3239 = vst.msk [vmem:[#allocation5 + $0xb8] sm:$0xff] %vm3215, %v3166
      %3240 = vst.msk [vmem:[#allocation5 + $0xc0] sm:$0xff] %vm3215, %v3168
      %3241 = vst.msk [vmem:[#allocation5 + $0xc8] sm:$0xff] %vm3215, %v3170
      %3242 = vst.msk [vmem:[#allocation5 + $0xd0] sm:$0xff] %vm3215, %v3172
      %3243 = vst.msk [vmem:[#allocation5 + $0xd8] sm:$0xff] %vm3215, %v3174
      %3244 = vst.msk [vmem:[#allocation5 + $0xe0] sm:$0xff] %vm3215, %v3176
      %3245 = vst.msk [vmem:[#allocation5 + $0xe8] sm:$0xff] %vm3215, %v3178
      %3246 = vst.msk [vmem:[#allocation5 + $0xf0] sm:$0xff] %vm3215, %v3180
      %3247 = vst.msk [vmem:[#allocation5 + $0xf8] sm:$0xff] %vm3215, %v3182
      %v3248 = vld [vmem:[%s2379 + $0x2] sm:$0xff]
      %v3249 = vld [vmem:[%s2379 + $0xa] sm:$0xff]
      %v3250 = vld [vmem:[%s2379 + $0x1a] sm:$0xff]
      %v3251 = vld [vmem:[%s2379 + $0x22] sm:$0xff]
      %v3252 = vld [vmem:[%s2379 + $0x32] sm:$0xff]
      %v3253 = vld [vmem:[%s2379 + $0x3a] sm:$0xff]
      %v3254 = vld [vmem:[%s2379 + $0x4a] sm:$0xff]
      %v3255 = vld [vmem:[%s2379 + $0x52] sm:$0xff]
      %v3256 = vld [vmem:[%s2379 + $0x62] sm:$0xff]
      %v3257 = vld [vmem:[%s2379 + $0x6a] sm:$0xff]
      %v3258 = vld [vmem:[%s2379 + $0x7a] sm:$0xff]
      %v3259 = vld [vmem:[%s2379 + $0x82] sm:$0xff]
      %v3260 = vld [vmem:[%s2379 + $0x92] sm:$0xff]
      %v3261 = vld [vmem:[%s2379 + $0x9a] sm:$0xff]
      %v3262 = vld [vmem:[%s2379 + $0xaa] sm:$0xff]
      %v3263 = vld [vmem:[%s2379 + $0xb2] sm:$0xff]
      %v3264 = vld [vmem:[%s2379 + $0xc2] sm:$0xff]
      %v3265 = vld [vmem:[%s2379 + $0xca] sm:$0xff]
      %v3266 = vld [vmem:[%s2379 + $0xda] sm:$0xff]
      %v3267 = vld [vmem:[%s2379 + $0xe2] sm:$0xff]
      %v3268 = vld [vmem:[%s2379 + $0xf2] sm:$0xff]
      %v3269 = vld [vmem:[%s2379 + $0xfa] sm:$0xff]
      %v3270 = vld [vmem:[%s2379 + $0x10a] sm:$0xff]
      %v3271 = vld [vmem:[%s2379 + $0x112] sm:$0xff]
      %v3272 = vld [vmem:[%s2379 + $0x122] sm:$0xff]
      %v3273 = vld [vmem:[%s2379 + $0x12a] sm:$0xff]
      %v3274 = vld [vmem:[%s2379 + $0x13a] sm:$0xff]
      %v3275 = vld [vmem:[%s2379 + $0x142] sm:$0xff]
      %v3276 = vld [vmem:[%s2379 + $0x152] sm:$0xff]
      %v3277 = vld [vmem:[%s2379 + $0x15a] sm:$0xff]
      %v3278 = vld [vmem:[%s2379 + $0x16a] sm:$0xff]
      %v3279 = vld [vmem:[%s2379 + $0x172] sm:$0xff]
      %3312 = vrot.lane.b32.xlu0 %v3248, 40
      %v3313 = vpop.permute.xlu0 %3312
      %3314 = vrot.lane.b32.xlu0 %v3249, 40
      %v3315 = vpop.permute.xlu0 %3314
      %3316 = vrot.lane.b32.xlu0 %v3250, 40
      %v3317 = vpop.permute.xlu0 %3316
      %3318 = vrot.lane.b32.xlu0 %v3251, 40
      %v3319 = vpop.permute.xlu0 %3318
      %3320 = vrot.lane.b32.xlu0 %v3252, 40
      %v3321 = vpop.permute.xlu0 %3320
      %3322 = vrot.lane.b32.xlu0 %v3253, 40
      %v3323 = vpop.permute.xlu0 %3322
      %3324 = vrot.lane.b32.xlu0 %v3254, 40
      %v3325 = vpop.permute.xlu0 %3324
      %3326 = vrot.lane.b32.xlu0 %v3255, 40
      %v3327 = vpop.permute.xlu0 %3326
      %3328 = vrot.lane.b32.xlu0 %v3256, 40
      %v3329 = vpop.permute.xlu0 %3328
      %3330 = vrot.lane.b32.xlu0 %v3257, 40
      %v3331 = vpop.permute.xlu0 %3330
      %3332 = vrot.lane.b32.xlu0 %v3258, 40
      %v3333 = vpop.permute.xlu0 %3332
      %3334 = vrot.lane.b32.xlu0 %v3259, 40
      %v3335 = vpop.permute.xlu0 %3334
      %3336 = vrot.lane.b32.xlu0 %v3260, 40
      %v3337 = vpop.permute.xlu0 %3336
      %3338 = vrot.lane.b32.xlu0 %v3261, 40
      %v3339 = vpop.permute.xlu0 %3338
      %3340 = vrot.lane.b32.xlu0 %v3262, 40
      %v3341 = vpop.permute.xlu0 %3340
      %3342 = vrot.lane.b32.xlu0 %v3263, 40
      %v3343 = vpop.permute.xlu0 %3342
      %3344 = vrot.lane.b32.xlu0 %v3264, 40
      %v3345 = vpop.permute.xlu0 %3344
      %3346 = vrot.lane.b32.xlu0 %v3265, 40
      %v3347 = vpop.permute.xlu0 %3346
      %3348 = vrot.lane.b32.xlu0 %v3266, 40
      %v3349 = vpop.permute.xlu0 %3348
      %3350 = vrot.lane.b32.xlu0 %v3267, 40
      %v3351 = vpop.permute.xlu0 %3350
      %3352 = vrot.lane.b32.xlu0 %v3268, 40
      %v3353 = vpop.permute.xlu0 %3352
      %3354 = vrot.lane.b32.xlu0 %v3269, 40
      %v3355 = vpop.permute.xlu0 %3354
      %3356 = vrot.lane.b32.xlu0 %v3270, 40
      %v3357 = vpop.permute.xlu0 %3356
      %3358 = vrot.lane.b32.xlu0 %v3271, 40
      %v3359 = vpop.permute.xlu0 %3358
      %3360 = vrot.lane.b32.xlu0 %v3272, 40
      %v3361 = vpop.permute.xlu0 %3360
      %3362 = vrot.lane.b32.xlu0 %v3273, 40
      %v3363 = vpop.permute.xlu0 %3362
      %3364 = vrot.lane.b32.xlu0 %v3274, 40
      %v3365 = vpop.permute.xlu0 %3364
      %3366 = vrot.lane.b32.xlu0 %v3275, 40
      %v3367 = vpop.permute.xlu0 %3366
      %3368 = vrot.lane.b32.xlu0 %v3276, 40
      %v3369 = vpop.permute.xlu0 %3368
      %3370 = vrot.lane.b32.xlu0 %v3277, 40
      %v3371 = vpop.permute.xlu0 %3370
      %3372 = vrot.lane.b32.xlu0 %v3278, 40
      %v3373 = vpop.permute.xlu0 %3372
      %3374 = vrot.lane.b32.xlu0 %v3279, 40
      %v3375 = vpop.permute.xlu0 %3374
      %vm3408 = vcmask 392512
      %3409 = vst.msk [vmem:[#allocation5] sm:$0xff] %vm3408, %v3313
      %3410 = vst.msk [vmem:[#allocation5 + $0x8] sm:$0xff] %vm3408, %v3315
      %3411 = vst.msk [vmem:[#allocation5 + $0x10] sm:$0xff] %vm3408, %v3317
      %3412 = vst.msk [vmem:[#allocation5 + $0x18] sm:$0xff] %vm3408, %v3319
      %3413 = vst.msk [vmem:[#allocation5 + $0x20] sm:$0xff] %vm3408, %v3321
      %3414 = vst.msk [vmem:[#allocation5 + $0x28] sm:$0xff] %vm3408, %v3323
      %3415 = vst.msk [vmem:[#allocation5 + $0x30] sm:$0xff] %vm3408, %v3325
      %3416 = vst.msk [vmem:[#allocation5 + $0x38] sm:$0xff] %vm3408, %v3327
      %3417 = vst.msk [vmem:[#allocation5 + $0x40] sm:$0xff] %vm3408, %v3329
      %3418 = vst.msk [vmem:[#allocation5 + $0x48] sm:$0xff] %vm3408, %v3331
      %3419 = vst.msk [vmem:[#allocation5 + $0x50] sm:$0xff] %vm3408, %v3333
      %3420 = vst.msk [vmem:[#allocation5 + $0x58] sm:$0xff] %vm3408, %v3335
      %3421 = vst.msk [vmem:[#allocation5 + $0x60] sm:$0xff] %vm3408, %v3337
      %3422 = vst.msk [vmem:[#allocation5 + $0x68] sm:$0xff] %vm3408, %v3339
      %3423 = vst.msk [vmem:[#allocation5 + $0x70] sm:$0xff] %vm3408, %v3341
      %3424 = vst.msk [vmem:[#allocation5 + $0x78] sm:$0xff] %vm3408, %v3343
      %3425 = vst.msk [vmem:[#allocation5 + $0x80] sm:$0xff] %vm3408, %v3345
      %3426 = vst.msk [vmem:[#allocation5 + $0x88] sm:$0xff] %vm3408, %v3347
      %3427 = vst.msk [vmem:[#allocation5 + $0x90] sm:$0xff] %vm3408, %v3349
      %3428 = vst.msk [vmem:[#allocation5 + $0x98] sm:$0xff] %vm3408, %v3351
      %3429 = vst.msk [vmem:[#allocation5 + $0xa0] sm:$0xff] %vm3408, %v3353
      %3430 = vst.msk [vmem:[#allocation5 + $0xa8] sm:$0xff] %vm3408, %v3355
      %3431 = vst.msk [vmem:[#allocation5 + $0xb0] sm:$0xff] %vm3408, %v3357
      %3432 = vst.msk [vmem:[#allocation5 + $0xb8] sm:$0xff] %vm3408, %v3359
      %3433 = vst.msk [vmem:[#allocation5 + $0xc0] sm:$0xff] %vm3408, %v3361
      %3434 = vst.msk [vmem:[#allocation5 + $0xc8] sm:$0xff] %vm3408, %v3363
      %3435 = vst.msk [vmem:[#allocation5 + $0xd0] sm:$0xff] %vm3408, %v3365
      %3436 = vst.msk [vmem:[#allocation5 + $0xd8] sm:$0xff] %vm3408, %v3367
      %3437 = vst.msk [vmem:[#allocation5 + $0xe0] sm:$0xff] %vm3408, %v3369
      %3438 = vst.msk [vmem:[#allocation5 + $0xe8] sm:$0xff] %vm3408, %v3371
      %3439 = vst.msk [vmem:[#allocation5 + $0xf0] sm:$0xff] %vm3408, %v3373
      %3440 = vst.msk [vmem:[#allocation5 + $0xf8] sm:$0xff] %vm3408, %v3375
      %s3441 = scalar_lea.vmem [#allocation4], 48
      %v3442 = vld [vmem:[%s3441] sm:$0xff]
      %v3443 = vld [vmem:[%s3441 + $0x8] sm:$0xff]
      %v3444 = vld [vmem:[%s3441 + $0x18] sm:$0xff]
      %v3445 = vld [vmem:[%s3441 + $0x20] sm:$0xff]
      %v3446 = vld [vmem:[%s3441 + $0x30] sm:$0xff]
      %v3447 = vld [vmem:[%s3441 + $0x38] sm:$0xff]
      %v3448 = vld [vmem:[%s3441 + $0x48] sm:$0xff]
      %v3449 = vld [vmem:[%s3441 + $0x50] sm:$0xff]
      %v3450 = vld [vmem:[%s3441 + $0x60] sm:$0xff]
      %v3451 = vld [vmem:[%s3441 + $0x68] sm:$0xff]
      %v3452 = vld [vmem:[%s3441 + $0x78] sm:$0xff]
      %v3453 = vld [vmem:[%s3441 + $0x80] sm:$0xff]
      %v3454 = vld [vmem:[%s3441 + $0x90] sm:$0xff]
      %v3455 = vld [vmem:[%s3441 + $0x98] sm:$0xff]
      %v3456 = vld [vmem:[%s3441 + $0xa8] sm:$0xff]
      %v3457 = vld [vmem:[%s3441 + $0xb0] sm:$0xff]
      %v3458 = vld [vmem:[%s3441 + $0xc0] sm:$0xff]
      %v3459 = vld [vmem:[%s3441 + $0xc8] sm:$0xff]
      %v3460 = vld [vmem:[%s3441 + $0xd8] sm:$0xff]
      %v3461 = vld [vmem:[%s3441 + $0xe0] sm:$0xff]
      %v3462 = vld [vmem:[%s3441 + $0xf0] sm:$0xff]
      %v3463 = vld [vmem:[%s3441 + $0xf8] sm:$0xff]
      %v3464 = vld [vmem:[%s3441 + $0x108] sm:$0xff]
      %v3465 = vld [vmem:[%s3441 + $0x110] sm:$0xff]
      %v3466 = vld [vmem:[%s3441 + $0x120] sm:$0xff]
      %v3467 = vld [vmem:[%s3441 + $0x128] sm:$0xff]
      %v3468 = vld [vmem:[%s3441 + $0x138] sm:$0xff]
      %v3469 = vld [vmem:[%s3441 + $0x140] sm:$0xff]
      %v3470 = vld [vmem:[%s3441 + $0x150] sm:$0xff]
      %v3471 = vld [vmem:[%s3441 + $0x158] sm:$0xff]
      %v3472 = vld [vmem:[%s3441 + $0x168] sm:$0xff]
      %v3473 = vld [vmem:[%s3441 + $0x170] sm:$0xff]
      %3506 = vrot.lane.b32.xlu0 %v3442, 48
      %v3507 = vpop.permute.xlu0 %3506
      %3508 = vrot.lane.b32.xlu0 %v3443, 48
      %v3509 = vpop.permute.xlu0 %3508
      %3510 = vrot.lane.b32.xlu0 %v3444, 48
      %v3511 = vpop.permute.xlu0 %3510
      %3512 = vrot.lane.b32.xlu0 %v3445, 48
      %v3513 = vpop.permute.xlu0 %3512
      %3514 = vrot.lane.b32.xlu0 %v3446, 48
      %v3515 = vpop.permute.xlu0 %3514
      %3516 = vrot.lane.b32.xlu0 %v3447, 48
      %v3517 = vpop.permute.xlu0 %3516
      %3518 = vrot.lane.b32.xlu0 %v3448, 48
      %v3519 = vpop.permute.xlu0 %3518
      %3520 = vrot.lane.b32.xlu0 %v3449, 48
      %v3521 = vpop.permute.xlu0 %3520
      %3522 = vrot.lane.b32.xlu0 %v3450, 48
      %v3523 = vpop.permute.xlu0 %3522
      %3524 = vrot.lane.b32.xlu0 %v3451, 48
      %v3525 = vpop.permute.xlu0 %3524
      %3526 = vrot.lane.b32.xlu0 %v3452, 48
      %v3527 = vpop.permute.xlu0 %3526
      %3528 = vrot.lane.b32.xlu0 %v3453, 48
      %v3529 = vpop.permute.xlu0 %3528
      %3530 = vrot.lane.b32.xlu0 %v3454, 48
      %v3531 = vpop.permute.xlu0 %3530
      %3532 = vrot.lane.b32.xlu0 %v3455, 48
      %v3533 = vpop.permute.xlu0 %3532
      %3534 = vrot.lane.b32.xlu0 %v3456, 48
      %v3535 = vpop.permute.xlu0 %3534
      %3536 = vrot.lane.b32.xlu0 %v3457, 48
      %v3537 = vpop.permute.xlu0 %3536
      %3538 = vrot.lane.b32.xlu0 %v3458, 48
      %v3539 = vpop.permute.xlu0 %3538
      %3540 = vrot.lane.b32.xlu0 %v3459, 48
      %v3541 = vpop.permute.xlu0 %3540
      %3542 = vrot.lane.b32.xlu0 %v3460, 48
      %v3543 = vpop.permute.xlu0 %3542
      %3544 = vrot.lane.b32.xlu0 %v3461, 48
      %v3545 = vpop.permute.xlu0 %3544
      %3546 = vrot.lane.b32.xlu0 %v3462, 48
      %v3547 = vpop.permute.xlu0 %3546
      %3548 = vrot.lane.b32.xlu0 %v3463, 48
      %v3549 = vpop.permute.xlu0 %3548
      %3550 = vrot.lane.b32.xlu0 %v3464, 48
      %v3551 = vpop.permute.xlu0 %3550
      %3552 = vrot.lane.b32.xlu0 %v3465, 48
      %v3553 = vpop.permute.xlu0 %3552
      %3554 = vrot.lane.b32.xlu0 %v3466, 48
      %v3555 = vpop.permute.xlu0 %3554
      %3556 = vrot.lane.b32.xlu0 %v3467, 48
      %v3557 = vpop.permute.xlu0 %3556
      %3558 = vrot.lane.b32.xlu0 %v3468, 48
      %v3559 = vpop.permute.xlu0 %3558
      %3560 = vrot.lane.b32.xlu0 %v3469, 48
      %v3561 = vpop.permute.xlu0 %3560
      %3562 = vrot.lane.b32.xlu0 %v3470, 48
      %v3563 = vpop.permute.xlu0 %3562
      %3564 = vrot.lane.b32.xlu0 %v3471, 48
      %v3565 = vpop.permute.xlu0 %3564
      %3566 = vrot.lane.b32.xlu0 %v3472, 48
      %v3567 = vpop.permute.xlu0 %3566
      %3568 = vrot.lane.b32.xlu0 %v3473, 48
      %v3569 = vpop.permute.xlu0 %3568
      %vm3602 = vcmask 458112
      %3603 = vst.msk [vmem:[#allocation5] sm:$0xff] %vm3602, %v3507
      %3604 = vst.msk [vmem:[#allocation5 + $0x8] sm:$0xff] %vm3602, %v3509
      %3605 = vst.msk [vmem:[#allocation5 + $0x10] sm:$0xff] %vm3602, %v3511
      %3606 = vst.msk [vmem:[#allocation5 + $0x18] sm:$0xff] %vm3602, %v3513
      %3607 = vst.msk [vmem:[#allocation5 + $0x20] sm:$0xff] %vm3602, %v3515
      %3608 = vst.msk [vmem:[#allocation5 + $0x28] sm:$0xff] %vm3602, %v3517
      %3609 = vst.msk [vmem:[#allocation5 + $0x30] sm:$0xff] %vm3602, %v3519
      %3610 = vst.msk [vmem:[#allocation5 + $0x38] sm:$0xff] %vm3602, %v3521
      %3611 = vst.msk [vmem:[#allocation5 + $0x40] sm:$0xff] %vm3602, %v3523
      %3612 = vst.msk [vmem:[#allocation5 + $0x48] sm:$0xff] %vm3602, %v3525
      %3613 = vst.msk [vmem:[#allocation5 + $0x50] sm:$0xff] %vm3602, %v3527
      %3614 = vst.msk [vmem:[#allocation5 + $0x58] sm:$0xff] %vm3602, %v3529
      %3615 = vst.msk [vmem:[#allocation5 + $0x60] sm:$0xff] %vm3602, %v3531
      %3616 = vst.msk [vmem:[#allocation5 + $0x68] sm:$0xff] %vm3602, %v3533
      %3617 = vst.msk [vmem:[#allocation5 + $0x70] sm:$0xff] %vm3602, %v3535
      %3618 = vst.msk [vmem:[#allocation5 + $0x78] sm:$0xff] %vm3602, %v3537
      %3619 = vst.msk [vmem:[#allocation5 + $0x80] sm:$0xff] %vm3602, %v3539
      %3620 = vst.msk [vmem:[#allocation5 + $0x88] sm:$0xff] %vm3602, %v3541
      %3621 = vst.msk [vmem:[#allocation5 + $0x90] sm:$0xff] %vm3602, %v3543
      %3622 = vst.msk [vmem:[#allocation5 + $0x98] sm:$0xff] %vm3602, %v3545
      %3623 = vst.msk [vmem:[#allocation5 + $0xa0] sm:$0xff] %vm3602, %v3547
      %3624 = vst.msk [vmem:[#allocation5 + $0xa8] sm:$0xff] %vm3602, %v3549
      %3625 = vst.msk [vmem:[#allocation5 + $0xb0] sm:$0xff] %vm3602, %v3551
      %3626 = vst.msk [vmem:[#allocation5 + $0xb8] sm:$0xff] %vm3602, %v3553
      %3627 = vst.msk [vmem:[#allocation5 + $0xc0] sm:$0xff] %vm3602, %v3555
      %3628 = vst.msk [vmem:[#allocation5 + $0xc8] sm:$0xff] %vm3602, %v3557
      %3629 = vst.msk [vmem:[#allocation5 + $0xd0] sm:$0xff] %vm3602, %v3559
      %3630 = vst.msk [vmem:[#allocation5 + $0xd8] sm:$0xff] %vm3602, %v3561
      %3631 = vst.msk [vmem:[#allocation5 + $0xe0] sm:$0xff] %vm3602, %v3563
      %3632 = vst.msk [vmem:[#allocation5 + $0xe8] sm:$0xff] %vm3602, %v3565
      %3633 = vst.msk [vmem:[#allocation5 + $0xf0] sm:$0xff] %vm3602, %v3567
      %3634 = vst.msk [vmem:[#allocation5 + $0xf8] sm:$0xff] %vm3602, %v3569
      %v3635 = vld [vmem:[%s3441 + $0x1] sm:$0xff]
      %v3636 = vld [vmem:[%s3441 + $0x9] sm:$0xff]
      %v3637 = vld [vmem:[%s3441 + $0x19] sm:$0xff]
      %v3638 = vld [vmem:[%s3441 + $0x21] sm:$0xff]
      %v3639 = vld [vmem:[%s3441 + $0x31] sm:$0xff]
      %v3640 = vld [vmem:[%s3441 + $0x39] sm:$0xff]
      %v3641 = vld [vmem:[%s3441 + $0x49] sm:$0xff]
      %v3642 = vld [vmem:[%s3441 + $0x51] sm:$0xff]
      %v3643 = vld [vmem:[%s3441 + $0x61] sm:$0xff]
      %v3644 = vld [vmem:[%s3441 + $0x69] sm:$0xff]
      %v3645 = vld [vmem:[%s3441 + $0x79] sm:$0xff]
      %v3646 = vld [vmem:[%s3441 + $0x81] sm:$0xff]
      %v3647 = vld [vmem:[%s3441 + $0x91] sm:$0xff]
      %v3648 = vld [vmem:[%s3441 + $0x99] sm:$0xff]
      %v3649 = vld [vmem:[%s3441 + $0xa9] sm:$0xff]
      %v3650 = vld [vmem:[%s3441 + $0xb1] sm:$0xff]
      %v3651 = vld [vmem:[%s3441 + $0xc1] sm:$0xff]
      %v3652 = vld [vmem:[%s3441 + $0xc9] sm:$0xff]
      %v3653 = vld [vmem:[%s3441 + $0xd9] sm:$0xff]
      %v3654 = vld [vmem:[%s3441 + $0xe1] sm:$0xff]
      %v3655 = vld [vmem:[%s3441 + $0xf1] sm:$0xff]
      %v3656 = vld [vmem:[%s3441 + $0xf9] sm:$0xff]
      %v3657 = vld [vmem:[%s3441 + $0x109] sm:$0xff]
      %v3658 = vld [vmem:[%s3441 + $0x111] sm:$0xff]
      %v3659 = vld [vmem:[%s3441 + $0x121] sm:$0xff]
      %v3660 = vld [vmem:[%s3441 + $0x129] sm:$0xff]
      %v3661 = vld [vmem:[%s3441 + $0x139] sm:$0xff]
      %v3662 = vld [vmem:[%s3441 + $0x141] sm:$0xff]
      %v3663 = vld [vmem:[%s3441 + $0x151] sm:$0xff]
      %v3664 = vld [vmem:[%s3441 + $0x159] sm:$0xff]
      %v3665 = vld [vmem:[%s3441 + $0x169] sm:$0xff]
      %v3666 = vld [vmem:[%s3441 + $0x171] sm:$0xff]
      %3699 = vrot.lane.b32.xlu0 %v3635, 56
      %v3700 = vpop.permute.xlu0 %3699
      %3701 = vrot.lane.b32.xlu0 %v3636, 56
      %v3702 = vpop.permute.xlu0 %3701
      %3703 = vrot.lane.b32.xlu0 %v3637, 56
      %v3704 = vpop.permute.xlu0 %3703
      %3705 = vrot.lane.b32.xlu0 %v3638, 56
      %v3706 = vpop.permute.xlu0 %3705
      %3707 = vrot.lane.b32.xlu0 %v3639, 56
      %v3708 = vpop.permute.xlu0 %3707
      %3709 = vrot.lane.b32.xlu0 %v3640, 56
      %v3710 = vpop.permute.xlu0 %3709
      %3711 = vrot.lane.b32.xlu0 %v3641, 56
      %v3712 = vpop.permute.xlu0 %3711
      %3713 = vrot.lane.b32.xlu0 %v3642, 56
      %v3714 = vpop.permute.xlu0 %3713
      %3715 = vrot.lane.b32.xlu0 %v3643, 56
      %v3716 = vpop.permute.xlu0 %3715
      %3717 = vrot.lane.b32.xlu0 %v3644, 56
      %v3718 = vpop.permute.xlu0 %3717
      %3719 = vrot.lane.b32.xlu0 %v3645, 56
      %v3720 = vpop.permute.xlu0 %3719
      %3721 = vrot.lane.b32.xlu0 %v3646, 56
      %v3722 = vpop.permute.xlu0 %3721
      %3723 = vrot.lane.b32.xlu0 %v3647, 56
      %v3724 = vpop.permute.xlu0 %3723
      %3725 = vrot.lane.b32.xlu0 %v3648, 56
      %v3726 = vpop.permute.xlu0 %3725
      %3727 = vrot.lane.b32.xlu0 %v3649, 56
      %v3728 = vpop.permute.xlu0 %3727
      %3729 = vrot.lane.b32.xlu0 %v3650, 56
      %v3730 = vpop.permute.xlu0 %3729
      %3731 = vrot.lane.b32.xlu0 %v3651, 56
      %v3732 = vpop.permute.xlu0 %3731
      %3733 = vrot.lane.b32.xlu0 %v3652, 56
      %v3734 = vpop.permute.xlu0 %3733
      %3735 = vrot.lane.b32.xlu0 %v3653, 56
      %v3736 = vpop.permute.xlu0 %3735
      %3737 = vrot.lane.b32.xlu0 %v3654, 56
      %v3738 = vpop.permute.xlu0 %3737
      %3739 = vrot.lane.b32.xlu0 %v3655, 56
      %v3740 = vpop.permute.xlu0 %3739
      %3741 = vrot.lane.b32.xlu0 %v3656, 56
      %v3742 = vpop.permute.xlu0 %3741
      %3743 = vrot.lane.b32.xlu0 %v3657, 56
      %v3744 = vpop.permute.xlu0 %3743
      %3745 = vrot.lane.b32.xlu0 %v3658, 56
      %v3746 = vpop.permute.xlu0 %3745
      %3747 = vrot.lane.b32.xlu0 %v3659, 56
      %v3748 = vpop.permute.xlu0 %3747
      %3749 = vrot.lane.b32.xlu0 %v3660, 56
      %v3750 = vpop.permute.xlu0 %3749
      %3751 = vrot.lane.b32.xlu0 %v3661, 56
      %v3752 = vpop.permute.xlu0 %3751
      %3753 = vrot.lane.b32.xlu0 %v3662, 56
      %v3754 = vpop.permute.xlu0 %3753
      %3755 = vrot.lane.b32.xlu0 %v3663, 56
      %v3756 = vpop.permute.xlu0 %3755
      %3757 = vrot.lane.b32.xlu0 %v3664, 56
      %v3758 = vpop.permute.xlu0 %3757
      %3759 = vrot.lane.b32.xlu0 %v3665, 56
      %v3760 = vpop.permute.xlu0 %3759
      %3761 = vrot.lane.b32.xlu0 %v3666, 56
      %v3762 = vpop.permute.xlu0 %3761
      %vm3795 = vcmask 523712
      %3796 = vst.msk [vmem:[#allocation5] sm:$0xff] %vm3795, %v3700
      %3797 = vst.msk [vmem:[#allocation5 + $0x8] sm:$0xff] %vm3795, %v3702
      %3798 = vst.msk [vmem:[#allocation5 + $0x10] sm:$0xff] %vm3795, %v3704
      %3799 = vst.msk [vmem:[#allocation5 + $0x18] sm:$0xff] %vm3795, %v3706
      %3800 = vst.msk [vmem:[#allocation5 + $0x20] sm:$0xff] %vm3795, %v3708
      %3801 = vst.msk [vmem:[#allocation5 + $0x28] sm:$0xff] %vm3795, %v3710
      %3802 = vst.msk [vmem:[#allocation5 + $0x30] sm:$0xff] %vm3795, %v3712
      %3803 = vst.msk [vmem:[#allocation5 + $0x38] sm:$0xff] %vm3795, %v3714
      %3804 = vst.msk [vmem:[#allocation5 + $0x40] sm:$0xff] %vm3795, %v3716
      %3805 = vst.msk [vmem:[#allocation5 + $0x48] sm:$0xff] %vm3795, %v3718
      %3806 = vst.msk [vmem:[#allocation5 + $0x50] sm:$0xff] %vm3795, %v3720
      %3807 = vst.msk [vmem:[#allocation5 + $0x58] sm:$0xff] %vm3795, %v3722
      %3808 = vst.msk [vmem:[#allocation5 + $0x60] sm:$0xff] %vm3795, %v3724
      %3809 = vst.msk [vmem:[#allocation5 + $0x68] sm:$0xff] %vm3795, %v3726
      %3810 = vst.msk [vmem:[#allocation5 + $0x70] sm:$0xff] %vm3795, %v3728
      %3811 = vst.msk [vmem:[#allocation5 + $0x78] sm:$0xff] %vm3795, %v3730
      %3812 = vst.msk [vmem:[#allocation5 + $0x80] sm:$0xff] %vm3795, %v3732
      %3813 = vst.msk [vmem:[#allocation5 + $0x88] sm:$0xff] %vm3795, %v3734
      %3814 = vst.msk [vmem:[#allocation5 + $0x90] sm:$0xff] %vm3795, %v3736
      %3815 = vst.msk [vmem:[#allocation5 + $0x98] sm:$0xff] %vm3795, %v3738
      %3816 = vst.msk [vmem:[#allocation5 + $0xa0] sm:$0xff] %vm3795, %v3740
      %3817 = vst.msk [vmem:[#allocation5 + $0xa8] sm:$0xff] %vm3795, %v3742
      %3818 = vst.msk [vmem:[#allocation5 + $0xb0] sm:$0xff] %vm3795, %v3744
      %3819 = vst.msk [vmem:[#allocation5 + $0xb8] sm:$0xff] %vm3795, %v3746
      %3820 = vst.msk [vmem:[#allocation5 + $0xc0] sm:$0xff] %vm3795, %v3748
      %3821 = vst.msk [vmem:[#allocation5 + $0xc8] sm:$0xff] %vm3795, %v3750
      %3822 = vst.msk [vmem:[#allocation5 + $0xd0] sm:$0xff] %vm3795, %v3752
      %3823 = vst.msk [vmem:[#allocation5 + $0xd8] sm:$0xff] %vm3795, %v3754
      %3824 = vst.msk [vmem:[#allocation5 + $0xe0] sm:$0xff] %vm3795, %v3756
      %3825 = vst.msk [vmem:[#allocation5 + $0xe8] sm:$0xff] %vm3795, %v3758
      %3826 = vst.msk [vmem:[#allocation5 + $0xf0] sm:$0xff] %vm3795, %v3760
      %3827 = vst.msk [vmem:[#allocation5 + $0xf8] sm:$0xff] %vm3795, %v3762
      %v3828 = vld [vmem:[%s3441 + $0x2] sm:$0xff]
      %v3829 = vld [vmem:[%s3441 + $0xa] sm:$0xff]
      %v3830 = vld [vmem:[%s3441 + $0x1a] sm:$0xff]
      %v3831 = vld [vmem:[%s3441 + $0x22] sm:$0xff]
      %v3832 = vld [vmem:[%s3441 + $0x32] sm:$0xff]
      %v3833 = vld [vmem:[%s3441 + $0x3a] sm:$0xff]
      %v3834 = vld [vmem:[%s3441 + $0x4a] sm:$0xff]
      %v3835 = vld [vmem:[%s3441 + $0x52] sm:$0xff]
      %v3836 = vld [vmem:[%s3441 + $0x62] sm:$0xff]
      %v3837 = vld [vmem:[%s3441 + $0x6a] sm:$0xff]
      %v3838 = vld [vmem:[%s3441 + $0x7a] sm:$0xff]
      %v3839 = vld [vmem:[%s3441 + $0x82] sm:$0xff]
      %v3840 = vld [vmem:[%s3441 + $0x92] sm:$0xff]
      %v3841 = vld [vmem:[%s3441 + $0x9a] sm:$0xff]
      %v3842 = vld [vmem:[%s3441 + $0xaa] sm:$0xff]
      %v3843 = vld [vmem:[%s3441 + $0xb2] sm:$0xff]
      %v3844 = vld [vmem:[%s3441 + $0xc2] sm:$0xff]
      %v3845 = vld [vmem:[%s3441 + $0xca] sm:$0xff]
      %v3846 = vld [vmem:[%s3441 + $0xda] sm:$0xff]
      %v3847 = vld [vmem:[%s3441 + $0xe2] sm:$0xff]
      %v3848 = vld [vmem:[%s3441 + $0xf2] sm:$0xff]
      %v3849 = vld [vmem:[%s3441 + $0xfa] sm:$0xff]
      %v3850 = vld [vmem:[%s3441 + $0x10a] sm:$0xff]
      %v3851 = vld [vmem:[%s3441 + $0x112] sm:$0xff]
      %v3852 = vld [vmem:[%s3441 + $0x122] sm:$0xff]
      %v3853 = vld [vmem:[%s3441 + $0x12a] sm:$0xff]
      %v3854 = vld [vmem:[%s3441 + $0x13a] sm:$0xff]
      %v3855 = vld [vmem:[%s3441 + $0x142] sm:$0xff]
      %v3856 = vld [vmem:[%s3441 + $0x152] sm:$0xff]
      %v3857 = vld [vmem:[%s3441 + $0x15a] sm:$0xff]
      %v3858 = vld [vmem:[%s3441 + $0x16a] sm:$0xff]
      %v3859 = vld [vmem:[%s3441 + $0x172] sm:$0xff]
      %3892 = vrot.lane.b32.xlu0 %v3828, 64
      %v3893 = vpop.permute.xlu0 %3892
      %3894 = vrot.lane.b32.xlu0 %v3829, 64
      %v3895 = vpop.permute.xlu0 %3894
      %3896 = vrot.lane.b32.xlu0 %v3830, 64
      %v3897 = vpop.permute.xlu0 %3896
      %3898 = vrot.lane.b32.xlu0 %v3831, 64
      %v3899 = vpop.permute.xlu0 %3898
      %3900 = vrot.lane.b32.xlu0 %v3832, 64
      %v3901 = vpop.permute.xlu0 %3900
      %3902 = vrot.lane.b32.xlu0 %v3833, 64
      %v3903 = vpop.permute.xlu0 %3902
      %3904 = vrot.lane.b32.xlu0 %v3834, 64
      %v3905 = vpop.permute.xlu0 %3904
      %3906 = vrot.lane.b32.xlu0 %v3835, 64
      %v3907 = vpop.permute.xlu0 %3906
      %3908 = vrot.lane.b32.xlu0 %v3836, 64
      %v3909 = vpop.permute.xlu0 %3908
      %3910 = vrot.lane.b32.xlu0 %v3837, 64
      %v3911 = vpop.permute.xlu0 %3910
      %3912 = vrot.lane.b32.xlu0 %v3838, 64
      %v3913 = vpop.permute.xlu0 %3912
      %3914 = vrot.lane.b32.xlu0 %v3839, 64
      %v3915 = vpop.permute.xlu0 %3914
      %3916 = vrot.lane.b32.xlu0 %v3840, 64
      %v3917 = vpop.permute.xlu0 %3916
      %3918 = vrot.lane.b32.xlu0 %v3841, 64
      %v3919 = vpop.permute.xlu0 %3918
      %3920 = vrot.lane.b32.xlu0 %v3842, 64
      %v3921 = vpop.permute.xlu0 %3920
      %3922 = vrot.lane.b32.xlu0 %v3843, 64
      %v3923 = vpop.permute.xlu0 %3922
      %3924 = vrot.lane.b32.xlu0 %v3844, 64
      %v3925 = vpop.permute.xlu0 %3924
      %3926 = vrot.lane.b32.xlu0 %v3845, 64
      %v3927 = vpop.permute.xlu0 %3926
      %3928 = vrot.lane.b32.xlu0 %v3846, 64
      %v3929 = vpop.permute.xlu0 %3928
      %3930 = vrot.lane.b32.xlu0 %v3847, 64
      %v3931 = vpop.permute.xlu0 %3930
      %3932 = vrot.lane.b32.xlu0 %v3848, 64
      %v3933 = vpop.permute.xlu0 %3932
      %3934 = vrot.lane.b32.xlu0 %v3849, 64
      %v3935 = vpop.permute.xlu0 %3934
      %3936 = vrot.lane.b32.xlu0 %v3850, 64
      %v3937 = vpop.permute.xlu0 %3936
      %3938 = vrot.lane.b32.xlu0 %v3851, 64
      %v3939 = vpop.permute.xlu0 %3938
      %3940 = vrot.lane.b32.xlu0 %v3852, 64
      %v3941 = vpop.permute.xlu0 %3940
      %3942 = vrot.lane.b32.xlu0 %v3853, 64
      %v3943 = vpop.permute.xlu0 %3942
      %3944 = vrot.lane.b32.xlu0 %v3854, 64
      %v3945 = vpop.permute.xlu0 %3944
      %3946 = vrot.lane.b32.xlu0 %v3855, 64
      %v3947 = vpop.permute.xlu0 %3946
      %3948 = vrot.lane.b32.xlu0 %v3856, 64
      %v3949 = vpop.permute.xlu0 %3948
      %3950 = vrot.lane.b32.xlu0 %v3857, 64
      %v3951 = vpop.permute.xlu0 %3950
      %3952 = vrot.lane.b32.xlu0 %v3858, 64
      %v3953 = vpop.permute.xlu0 %3952
      %3954 = vrot.lane.b32.xlu0 %v3859, 64
      %v3955 = vpop.permute.xlu0 %3954
      %vm3988 = vcmask 589312
      %3989 = vst.msk [vmem:[#allocation5] sm:$0xff] %vm3988, %v3893
      %3990 = vst.msk [vmem:[#allocation5 + $0x8] sm:$0xff] %vm3988, %v3895
      %3991 = vst.msk [vmem:[#allocation5 + $0x10] sm:$0xff] %vm3988, %v3897
      %3992 = vst.msk [vmem:[#allocation5 + $0x18] sm:$0xff] %vm3988, %v3899
      %3993 = vst.msk [vmem:[#allocation5 + $0x20] sm:$0xff] %vm3988, %v3901
      %3994 = vst.msk [vmem:[#allocation5 + $0x28] sm:$0xff] %vm3988, %v3903
      %3995 = vst.msk [vmem:[#allocation5 + $0x30] sm:$0xff] %vm3988, %v3905
      %3996 = vst.msk [vmem:[#allocation5 + $0x38] sm:$0xff] %vm3988, %v3907
      %3997 = vst.msk [vmem:[#allocation5 + $0x40] sm:$0xff] %vm3988, %v3909
      %3998 = vst.msk [vmem:[#allocation5 + $0x48] sm:$0xff] %vm3988, %v3911
      %3999 = vst.msk [vmem:[#allocation5 + $0x50] sm:$0xff] %vm3988, %v3913
      %4000 = vst.msk [vmem:[#allocation5 + $0x58] sm:$0xff] %vm3988, %v3915
      %4001 = vst.msk [vmem:[#allocation5 + $0x60] sm:$0xff] %vm3988, %v3917
      %4002 = vst.msk [vmem:[#allocation5 + $0x68] sm:$0xff] %vm3988, %v3919
      %4003 = vst.msk [vmem:[#allocation5 + $0x70] sm:$0xff] %vm3988, %v3921
      %4004 = vst.msk [vmem:[#allocation5 + $0x78] sm:$0xff] %vm3988, %v3923
      %4005 = vst.msk [vmem:[#allocation5 + $0x80] sm:$0xff] %vm3988, %v3925
      %4006 = vst.msk [vmem:[#allocation5 + $0x88] sm:$0xff] %vm3988, %v3927
      %4007 = vst.msk [vmem:[#allocation5 + $0x90] sm:$0xff] %vm3988, %v3929
      %4008 = vst.msk [vmem:[#allocation5 + $0x98] sm:$0xff] %vm3988, %v3931
      %4009 = vst.msk [vmem:[#allocation5 + $0xa0] sm:$0xff] %vm3988, %v3933
      %4010 = vst.msk [vmem:[#allocation5 + $0xa8] sm:$0xff] %vm3988, %v3935
      %4011 = vst.msk [vmem:[#allocation5 + $0xb0] sm:$0xff] %vm3988, %v3937
      %4012 = vst.msk [vmem:[#allocation5 + $0xb8] sm:$0xff] %vm3988, %v3939
      %4013 = vst.msk [vmem:[#allocation5 + $0xc0] sm:$0xff] %vm3988, %v3941
      %4014 = vst.msk [vmem:[#allocation5 + $0xc8] sm:$0xff] %vm3988, %v3943
      %4015 = vst.msk [vmem:[#allocation5 + $0xd0] sm:$0xff] %vm3988, %v3945
      %4016 = vst.msk [vmem:[#allocation5 + $0xd8] sm:$0xff] %vm3988, %v3947
      %4017 = vst.msk [vmem:[#allocation5 + $0xe0] sm:$0xff] %vm3988, %v3949
      %4018 = vst.msk [vmem:[#allocation5 + $0xe8] sm:$0xff] %vm3988, %v3951
      %4019 = vst.msk [vmem:[#allocation5 + $0xf0] sm:$0xff] %vm3988, %v3953
      %4020 = vst.msk [vmem:[#allocation5 + $0xf8] sm:$0xff] %vm3988, %v3955
      %v4021 = vld [vmem:[#allocation5] sm:$0xff]
      %v4022 = vld [vmem:[#allocation5 + $0x8] sm:$0xff]
      %v4023 = vld [vmem:[#allocation5 + $0x10] sm:$0xff]
      %v4024 = vld [vmem:[#allocation5 + $0x18] sm:$0xff]
      %v4025 = vld [vmem:[#allocation5 + $0x20] sm:$0xff]
      %v4026 = vld [vmem:[#allocation5 + $0x28] sm:$0xff]
      %v4027 = vld [vmem:[#allocation5 + $0x30] sm:$0xff]
      %v4028 = vld [vmem:[#allocation5 + $0x38] sm:$0xff]
      %v4029 = vld [vmem:[#allocation5 + $0x40] sm:$0xff]
      %v4030 = vld [vmem:[#allocation5 + $0x48] sm:$0xff]
      %v4031 = vld [vmem:[#allocation5 + $0x50] sm:$0xff]
      %v4032 = vld [vmem:[#allocation5 + $0x58] sm:$0xff]
      %v4033 = vld [vmem:[#allocation5 + $0x60] sm:$0xff]
      %v4034 = vld [vmem:[#allocation5 + $0x68] sm:$0xff]
      %v4035 = vld [vmem:[#allocation5 + $0x70] sm:$0xff]
      %v4036 = vld [vmem:[#allocation5 + $0x78] sm:$0xff]
      %v4037 = vld [vmem:[#allocation5 + $0x80] sm:$0xff]
      %v4038 = vld [vmem:[#allocation5 + $0x88] sm:$0xff]
      %v4039 = vld [vmem:[#allocation5 + $0x90] sm:$0xff]
      %v4040 = vld [vmem:[#allocation5 + $0x98] sm:$0xff]
      %v4041 = vld [vmem:[#allocation5 + $0xa0] sm:$0xff]
      %v4042 = vld [vmem:[#allocation5 + $0xa8] sm:$0xff]
      %v4043 = vld [vmem:[#allocation5 + $0xb0] sm:$0xff]
      %v4044 = vld [vmem:[#allocation5 + $0xb8] sm:$0xff]
      %v4045 = vld [vmem:[#allocation5 + $0xc0] sm:$0xff]
      %v4046 = vld [vmem:[#allocation5 + $0xc8] sm:$0xff]
      %v4047 = vld [vmem:[#allocation5 + $0xd0] sm:$0xff]
      %v4048 = vld [vmem:[#allocation5 + $0xd8] sm:$0xff]
      %v4049 = vld [vmem:[#allocation5 + $0xe0] sm:$0xff]
      %v4050 = vld [vmem:[#allocation5 + $0xe8] sm:$0xff]
      %v4051 = vld [vmem:[#allocation5 + $0xf0] sm:$0xff]
      %v4052 = vld [vmem:[#allocation5 + $0xf8] sm:$0xff]
      %v4053 = vld [vmem:[%s2] sm:$0xff]
      %v4054 = vld [vmem:[%s2 + $0x8] sm:$0xff]
      %v4055 = vld [vmem:[%s2 + $0x10] sm:$0xff]
      %v4056 = vld [vmem:[%s2 + $0x18] sm:$0xff]
      %v4057 = vld [vmem:[%s2 + $0x20] sm:$0xff]
      %v4058 = vld [vmem:[%s2 + $0x28] sm:$0xff]
      %v4059 = vld [vmem:[%s2 + $0x30] sm:$0xff]
      %v4060 = vld [vmem:[%s2 + $0x38] sm:$0xff]
      %v4061 = vld [vmem:[%s2 + $0x40] sm:$0xff]
      %v4062 = vld [vmem:[%s192] sm:$0xff]
      %v4063 = vld [vmem:[%s192 + $0x8] sm:$0xff]
      %v4064 = vld [vmem:[%s192 + $0x10] sm:$0xff]
      %v4065 = vld [vmem:[%s192 + $0x18] sm:$0xff]
      %v4066 = vld [vmem:[%s192 + $0x20] sm:$0xff]
      %v4067 = vld [vmem:[%s192 + $0x28] sm:$0xff]
      %v4068 = vld [vmem:[%s192 + $0x30] sm:$0xff]
      %v4069 = vld [vmem:[%s192 + $0x38] sm:$0xff]
      %v4070 = vld [vmem:[%s192 + $0x40] sm:$0xff]
      %v4071 = vld [vmem:[%s192 + $0x48] sm:$0xff]
      %v4072 = vld [vmem:[%s192 + $0x50] sm:$0xff]
      %v4073 = vld [vmem:[%s192 + $0x58] sm:$0xff]
      %v4074 = vld [vmem:[%s192 + $0x60] sm:$0xff]
      %v4075 = vld [vmem:[%s192 + $0x68] sm:$0xff]
      %v4076 = vld [vmem:[%s192 + $0x70] sm:$0xff]
      %v4077 = vld [vmem:[%s192 + $0x78] sm:$0xff]
      %v4078 = vld [vmem:[%s192 + $0x80] sm:$0xff]
      %v4079 = vld [vmem:[%s192 + $0x88] sm:$0xff]
      %v4080 = vld [vmem:[%s192 + $0x90] sm:$0xff]
      %v4081 = vld [vmem:[%s192 + $0x98] sm:$0xff]
      %v4082 = vld [vmem:[%s192 + $0xa0] sm:$0xff]
      %v4083 = vld [vmem:[%s192 + $0xa8] sm:$0xff]
      %v4084 = vld [vmem:[%s192 + $0xb0] sm:$0xff]
      %v4085 = vld [vmem:[%s192 + $0xb8] sm:$0xff]
      %v4086 = vld [vmem:[%s192 + $0xc0] sm:$0xff]
      %v4087 = vld [vmem:[%s192 + $0xc8] sm:$0xff]
      %v4088 = vld [vmem:[%s192 + $0xd0] sm:$0xff]
      %v4089 = vld [vmem:[%s192 + $0xd8] sm:$0xff]
      %v4090 = vld [vmem:[%s192 + $0xe0] sm:$0xff]
      %v4091 = vld [vmem:[%s192 + $0xe8] sm:$0xff]
      %v4092 = vld [vmem:[%s192 + $0xf0] sm:$0xff]
      %v4093 = vld [vmem:[%s192 + $0xf8] sm:$0xff]
      %v4094 = vld [vmem:[%s3] sm:$0xf]
      %v4096 = vsel %vm198, %v4062, 0
      %v4099 = vsel %vm198, %v4063, 0
      %v4102 = vsel %vm198, %v4064, 0
      %v4105 = vsel %vm198, %v4065, 0
      %v4108 = vsel %vm198, %v4066, 0
      %v4111 = vsel %vm198, %v4067, 0
      %v4114 = vsel %vm198, %v4068, 0
      %v4117 = vsel %vm198, %v4069, 0
      %v4120 = vsel %vm198, %v4070, 0
      %v4123 = vsel %vm198, %v4071, 0
      %v4126 = vsel %vm198, %v4072, 0
      %v4129 = vsel %vm198, %v4073, 0
      %v4132 = vsel %vm198, %v4074, 0
      %v4135 = vsel %vm198, %v4075, 0
      %v4138 = vsel %vm198, %v4076, 0
      %v4141 = vsel %vm198, %v4077, 0
      %v4144 = vsel %vm198, %v4078, 0
      %v4147 = vsel %vm198, %v4079, 0
      %v4150 = vsel %vm198, %v4080, 0
      %v4153 = vsel %vm198, %v4081, 0
      %v4156 = vsel %vm198, %v4082, 0
      %v4159 = vsel %vm198, %v4083, 0
      %v4162 = vsel %vm198, %v4084, 0
      %v4165 = vsel %vm198, %v4085, 0
      %v4168 = vsel %vm198, %v4086, 0
      %v4171 = vsel %vm198, %v4087, 0
      %v4174 = vsel %vm198, %v4088, 0
      %v4177 = vsel %vm198, %v4089, 0
      %v4180 = vsel %vm198, %v4090, 0
      %v4183 = vsel %vm198, %v4091, 0
      %v4186 = vsel %vm198, %v4092, 0
      %v4189 = vsel %vm198, %v4093, 0
      %v4192 = vsel %vm2062, %v4094, 0
      %4194 = vmatprep.subr.mxu0 0.0
      %4195 = vmatpush1.msra.mxu0 %v4192
      %4196 = vmatprep.subr.mxu0 0.0
      %4197 = vmatpush1.msra.mxu0 0.0
      %4198 = vmatprep.subr.mxu0 0.0
      %4199 = vmatpush1.msra.mxu0 0.0
      %4200 = vmatprep.subr.mxu0 0.0
      %4201 = vmatpush1.msra.mxu0 0.0
      %4202 = vmatprep.subr.mxu0 0.0
      %4203 = vmatpush1.msra.mxu0 0.0
      %4204 = vmatprep.subr.mxu0 0.0
      %4205 = vmatpush1.msra.mxu0 0.0
      %4206 = vmatprep.subr.mxu0 0.0
      %4207 = vmatpush1.msra.mxu0 0.0
      %4208 = vmatprep.subr.mxu0 0.0
      %4209 = vmatpush1.msra.mxu0 0.0
      %4210 = vmatprep.subr.mxu0 0.0
      %4211 = vmatpush1.msra.mxu0 0.0
      %4212 = vmatprep.subr.mxu0 0.0
      %4213 = vmatpush1.msra.mxu0 0.0
      %4214 = vmatprep.subr.mxu0 0.0
      %4215 = vmatpush1.msra.mxu0 0.0
      %4216 = vmatprep.subr.mxu0 0.0
      %4217 = vmatpush1.msra.mxu0 0.0
      %4218 = vmatprep.subr.mxu0 0.0
      %4219 = vmatpush1.msra.mxu0 0.0
      %4220 = vmatprep.subr.mxu0 0.0
      %4221 = vmatpush1.msra.mxu0 0.0
      %4222 = vmatprep.subr.mxu0 0.0
      %4223 = vmatpush1.msra.mxu0 0.0
      %4224 = vmatprep.subr.mxu0 0.0
      %4225 = vmatpush1.msra.mxu0 0.0
      %4226 = vmatprep.subr.mxu0 0.0
      %4227 = vmatpush1.msra.mxu0 0.0
      %4228 = vmatprep.subr.mxu0 0.0
      %4229 = vmatpush1.msra.mxu0 0.0
      %4230 = vmatprep.subr.mxu0 0.0
      %4231 = vmatpush1.msra.mxu0 0.0
      %4232 = vmatprep.subr.mxu0 0.0
      %4233 = vmatpush1.msra.mxu0 0.0
      %4234 = vmatprep.subr.mxu0 0.0
      %4235 = vmatpush1.msra.mxu0 0.0
      %4236 = vmatprep.subr.mxu0 0.0
      %4237 = vmatpush1.msra.mxu0 0.0
      %4238 = vmatprep.subr.mxu0 0.0
      %4239 = vmatpush1.msra.mxu0 0.0
      %4240 = vmatprep.subr.mxu0 0.0
      %4241 = vmatpush1.msra.mxu0 0.0
      %4242 = vmatprep.subr.mxu0 0.0
      %4243 = vmatpush1.msra.mxu0 0.0
      %4244 = vmatprep.subr.mxu0 0.0
      %4245 = vmatpush1.msra.mxu0 0.0
      %4246 = vmatprep.subr.mxu0 0.0
      %4247 = vmatpush1.msra.mxu0 0.0
      %4248 = vmatprep.subr.mxu0 0.0
      %4249 = vmatpush1.msra.mxu0 0.0
      %4250 = vmatprep.subr.mxu0 0.0
      %4251 = vmatpush1.msra.mxu0 0.0
      %4252 = vmatprep.subr.mxu0 0.0
      %4253 = vmatpush1.msra.mxu0 0.0
      %4254 = vmatprep.subr.mxu0 0.0
      %4255 = vmatpush1.msra.mxu0 0.0
      %4256 = vmatprep.subr.mxu0 0.0
      %4257 = vmatpush1.msra.mxu0 0.0
      %4258 = vmatprep.mubr.f32.mxu0 0.0
      %4259 = vmatmul.mubr.f32.gmra.mrb[0].mxu0 %v4096
      %v4260 = vpop.f32.mrb[0].mxu0
      %v4261 = vadd.f32 0.0, %v4260
      %v4262 = vpop.f32.mrb[0].mxu0
      %4263 = vmatprep.mubr.f32.mxu0 0.0
      %4264 = vmatmul.mubr.f32.gmra.mrb[0].mxu0 %v4099
      %v4265 = vpop.f32.mrb[0].mxu0
      %v4266 = vadd.f32 0.0, %v4265
      %v4267 = vpop.f32.mrb[0].mxu0
      %4268 = vmatprep.mubr.f32.mxu0 0.0
      %4269 = vmatmul.mubr.f32.gmra.mrb[0].mxu0 %v4102
      %v4270 = vpop.f32.mrb[0].mxu0
      %v4271 = vadd.f32 0.0, %v4270
      %v4272 = vpop.f32.mrb[0].mxu0
      %4273 = vmatprep.mubr.f32.mxu0 0.0
      %4274 = vmatmul.mubr.f32.gmra.mrb[0].mxu0 %v4105
      %v4275 = vpop.f32.mrb[0].mxu0
      %v4276 = vadd.f32 0.0, %v4275
      %v4277 = vpop.f32.mrb[0].mxu0
      %4278 = vmatprep.mubr.f32.mxu0 0.0
      %4279 = vmatmul.mubr.f32.gmra.mrb[0].mxu0 %v4108
      %v4280 = vpop.f32.mrb[0].mxu0
      %v4281 = vadd.f32 0.0, %v4280
      %v4282 = vpop.f32.mrb[0].mxu0
      %4283 = vmatprep.mubr.f32.mxu0 0.0
      %4284 = vmatmul.mubr.f32.gmra.mrb[0].mxu0 %v4111
      %v4285 = vpop.f32.mrb[0].mxu0
      %v4286 = vadd.f32 0.0, %v4285
      %v4287 = vpop.f32.mrb[0].mxu0
      %4288 = vmatprep.mubr.f32.mxu0 0.0
      %4289 = vmatmul.mubr.f32.gmra.mrb[0].mxu0 %v4114
      %v4290 = vpop.f32.mrb[0].mxu0
      %v4291 = vadd.f32 0.0, %v4290
      %v4292 = vpop.f32.mrb[0].mxu0
      %4293 = vmatprep.mubr.f32.mxu0 0.0
      %4294 = vmatmul.mubr.f32.gmra.mrb[0].mxu0 %v4117
      %v4295 = vpop.f32.mrb[0].mxu0
      %v4296 = vadd.f32 0.0, %v4295
      %v4297 = vpop.f32.mrb[0].mxu0
      %4298 = vmatprep.mubr.f32.mxu0 0.0
      %4299 = vmatmul.mubr.f32.gmra.mrb[0].mxu0 %v4120
      %v4300 = vpop.f32.mrb[0].mxu0
      %v4301 = vadd.f32 0.0, %v4300
      %v4302 = vpop.f32.mrb[0].mxu0
      %4303 = vmatprep.mubr.f32.mxu0 0.0
      %4304 = vmatmul.mubr.f32.gmra.mrb[0].mxu0 %v4123
      %v4305 = vpop.f32.mrb[0].mxu0
      %v4306 = vadd.f32 0.0, %v4305
      %v4307 = vpop.f32.mrb[0].mxu0
      %4308 = vmatprep.mubr.f32.mxu0 0.0
      %4309 = vmatmul.mubr.f32.gmra.mrb[0].mxu0 %v4126
      %v4310 = vpop.f32.mrb[0].mxu0
      %v4311 = vadd.f32 0.0, %v4310
      %v4312 = vpop.f32.mrb[0].mxu0
      %4313 = vmatprep.mubr.f32.mxu0 0.0
      %4314 = vmatmul.mubr.f32.gmra.mrb[0].mxu0 %v4129
      %v4315 = vpop.f32.mrb[0].mxu0
      %v4316 = vadd.f32 0.0, %v4315
      %v4317 = vpop.f32.mrb[0].mxu0
      %4318 = vmatprep.mubr.f32.mxu0 0.0
      %4319 = vmatmul.mubr.f32.gmra.mrb[0].mxu0 %v4132
      %v4320 = vpop.f32.mrb[0].mxu0
      %v4321 = vadd.f32 0.0, %v4320
      %v4322 = vpop.f32.mrb[0].mxu0
      %4323 = vmatprep.mubr.f32.mxu0 0.0
      %4324 = vmatmul.mubr.f32.gmra.mrb[0].mxu0 %v4135
      %v4325 = vpop.f32.mrb[0].mxu0
      %v4326 = vadd.f32 0.0, %v4325
      %v4327 = vpop.f32.mrb[0].mxu0
      %4328 = vmatprep.mubr.f32.mxu0 0.0
      %4329 = vmatmul.mubr.f32.gmra.mrb[0].mxu0 %v4138
      %v4330 = vpop.f32.mrb[0].mxu0
      %v4331 = vadd.f32 0.0, %v4330
      %v4332 = vpop.f32.mrb[0].mxu0
      %4333 = vmatprep.mubr.f32.mxu0 0.0
      %4334 = vmatmul.mubr.f32.gmra.mrb[0].mxu0 %v4141
      %v4335 = vpop.f32.mrb[0].mxu0
      %v4336 = vadd.f32 0.0, %v4335
      %v4337 = vpop.f32.mrb[0].mxu0
      %4338 = vmatprep.mubr.f32.mxu0 0.0
      %4339 = vmatmul.mubr.f32.gmra.mrb[0].mxu0 %v4144
      %v4340 = vpop.f32.mrb[0].mxu0
      %v4341 = vadd.f32 0.0, %v4340
      %v4342 = vpop.f32.mrb[0].mxu0
      %4343 = vmatprep.mubr.f32.mxu0 0.0
      %4344 = vmatmul.mubr.f32.gmra.mrb[0].mxu0 %v4147
      %v4345 = vpop.f32.mrb[0].mxu0
      %v4346 = vadd.f32 0.0, %v4345
      %v4347 = vpop.f32.mrb[0].mxu0
      %4348 = vmatprep.mubr.f32.mxu0 0.0
      %4349 = vmatmul.mubr.f32.gmra.mrb[0].mxu0 %v4150
      %v4350 = vpop.f32.mrb[0].mxu0
      %v4351 = vadd.f32 0.0, %v4350
      %v4352 = vpop.f32.mrb[0].mxu0
      %4353 = vmatprep.mubr.f32.mxu0 0.0
      %4354 = vmatmul.mubr.f32.gmra.mrb[0].mxu0 %v4153
      %v4355 = vpop.f32.mrb[0].mxu0
      %v4356 = vadd.f32 0.0, %v4355
      %v4357 = vpop.f32.mrb[0].mxu0
      %4358 = vmatprep.mubr.f32.mxu0 0.0
      %4359 = vmatmul.mubr.f32.gmra.mrb[0].mxu0 %v4156
      %v4360 = vpop.f32.mrb[0].mxu0
      %v4361 = vadd.f32 0.0, %v4360
      %v4362 = vpop.f32.mrb[0].mxu0
      %4363 = vmatprep.mubr.f32.mxu0 0.0
      %4364 = vmatmul.mubr.f32.gmra.mrb[0].mxu0 %v4159
      %v4365 = vpop.f32.mrb[0].mxu0
      %v4366 = vadd.f32 0.0, %v4365
      %v4367 = vpop.f32.mrb[0].mxu0
      %4368 = vmatprep.mubr.f32.mxu0 0.0
      %4369 = vmatmul.mubr.f32.gmra.mrb[0].mxu0 %v4162
      %v4370 = vpop.f32.mrb[0].mxu0
      %v4371 = vadd.f32 0.0, %v4370
      %v4372 = vpop.f32.mrb[0].mxu0
      %4373 = vmatprep.mubr.f32.mxu0 0.0
      %4374 = vmatmul.mubr.f32.gmra.mrb[0].mxu0 %v4165
      %v4375 = vpop.f32.mrb[0].mxu0
      %v4376 = vadd.f32 0.0, %v4375
      %v4377 = vpop.f32.mrb[0].mxu0
      %4378 = vmatprep.mubr.f32.mxu0 0.0
      %4379 = vmatmul.mubr.f32.gmra.mrb[0].mxu0 %v4168
      %v4380 = vpop.f32.mrb[0].mxu0
      %v4381 = vadd.f32 0.0, %v4380
      %v4382 = vpop.f32.mrb[0].mxu0
      %4383 = vmatprep.mubr.f32.mxu0 0.0
      %4384 = vmatmul.mubr.f32.gmra.mrb[0].mxu0 %v4171
      %v4385 = vpop.f32.mrb[0].mxu0
      %v4386 = vadd.f32 0.0, %v4385
      %v4387 = vpop.f32.mrb[0].mxu0
      %4388 = vmatprep.mubr.f32.mxu0 0.0
      %4389 = vmatmul.mubr.f32.gmra.mrb[0].mxu0 %v4174
      %v4390 = vpop.f32.mrb[0].mxu0
      %v4391 = vadd.f32 0.0, %v4390
      %v4392 = vpop.f32.mrb[0].mxu0
      %4393 = vmatprep.mubr.f32.mxu0 0.0
      %4394 = vmatmul.mubr.f32.gmra.mrb[0].mxu0 %v4177
      %v4395 = vpop.f32.mrb[0].mxu0
      %v4396 = vadd.f32 0.0, %v4395
      %v4397 = vpop.f32.mrb[0].mxu0
      %4398 = vmatprep.mubr.f32.mxu0 0.0
      %4399 = vmatmul.mubr.f32.gmra.mrb[0].mxu0 %v4180
      %v4400 = vpop.f32.mrb[0].mxu0
      %v4401 = vadd.f32 0.0, %v4400
      %v4402 = vpop.f32.mrb[0].mxu0
      %4403 = vmatprep.mubr.f32.mxu0 0.0
      %4404 = vmatmul.mubr.f32.gmra.mrb[0].mxu0 %v4183
      %v4405 = vpop.f32.mrb[0].mxu0
      %v4406 = vadd.f32 0.0, %v4405
      %v4407 = vpop.f32.mrb[0].mxu0
      %4408 = vmatprep.mubr.f32.mxu0 0.0
      %4409 = vmatmul.mubr.f32.gmra.mrb[0].mxu0 %v4186
      %v4410 = vpop.f32.mrb[0].mxu0
      %v4411 = vadd.f32 0.0, %v4410
      %v4412 = vpop.f32.mrb[0].mxu0
      %4413 = vmatprep.mubr.f32.mxu0 0.0
      %4414 = vmatmul.mubr.f32.gmra.mrb[0].mxu0 %v4189
      %v4415 = vpop.f32.mrb[0].mxu0
      %v4416 = vadd.f32 0.0, %v4415
      %v4417 = vpop.f32.mrb[0].mxu0
      %4418 = vdwg.mxu0
      %vm4419 = vcmask 588800
      %v4421 = vsel %vm4419, %v4021, 0
      %v4424 = vsel %vm4419, %v4022, 0
      %v4427 = vsel %vm4419, %v4023, 0
      %v4430 = vsel %vm4419, %v4024, 0
      %v4433 = vsel %vm4419, %v4025, 0
      %v4436 = vsel %vm4419, %v4026, 0
      %v4439 = vsel %vm4419, %v4027, 0
      %v4442 = vsel %vm4419, %v4028, 0
      %v4445 = vsel %vm4419, %v4029, 0
      %v4448 = vsel %vm4419, %v4030, 0
      %v4451 = vsel %vm4419, %v4031, 0
      %v4454 = vsel %vm4419, %v4032, 0
      %v4457 = vsel %vm4419, %v4033, 0
      %v4460 = vsel %vm4419, %v4034, 0
      %v4463 = vsel %vm4419, %v4035, 0
      %v4466 = vsel %vm4419, %v4036, 0
      %v4469 = vsel %vm4419, %v4037, 0
      %v4472 = vsel %vm4419, %v4038, 0
      %v4475 = vsel %vm4419, %v4039, 0
      %v4478 = vsel %vm4419, %v4040, 0
      %v4481 = vsel %vm4419, %v4041, 0
      %v4484 = vsel %vm4419, %v4042, 0
      %v4487 = vsel %vm4419, %v4043, 0
      %v4490 = vsel %vm4419, %v4044, 0
      %v4493 = vsel %vm4419, %v4045, 0
      %v4496 = vsel %vm4419, %v4046, 0
      %v4499 = vsel %vm4419, %v4047, 0
      %v4502 = vsel %vm4419, %v4048, 0
      %v4505 = vsel %vm4419, %v4049, 0
      %v4508 = vsel %vm4419, %v4050, 0
      %v4511 = vsel %vm4419, %v4051, 0
      %v4514 = vsel %vm4419, %v4052, 0
      %4516 = vmatprep.subr.mxu0 0.0
      %4517 = vmatpush1.msra.mxu0 %v4053
      %4518 = vmatprep.subr.mxu0 0.0
      %4519 = vmatpush1.msra.mxu0 %v4054
      %4520 = vmatprep.subr.mxu0 0.0
      %4521 = vmatpush1.msra.mxu0 %v4055
      %4522 = vmatprep.subr.mxu0 0.0
      %4523 = vmatpush1.msra.mxu0 %v4056
      %4524 = vmatprep.subr.mxu0 0.0
      %4525 = vmatpush1.msra.mxu0 %v4057
      %4526 = vmatprep.subr.mxu0 0.0
      %4527 = vmatpush1.msra.mxu0 %v4058
      %4528 = vmatprep.subr.mxu0 0.0
      %4529 = vmatpush1.msra.mxu0 %v4059
      %4530 = vmatprep.subr.mxu0 0.0
      %4531 = vmatpush1.msra.mxu0 %v4060
      %4532 = vmatprep.subr.mxu0 0.0
      %4533 = vmatpush1.msra.mxu0 %v4061
      %4534 = vmatprep.subr.mxu0 0.0
      %4535 = vmatpush1.msra.mxu0 0.0
      %4536 = vmatprep.subr.mxu0 0.0
      %4537 = vmatpush1.msra.mxu0 0.0
      %4538 = vmatprep.subr.mxu0 0.0
      %4539 = vmatpush1.msra.mxu0 0.0
      %4540 = vmatprep.subr.mxu0 0.0
      %4541 = vmatpush1.msra.mxu0 0.0
      %4542 = vmatprep.subr.mxu0 0.0
      %4543 = vmatpush1.msra.mxu0 0.0
      %4544 = vmatprep.subr.mxu0 0.0
      %4545 = vmatpush1.msra.mxu0 0.0
      %4546 = vmatprep.subr.mxu0 0.0
      %4547 = vmatpush1.msra.mxu0 0.0
      %4548 = vmatprep.subr.mxu0 0.0
      %4549 = vmatpush1.msra.mxu0 0.0
      %4550 = vmatprep.subr.mxu0 0.0
      %4551 = vmatpush1.msra.mxu0 0.0
      %4552 = vmatprep.subr.mxu0 0.0
      %4553 = vmatpush1.msra.mxu0 0.0
      %4554 = vmatprep.subr.mxu0 0.0
      %4555 = vmatpush1.msra.mxu0 0.0
      %4556 = vmatprep.subr.mxu0 0.0
      %4557 = vmatpush1.msra.mxu0 0.0
      %4558 = vmatprep.subr.mxu0 0.0
      %4559 = vmatpush1.msra.mxu0 0.0
      %4560 = vmatprep.subr.mxu0 0.0
      %4561 = vmatpush1.msra.mxu0 0.0
      %4562 = vmatprep.subr.mxu0 0.0
      %4563 = vmatpush1.msra.mxu0 0.0
      %4564 = vmatprep.subr.mxu0 0.0
      %4565 = vmatpush1.msra.mxu0 0.0
      %4566 = vmatprep.subr.mxu0 0.0
      %4567 = vmatpush1.msra.mxu0 0.0
      %4568 = vmatprep.subr.mxu0 0.0
      %4569 = vmatpush1.msra.mxu0 0.0
      %4570 = vmatprep.subr.mxu0 0.0
      %4571 = vmatpush1.msra.mxu0 0.0
      %4572 = vmatprep.subr.mxu0 0.0
      %4573 = vmatpush1.msra.mxu0 0.0
      %4574 = vmatprep.subr.mxu0 0.0
      %4575 = vmatpush1.msra.mxu0 0.0
      %4576 = vmatprep.subr.mxu0 0.0
      %4577 = vmatpush1.msra.mxu0 0.0
      %4578 = vmatprep.subr.mxu0 0.0
      %4579 = vmatpush1.msra.mxu0 0.0
      %4580 = vmatprep.mubr.f32.mxu0 0.0
      %4581 = vmatmul.mubr.f32.gmra.mrb[0].mxu0 %v4421
      %v4582 = vpop.f32.mrb[0].mxu0
      %v4583 = vadd.f32 %v4261, %v4582
      %v4584 = vpop.f32.mrb[0].mxu0
      %4585 = vmatprep.mubr.f32.mxu0 0.0
      %4586 = vmatmul.mubr.f32.gmra.mrb[0].mxu0 %v4424
      %v4587 = vpop.f32.mrb[0].mxu0
      %v4588 = vadd.f32 %v4266, %v4587
      %v4589 = vpop.f32.mrb[0].mxu0
      %4590 = vmatprep.mubr.f32.mxu0 0.0
      %4591 = vmatmul.mubr.f32.gmra.mrb[0].mxu0 %v4427
      %v4592 = vpop.f32.mrb[0].mxu0
      %v4593 = vadd.f32 %v4271, %v4592
      %v4594 = vpop.f32.mrb[0].mxu0
      %4595 = vmatprep.mubr.f32.mxu0 0.0
      %4596 = vmatmul.mubr.f32.gmra.mrb[0].mxu0 %v4430
      %v4597 = vpop.f32.mrb[0].mxu0
      %v4598 = vadd.f32 %v4276, %v4597
      %v4599 = vpop.f32.mrb[0].mxu0
      %4600 = vmatprep.mubr.f32.mxu0 0.0
      %4601 = vmatmul.mubr.f32.gmra.mrb[0].mxu0 %v4433
      %v4602 = vpop.f32.mrb[0].mxu0
      %v4603 = vadd.f32 %v4281, %v4602
      %v4604 = vpop.f32.mrb[0].mxu0
      %4605 = vmatprep.mubr.f32.mxu0 0.0
      %4606 = vmatmul.mubr.f32.gmra.mrb[0].mxu0 %v4436
      %v4607 = vpop.f32.mrb[0].mxu0
      %v4608 = vadd.f32 %v4286, %v4607
      %v4609 = vpop.f32.mrb[0].mxu0
      %4610 = vmatprep.mubr.f32.mxu0 0.0
      %4611 = vmatmul.mubr.f32.gmra.mrb[0].mxu0 %v4439
      %v4612 = vpop.f32.mrb[0].mxu0
      %v4613 = vadd.f32 %v4291, %v4612
      %v4614 = vpop.f32.mrb[0].mxu0
      %4615 = vmatprep.mubr.f32.mxu0 0.0
      %4616 = vmatmul.mubr.f32.gmra.mrb[0].mxu0 %v4442
      %v4617 = vpop.f32.mrb[0].mxu0
      %v4618 = vadd.f32 %v4296, %v4617
      %v4619 = vpop.f32.mrb[0].mxu0
      %4620 = vmatprep.mubr.f32.mxu0 0.0
      %4621 = vmatmul.mubr.f32.gmra.mrb[0].mxu0 %v4445
      %v4622 = vpop.f32.mrb[0].mxu0
      %v4623 = vadd.f32 %v4301, %v4622
      %v4624 = vpop.f32.mrb[0].mxu0
      %4625 = vmatprep.mubr.f32.mxu0 0.0
      %4626 = vmatmul.mubr.f32.gmra.mrb[0].mxu0 %v4448
      %v4627 = vpop.f32.mrb[0].mxu0
      %v4628 = vadd.f32 %v4306, %v4627
      %v4629 = vpop.f32.mrb[0].mxu0
      %4630 = vmatprep.mubr.f32.mxu0 0.0
      %4631 = vmatmul.mubr.f32.gmra.mrb[0].mxu0 %v4451
      %v4632 = vpop.f32.mrb[0].mxu0
      %v4633 = vadd.f32 %v4311, %v4632
      %v4634 = vpop.f32.mrb[0].mxu0
      %4635 = vmatprep.mubr.f32.mxu0 0.0
      %4636 = vmatmul.mubr.f32.gmra.mrb[0].mxu0 %v4454
      %v4637 = vpop.f32.mrb[0].mxu0
      %v4638 = vadd.f32 %v4316, %v4637
      %v4639 = vpop.f32.mrb[0].mxu0
      %4640 = vmatprep.mubr.f32.mxu0 0.0
      %4641 = vmatmul.mubr.f32.gmra.mrb[0].mxu0 %v4457
      %v4642 = vpop.f32.mrb[0].mxu0
      %v4643 = vadd.f32 %v4321, %v4642
      %v4644 = vpop.f32.mrb[0].mxu0
      %4645 = vmatprep.mubr.f32.mxu0 0.0
      %4646 = vmatmul.mubr.f32.gmra.mrb[0].mxu0 %v4460
      %v4647 = vpop.f32.mrb[0].mxu0
      %v4648 = vadd.f32 %v4326, %v4647
      %v4649 = vpop.f32.mrb[0].mxu0
      %4650 = vmatprep.mubr.f32.mxu0 0.0
      %4651 = vmatmul.mubr.f32.gmra.mrb[0].mxu0 %v4463
      %v4652 = vpop.f32.mrb[0].mxu0
      %v4653 = vadd.f32 %v4331, %v4652
      %v4654 = vpop.f32.mrb[0].mxu0
      %4655 = vmatprep.mubr.f32.mxu0 0.0
      %4656 = vmatmul.mubr.f32.gmra.mrb[0].mxu0 %v4466
      %v4657 = vpop.f32.mrb[0].mxu0
      %v4658 = vadd.f32 %v4336, %v4657
      %v4659 = vpop.f32.mrb[0].mxu0
      %4660 = vmatprep.mubr.f32.mxu0 0.0
      %4661 = vmatmul.mubr.f32.gmra.mrb[0].mxu0 %v4469
      %v4662 = vpop.f32.mrb[0].mxu0
      %v4663 = vadd.f32 %v4341, %v4662
      %v4664 = vpop.f32.mrb[0].mxu0
      %4665 = vmatprep.mubr.f32.mxu0 0.0
      %4666 = vmatmul.mubr.f32.gmra.mrb[0].mxu0 %v4472
      %v4667 = vpop.f32.mrb[0].mxu0
      %v4668 = vadd.f32 %v4346, %v4667
      %v4669 = vpop.f32.mrb[0].mxu0
      %4670 = vmatprep.mubr.f32.mxu0 0.0
      %4671 = vmatmul.mubr.f32.gmra.mrb[0].mxu0 %v4475
      %v4672 = vpop.f32.mrb[0].mxu0
      %v4673 = vadd.f32 %v4351, %v4672
      %v4674 = vpop.f32.mrb[0].mxu0
      %4675 = vmatprep.mubr.f32.mxu0 0.0
      %4676 = vmatmul.mubr.f32.gmra.mrb[0].mxu0 %v4478
      %v4677 = vpop.f32.mrb[0].mxu0
      %v4678 = vadd.f32 %v4356, %v4677
      %v4679 = vpop.f32.mrb[0].mxu0
      %4680 = vmatprep.mubr.f32.mxu0 0.0
      %4681 = vmatmul.mubr.f32.gmra.mrb[0].mxu0 %v4481
      %v4682 = vpop.f32.mrb[0].mxu0
      %v4683 = vadd.f32 %v4361, %v4682
      %v4684 = vpop.f32.mrb[0].mxu0
      %4685 = vmatprep.mubr.f32.mxu0 0.0
      %4686 = vmatmul.mubr.f32.gmra.mrb[0].mxu0 %v4484
      %v4687 = vpop.f32.mrb[0].mxu0
      %v4688 = vadd.f32 %v4366, %v4687
      %v4689 = vpop.f32.mrb[0].mxu0
      %4690 = vmatprep.mubr.f32.mxu0 0.0
      %4691 = vmatmul.mubr.f32.gmra.mrb[0].mxu0 %v4487
      %v4692 = vpop.f32.mrb[0].mxu0
      %v4693 = vadd.f32 %v4371, %v4692
      %v4694 = vpop.f32.mrb[0].mxu0
      %4695 = vmatprep.mubr.f32.mxu0 0.0
      %4696 = vmatmul.mubr.f32.gmra.mrb[0].mxu0 %v4490
      %v4697 = vpop.f32.mrb[0].mxu0
      %v4698 = vadd.f32 %v4376, %v4697
      %v4699 = vpop.f32.mrb[0].mxu0
      %4700 = vmatprep.mubr.f32.mxu0 0.0
      %4701 = vmatmul.mubr.f32.gmra.mrb[0].mxu0 %v4493
      %v4702 = vpop.f32.mrb[0].mxu0
      %v4703 = vadd.f32 %v4381, %v4702
      %v4704 = vpop.f32.mrb[0].mxu0
      %4705 = vmatprep.mubr.f32.mxu0 0.0
      %4706 = vmatmul.mubr.f32.gmra.mrb[0].mxu0 %v4496
      %v4707 = vpop.f32.mrb[0].mxu0
      %v4708 = vadd.f32 %v4386, %v4707
      %v4709 = vpop.f32.mrb[0].mxu0
      %4710 = vmatprep.mubr.f32.mxu0 0.0
      %4711 = vmatmul.mubr.f32.gmra.mrb[0].mxu0 %v4499
      %v4712 = vpop.f32.mrb[0].mxu0
      %v4713 = vadd.f32 %v4391, %v4712
      %v4714 = vpop.f32.mrb[0].mxu0
      %4715 = vmatprep.mubr.f32.mxu0 0.0
      %4716 = vmatmul.mubr.f32.gmra.mrb[0].mxu0 %v4502
      %v4717 = vpop.f32.mrb[0].mxu0
      %v4718 = vadd.f32 %v4396, %v4717
      %v4719 = vpop.f32.mrb[0].mxu0
      %4720 = vmatprep.mubr.f32.mxu0 0.0
      %4721 = vmatmul.mubr.f32.gmra.mrb[0].mxu0 %v4505
      %v4722 = vpop.f32.mrb[0].mxu0
      %v4723 = vadd.f32 %v4401, %v4722
      %v4724 = vpop.f32.mrb[0].mxu0
      %4725 = vmatprep.mubr.f32.mxu0 0.0
      %4726 = vmatmul.mubr.f32.gmra.mrb[0].mxu0 %v4508
      %v4727 = vpop.f32.mrb[0].mxu0
      %v4728 = vadd.f32 %v4406, %v4727
      %v4729 = vpop.f32.mrb[0].mxu0
      %4730 = vmatprep.mubr.f32.mxu0 0.0
      %4731 = vmatmul.mubr.f32.gmra.mrb[0].mxu0 %v4511
      %v4732 = vpop.f32.mrb[0].mxu0
      %v4733 = vadd.f32 %v4411, %v4732
      %v4734 = vpop.f32.mrb[0].mxu0
      %4735 = vmatprep.mubr.f32.mxu0 0.0
      %4736 = vmatmul.mubr.f32.gmra.mrb[0].mxu0 %v4514
      %v4737 = vpop.f32.mrb[0].mxu0
      %v4738 = vadd.f32 %v4416, %v4737
      %v4739 = vpop.f32.mrb[0].mxu0
      %4740 = vdwg.mxu0
      %v4741 = vmax.f32 %v4583, 0.0
      %v4742 = vmax.f32 %v4588, 0.0
      %v4743 = vmax.f32 %v4593, 0.0
      %v4744 = vmax.f32 %v4598, 0.0
      %v4745 = vmax.f32 %v4603, 0.0
      %v4746 = vmax.f32 %v4608, 0.0
      %v4747 = vmax.f32 %v4613, 0.0
      %v4748 = vmax.f32 %v4618, 0.0
      %v4749 = vmax.f32 %v4623, 0.0
      %v4750 = vmax.f32 %v4628, 0.0
      %v4751 = vmax.f32 %v4633, 0.0
      %v4752 = vmax.f32 %v4638, 0.0
      %v4753 = vmax.f32 %v4643, 0.0
      %v4754 = vmax.f32 %v4648, 0.0
      %v4755 = vmax.f32 %v4653, 0.0
      %v4756 = vmax.f32 %v4658, 0.0
      %v4757 = vmax.f32 %v4663, 0.0
      %v4758 = vmax.f32 %v4668, 0.0
      %v4759 = vmax.f32 %v4673, 0.0
      %v4760 = vmax.f32 %v4678, 0.0
      %v4761 = vmax.f32 %v4683, 0.0
      %v4762 = vmax.f32 %v4688, 0.0
      %v4763 = vmax.f32 %v4693, 0.0
      %v4764 = vmax.f32 %v4698, 0.0
      %v4765 = vmax.f32 %v4703, 0.0
      %v4766 = vmax.f32 %v4708, 0.0
      %v4767 = vmax.f32 %v4713, 0.0
      %v4768 = vmax.f32 %v4718, 0.0
      %v4769 = vmax.f32 %v4723, 0.0
      %v4770 = vmax.f32 %v4728, 0.0
      %v4771 = vmax.f32 %v4733, 0.0
      %v4772 = vmax.f32 %v4738, 0.0
      %4773 = vst.msk [vmem:[%s197] sm:$0xff] %vm2323, %v4741
      %4774 = vst.msk [vmem:[%s197 + $0x8] sm:$0xff] %vm2323, %v4742
      %4775 = vst.msk [vmem:[%s197 + $0x10] sm:$0xff] %vm2323, %v4743
      %4776 = vst.msk [vmem:[%s197 + $0x18] sm:$0xff] %vm2323, %v4744
      %4777 = vst.msk [vmem:[%s197 + $0x20] sm:$0xff] %vm2323, %v4745
      %4778 = vst.msk [vmem:[%s197 + $0x28] sm:$0xff] %vm2323, %v4746
      %4779 = vst.msk [vmem:[%s197 + $0x30] sm:$0xff] %vm2323, %v4747
      %4780 = vst.msk [vmem:[%s197 + $0x38] sm:$0xff] %vm2323, %v4748
      %4781 = vst.msk [vmem:[%s197 + $0x40] sm:$0xff] %vm2323, %v4749
      %4782 = vst.msk [vmem:[%s197 + $0x48] sm:$0xff] %vm2323, %v4750
      %4783 = vst.msk [vmem:[%s197 + $0x50] sm:$0xff] %vm2323, %v4751
      %4784 = vst.msk [vmem:[%s197 + $0x58] sm:$0xff] %vm2323, %v4752
      %4785 = vst.msk [vmem:[%s197 + $0x60] sm:$0xff] %vm2323, %v4753
      %4786 = vst.msk [vmem:[%s197 + $0x68] sm:$0xff] %vm2323, %v4754
      %4787 = vst.msk [vmem:[%s197 + $0x70] sm:$0xff] %vm2323, %v4755
      %4788 = vst.msk [vmem:[%s197 + $0x78] sm:$0xff] %vm2323, %v4756
      %4789 = vst.msk [vmem:[%s197 + $0x80] sm:$0xff] %vm2323, %v4757
      %4790 = vst.msk [vmem:[%s197 + $0x88] sm:$0xff] %vm2323, %v4758
      %4791 = vst.msk [vmem:[%s197 + $0x90] sm:$0xff] %vm2323, %v4759
      %4792 = vst.msk [vmem:[%s197 + $0x98] sm:$0xff] %vm2323, %v4760
      %4793 = vst.msk [vmem:[%s197 + $0xa0] sm:$0xff] %vm2323, %v4761
      %4794 = vst.msk [vmem:[%s197 + $0xa8] sm:$0xff] %vm2323, %v4762
      %4795 = vst.msk [vmem:[%s197 + $0xb0] sm:$0xff] %vm2323, %v4763
      %4796 = vst.msk [vmem:[%s197 + $0xb8] sm:$0xff] %vm2323, %v4764
      %4797 = vst.msk [vmem:[%s197 + $0xc0] sm:$0xff] %vm2323, %v4765
      %4798 = vst.msk [vmem:[%s197 + $0xc8] sm:$0xff] %vm2323, %v4766
      %4799 = vst.msk [vmem:[%s197 + $0xd0] sm:$0xff] %vm2323, %v4767
      %4800 = vst.msk [vmem:[%s197 + $0xd8] sm:$0xff] %vm2323, %v4768
      %4801 = vst.msk [vmem:[%s197 + $0xe0] sm:$0xff] %vm2323, %v4769
      %4802 = vst.msk [vmem:[%s197 + $0xe8] sm:$0xff] %vm2323, %v4770
      %4803 = vst.msk [vmem:[%s197 + $0xf0] sm:$0xff] %vm2323, %v4771
      %4804 = vst.msk [vmem:[%s197 + $0xf8] sm:$0xff] %vm2323, %v4772
      %p4805 = scmp.lt.s32.totalorder %s15, 1
      %s4806 = scalar_select %p4805, %s15, 1
      %s4807 = smul.addr %s4806, 32
      %s4808 = smul.addr %s4807, 8
      %s4809 = scalar_lea.vmem %s4, %s4808
      // Predicated region
      $region37: #{tpu_custom_call.1} parent=35 // pred_check
        %p4810 = pneg %p122
      $region38: #{tpu_custom_call.1} parent=35 // pred_check_branch
        %4812 = sbr.rel (%p4810) target = $region40
      $region39: #{tpu_custom_call.1} parent=35 // pred_region
        _
      $region40: #{tpu_custom_call.1} parent=35 // pred_fallthru
        _
    $region36: #{tpu_custom_call.1} parent=5 // pred_fallthru
      _
    %p4813 = scmp.le.s32.totalorder 2, %s10
    // Predicated region
    $region41: #{tpu_custom_call.1} parent=5 // pred_check
      %p4814 = pneg %p4813
    $region42: #{tpu_custom_call.1} parent=5 // pred_check_branch
      %4816 = sbr.rel (%p4814) target = $region44
    $region43: #{tpu_custom_call.1} parent=5 // pred_region
      %s4817 = ssub.s32 %s10, 2
      // Predicated region
      $region45: #{tpu_custom_call.1} parent=43 // pred_check
        %p4818 = pneg %p128
      $region46: #{tpu_custom_call.1} parent=43 // pred_check_branch
        %4820 = sbr.rel (%p4818) target = $region48
      $region47: #{tpu_custom_call.1} parent=43 // pred_region
        %p4821 = scmp.lt.s32.totalorder %s16, 1
        %s4822 = scalar_select %p4821, %s16, 1
        %s4823 = smul.addr %s4822, 32
        %s4824 = smul.addr %s4823, 8
        %s4825 = scalar_lea.vmem %s4, %s4824
      $region48: #{tpu_custom_call.1} parent=43 // pred_fallthru
        _
    $region44: #{tpu_custom_call.1} parent=5 // pred_fallthru
      _
  $region6: #{tpu_custom_call.1} parent=0 // loop_footer
    %s14 = sadd.s32 1, %s10
  $region7: #{tpu_custom_call.1} parent=0 // loop_footer_branch
    %9 = sbr.rel target = $region3
  $region8: #{tpu_custom_call.1} parent=0 // loop_exit
    _

</llo_original>
